<compile_context>
chip_gen: v6e
topology: v6e:2x2x1
jax: 0.10.0
libtpu: 0.0.40
codegen_flags: <defaults>
</compile_context>

<pallas_src>
import functools

import jax
import jax.numpy as jnp
from jax import lax
from jax.experimental import pallas as pl
from jax.experimental.pallas import tpu as pltpu


# ----------------------------- in-kernel helpers -----------------------------

_LN_EPS = 1e-5  # PyTorch nn.LayerNorm default


def _layernorm(x, gamma, beta):
    mean = jnp.mean(x, axis=-1, keepdims=True)
    xc = x - mean
    var = jnp.mean(xc * xc, axis=-1, keepdims=True)
    return xc * lax.rsqrt(var + _LN_EPS) * gamma + beta


def _silu(x):
    return x * jax.nn.sigmoid(x)


# --------------------------------- the kernel --------------------------------

def titan_transformer_kernel(
    depth, num_heads, head_dim,
    # -------- inputs (per-layer params stacked along a leading L axis) --------
    x_ref,        # (1, S, D)             f32 activations (persistent tokens prepended)
    ln_ref,       # (L, 4, D)             f32 [ln1_g, ln1_b, ln2_g, ln2_b]
    wqkv_ref,     # (L, D, 3*inner)       bf16 fused q|k|v projection (pre-transposed)
    bqkv_ref,     # (L, 1, 3*inner)       f32
    dw_w_ref,     # (L, 3, 3*inner)       f32 depthwise taps (tap, q|k|v channels)
    dw_b_ref,     # (L, 1, 3*inner)       f32
    pw_w_ref,     # (L, 3*inner, 3*inner) bf16 block-diag pointwise convs (q block pre-scaled)
    pw_b_ref,     # (L, 1, 3*inner)       f32 (q segment pre-scaled)
    wo_ref,       # (L, inner, D)         bf16 out projection (pre-transposed)
    bo_ref,       # (L, 1, D)             f32
    w1_ref,       # (L, D, mlp)           bf16
    b1_ref,       # (L, 1, mlp)           f32
    wgt_ref,      # (L, mlp, 2*mlp)       bf16 fused gate|transform projection
    bgt_ref,      # (L, 1, 2*mlp)         f32
    w2_ref,       # (L, mlp, D)           bf16
    b2_ref,       # (L, 1, D)             f32
    fln_ref,      # (2, D)                f32 final LayerNorm gamma, beta
    # -------- output -----------------------------------------------------------
    o_ref,        # (1, S, D) f32
):
    x = x_ref[0]                       # (S, D) f32, resident in VMEM for the whole depth loop
    S = x.shape[0]
    inner = num_heads * head_dim
    mlp_dim = w1_ref.shape[2]
    bf16 = jnp.bfloat16
    f32 = jnp.float32

    # Sequence-boundary masks for the kernel=3 / padding=1 depthwise conv,
    # hoisted out of the layer loop.
    row = lax.broadcasted_iota(jnp.int32, (S, 1), 0)
    first_row = row == 0
    last_row = row == S - 1

    for l in range(depth):             # static unroll; depth is small
        ln = ln_ref[l]                 # (4, D)

        # ---- attention branch: x + out_proj(attn(conv(silu(qkv_proj(norm1(x)))))) ----
        xn = _layernorm(x, ln[0:1, :], ln[1:2, :])
        qkv = jnp.dot(xn.astype(bf16), wqkv_ref[l],
                      preferred_element_type=f32) + bqkv_ref[l]
        qkv = _silu(qkv)               # SiLU BEFORE the convs, matching TitanAttention

        # Depthwise Conv1d along S (k=3, pad=1, groups=C) on the full q|k|v slab:
        # +-1 shifts via pltpu.roll (XLU) + boundary mask (VPU select), no concatenates.
        x_m1 = jnp.where(first_row, 0.0, pltpu.roll(qkv, shift=1, axis=0))      # x[s-1]
        x_p1 = jnp.where(last_row, 0.0, pltpu.roll(qkv, shift=S - 1, axis=0))   # x[s+1]
        dw = dw_w_ref[l]               # (3, 3*inner)
        y = dw[0:1, :] * x_m1 + dw[1:2, :] * qkv + dw[2:3, :] * x_p1 + dw_b_ref[l]
        # Pointwise (1x1) convs for q/k/v packed block-diagonally into one matmul;
        # the attention scale head_dim**-0.5 is pre-folded into the q block at init.
        qkv_c = jnp.dot(y.astype(bf16), pw_w_ref[l],
                        preferred_element_type=f32) + pw_b_ref[l]   # (S, 3*inner)

        # Per-head attention with the output projection fused per head and
        # accumulated (no (H,S,Dh) stack, no trailing concat).
        wo = wo_ref[l]                 # (inner, D) bf16
        attn = bo_ref[l]               # (1, D) out-proj bias; broadcasts to (S, D)
        for h in range(num_heads):
            q_sl = slice(h * head_dim, (h + 1) * head_dim)
            k_sl = slice(inner + h * head_dim, inner + (h + 1) * head_dim)
            v_sl = slice(2 * inner + h * head_dim, 2 * inner + (h + 1) * head_dim)
            qh = qkv_c[:, q_sl].astype(bf16)       # already scaled by head_dim**-0.5
            kh = qkv_c[:, k_sl].astype(bf16)
            vh = qkv_c[:, v_sl].astype(bf16)
            s = lax.dot_general(qh, kh, (((1,), (1,)), ((), ())),
                                preferred_element_type=f32)          # (S, S) = q @ k.T
            s = s - jnp.max(s, axis=-1, keepdims=True)
            p = jnp.exp(s)
            p = p * pl.reciprocal(jnp.sum(p, axis=-1, keepdims=True), approx=True)
            # attention dropout is identity in eval mode
            ctx = jnp.dot(p.astype(bf16), vh, preferred_element_type=f32)   # (S, Dh)
            attn = attn + jnp.dot(ctx.astype(bf16), wo[q_sl, :],
                                  preferred_element_type=f32)
        x = x + attn

        # ---- MLP branch: x + fc2(gate * transform(silu(fc1(norm2(x))))) ----
        xn2 = _layernorm(x, ln[2:3, :], ln[3:4, :])
        h1 = _silu(jnp.dot(xn2.astype(bf16), w1_ref[l],
                           preferred_element_type=f32) + b1_ref[l])
        gt = jnp.dot(h1.astype(bf16), wgt_ref[l],
                     preferred_element_type=f32) + bgt_ref[l]
        gate = jax.nn.sigmoid(gt[:, :mlp_dim])
        trans = gt[:, mlp_dim:]
        mlp = jnp.dot((gate * trans).astype(bf16), w2_ref[l],
                      preferred_element_type=f32) + b2_ref[l]
        # MLP dropouts are identity in eval mode
        x = x + mlp

    # ---- final LayerNorm fused here (no extra pallas_call / HBM round trip) ----
    o_ref[0] = _layernorm(x, fln_ref[0:1, :], fln_ref[1:2, :]).astype(o_ref.dtype)


# --------------------------------- wrapper ------------------------------------

_VMEM_LIMIT = 48 * 1024 * 1024   # below ~56 MiB so the same plan fits v7x's 64 MiB/TC


def _full_spec(arr):
    nd = arr.ndim
    return pl.BlockSpec(arr.shape, lambda b, _nd=nd: (0,) * _nd)


def titan_transformer(x, persistent_memory, stacked_params, final_ln, *,
                      depth, num_heads, head_dim):
    """x: (B, seq, D) f32.  Prepends persistent tokens, runs the fully fused model."""
    B = x.shape[0]
    pm = jnp.broadcast_to(persistent_memory, (B,) + persistent_memory.shape[1:])
    h = jnp.concatenate([pm, x], axis=1)              # (B, S, D)
    _, S, D = h.shape

    kernel = functools.partial(titan_transformer_kernel, depth, num_heads, head_dim)
    inputs = (h, *stacked_params, final_ln)
    in_specs = [pl.BlockSpec((1, S, D), lambda b: (b, 0, 0))]
    in_specs += [_full_spec(p) for p in inputs[1:]]

    return pl.pallas_call(
        kernel,
        out_shape=jax.ShapeDtypeStruct((B, S, D), jnp.float32),
        grid_spec=pltpu.PrefetchScalarGridSpec(
            num_scalar_prefetch=0,
            grid=(B,),                                 # one batch element per step;
            in_specs=in_specs,                         # parallel -> v7x TCs split batch
            out_specs=pl.BlockSpec((1, S, D), lambda b: (b, 0, 0)),
        ),
        compiler_params=pltpu.CompilerParams(
            dimension_semantics=("parallel",),
            vmem_limit_bytes=_VMEM_LIMIT,
        ),
    )(*inputs)


# --------------------------- deterministic params ----------------------------

def init_params(key, depth, dim, num_heads, head_dim, mlp_ratio=4):
    inner = num_heads * head_dim
    mlp_dim = int(dim * mlp_ratio)
    L = depth
    scale = head_dim ** (-0.5)
    keys = iter(jax.random.split(key, 32))

    def nrm(shape, dtype=jnp.float32, s=0.05):
        return (jax.random.normal(next(keys), shape, jnp.float32) * s).astype(dtype)

    # LayerNorm params, PyTorch default init (gamma=1, beta=0): [ln1_g, ln1_b, ln2_g, ln2_b]
    ln = jnp.concatenate(
        [jnp.ones((L, 1, dim)), jnp.zeros((L, 1, dim)),
         jnp.ones((L, 1, dim)), jnp.zeros((L, 1, dim))], axis=1).astype(jnp.float32)

    wqkv = nrm((L, dim, 3 * inner), jnp.bfloat16)     # fused q|k|v projection
    bqkv = nrm((L, 1, 3 * inner))

    dw_w = nrm((L, 3, 3 * inner))                     # depthwise taps (tap, q|k|v chans)
    dw_b = nrm((L, 1, 3 * inner))

    # Pointwise (1x1) convs packed block-diagonally; attention scale folded into q block.
    pw_q, pw_k, pw_v = (nrm((L, inner, inner)), nrm((L, inner, inner)),
                        nrm((L, inner, inner)))
    pw_b = nrm((L, 1, 3 * inner))
    pw = jnp.zeros((L, 3 * inner, 3 * inner), jnp.float32)
    pw = pw.at[:, 0 * inner:1 * inner, 0 * inner:1 * inner].set(pw_q * scale)
    pw = pw.at[:, 1 * inner:2 * inner, 1 * inner:2 * inner].set(pw_k)
    pw = pw.at[:, 2 * inner:3 * inner, 2 * inner:3 * inner].set(pw_v)
    pw_w = pw.astype(jnp.bfloat16)
    pw_b = pw_b.at[:, :, 0:inner].multiply(scale)

    wo, bo = nrm((L, inner, dim), jnp.bfloat16), nrm((L, 1, dim))
    w1, b1 = nrm((L, dim, mlp_dim), jnp.bfloat16), nrm((L, 1, mlp_dim))
    wgt, bgt = (nrm((L, mlp_dim, 2 * mlp_dim), jnp.bfloat16),
                nrm((L, 1, 2 * mlp_dim)))             # fused gate|transform
    w2, b2 = nrm((L, mlp_dim, dim), jnp.bfloat16), nrm((L, 1, dim))

    stacked = [ln, wqkv, bqkv, dw_w, dw_b, pw_w, pw_b, wo, bo,
               w1, b1, wgt, bgt, w2, b2]
    final_ln = jnp.concatenate([jnp.ones((1, dim)), jnp.zeros((1, dim))],
                               axis=0).astype(jnp.float32)
    return stacked, final_ln


# ----------------------------------- main -------------------------------------

if __name__ == "__main__":
    dim, num_heads, head_dim, mlp_ratio = 32, 2, 8, 4
    depth, num_persistent_tokens = 2, 4
    B, seq_len = 2, 12   # total S = seq_len + num_persistent_tokens = 16

    key = jax.random.PRNGKey(0)
    kx, kp = jax.random.split(key)
    x = jax.random.normal(kx, (B, seq_len, dim), jnp.float32)
    # persistent memory matches nn.Parameter(torch.zeros(1, P, dim))
    persistent_memory = jnp.zeros((1, num_persistent_tokens, dim), jnp.float32)

    stacked_params, final_ln = init_params(kp, depth, dim, num_heads, head_dim, mlp_ratio)

    out = titan_transformer(x, persistent_memory, stacked_params, final_ln,
                            depth=depth, num_heads=num_heads, head_dim=head_dim)
    out = jax.block_until_ready(out)
    assert out.shape == (B, seq_len + num_persistent_tokens, dim)
    assert out.dtype == jnp.float32
    assert bool(jnp.all(jnp.isfinite(out)))
    print("KERNEL_OK")
</pallas_src>

<mosaic_0001>
module attributes {stable_mosaic.version = 11 : i64} {
  func.func @titan_transformer_kernel(%arg0: i32, %arg1: memref<1x16x32xf32, #tpu.memory_space<vmem>>, %arg2: memref<2x4x32xf32, #tpu.memory_space<vmem>>, %arg3: memref<2x32x48xbf16, #tpu.memory_space<vmem>>, %arg4: memref<2x1x48xf32, #tpu.memory_space<vmem>>, %arg5: memref<2x3x48xf32, #tpu.memory_space<vmem>>, %arg6: memref<2x1x48xf32, #tpu.memory_space<vmem>>, %arg7: memref<2x48x48xbf16, #tpu.memory_space<vmem>>, %arg8: memref<2x1x48xf32, #tpu.memory_space<vmem>>, %arg9: memref<2x16x32xbf16, #tpu.memory_space<vmem>>, %arg10: memref<2x1x32xf32, #tpu.memory_space<vmem>>, %arg11: memref<2x32x128xbf16, #tpu.memory_space<vmem>>, %arg12: memref<2x1x128xf32, #tpu.memory_space<vmem>>, %arg13: memref<2x128x256xbf16, #tpu.memory_space<vmem>>, %arg14: memref<2x1x256xf32, #tpu.memory_space<vmem>>, %arg15: memref<2x128x32xbf16, #tpu.memory_space<vmem>>, %arg16: memref<2x1x32xf32, #tpu.memory_space<vmem>>, %arg17: memref<2x32xf32, #tpu.memory_space<vmem>>, %arg18: memref<1x16x32xf32, #tpu.memory_space<vmem>>) attributes {dimension_semantics = [#tpu.dimension_semantics<parallel>], iteration_bounds = array<i64: 2>, scalar_prefetch = 0 : i64, scratch_operands = 0 : i64, tpu.core_type = #tpu.core_type<tc>, window_params = [{transform_indices = @transform_0, window_bounds = array<i64: 1, 16, 32>}, {pipeline_mode = #tpu.pipeline_mode<synchronous>, transform_indices = @transform_1, window_bounds = array<i64: 2, 4, 32>}, {pipeline_mode = #tpu.pipeline_mode<synchronous>, transform_indices = @transform_2, window_bounds = array<i64: 2, 32, 48>}, {pipeline_mode = #tpu.pipeline_mode<synchronous>, transform_indices = @transform_3, window_bounds = array<i64: 2, 1, 48>}, {pipeline_mode = #tpu.pipeline_mode<synchronous>, transform_indices = @transform_4, window_bounds = array<i64: 2, 3, 48>}, {pipeline_mode = #tpu.pipeline_mode<synchronous>, transform_indices = @transform_5, window_bounds = array<i64: 2, 1, 48>}, {pipeline_mode = #tpu.pipeline_mode<synchronous>, transform_indices = @transform_6, window_bounds = array<i64: 2, 48, 48>}, {pipeline_mode = #tpu.pipeline_mode<synchronous>, transform_indices = @transform_7, window_bounds = array<i64: 2, 1, 48>}, {pipeline_mode = #tpu.pipeline_mode<synchronous>, transform_indices = @transform_8, window_bounds = array<i64: 2, 16, 32>}, {pipeline_mode = #tpu.pipeline_mode<synchronous>, transform_indices = @transform_9, window_bounds = array<i64: 2, 1, 32>}, {pipeline_mode = #tpu.pipeline_mode<synchronous>, transform_indices = @transform_10, window_bounds = array<i64: 2, 32, 128>}, {pipeline_mode = #tpu.pipeline_mode<synchronous>, transform_indices = @transform_11, window_bounds = array<i64: 2, 1, 128>}, {pipeline_mode = #tpu.pipeline_mode<synchronous>, transform_indices = @transform_12, window_bounds = array<i64: 2, 128, 256>}, {pipeline_mode = #tpu.pipeline_mode<synchronous>, transform_indices = @transform_13, window_bounds = array<i64: 2, 1, 256>}, {pipeline_mode = #tpu.pipeline_mode<synchronous>, transform_indices = @transform_14, window_bounds = array<i64: 2, 128, 32>}, {pipeline_mode = #tpu.pipeline_mode<synchronous>, transform_indices = @transform_15, window_bounds = array<i64: 2, 1, 32>}, {pipeline_mode = #tpu.pipeline_mode<synchronous>, transform_indices = @transform_16, window_bounds = array<i64: 2, 32>}, {transform_indices = @transform_17, window_bounds = array<i64: 1, 16, 32>}]} {
    %c0 = arith.constant 0 : index
    %c0_0 = arith.constant 0 : index
    %c0_1 = arith.constant 0 : index
    %0 = vector.load %arg1[%c0, %c0_0, %c0_1] : memref<1x16x32xf32, #tpu.memory_space<vmem>>, vector<1x16x32xf32>
    %1 = vector.shape_cast %0 : vector<1x16x32xf32> to vector<16x32xf32>
    %2 = tpu.iota {dimensions = array<i32: 0>} : vector<16x1xi32>
    %c0_i32 = arith.constant 0 : i32
    %3 = vector.broadcast %c0_i32 : i32 to vector<16x1xi32>
    %4 = arith.cmpi eq, %2, %3 : vector<16x1xi32>
    %c15_i32 = arith.constant 15 : i32
    %5 = vector.broadcast %c15_i32 : i32 to vector<16x1xi32>
    %6 = arith.cmpi eq, %2, %5 : vector<16x1xi32>
    %c0_2 = arith.constant 0 : index
    %c0_3 = arith.constant 0 : index
    %c0_4 = arith.constant 0 : index
    %7 = vector.load %arg2[%c0_2, %c0_3, %c0_4] : memref<2x4x32xf32, #tpu.memory_space<vmem>>, vector<1x4x32xf32>
    %8 = vector.shape_cast %7 : vector<1x4x32xf32> to vector<4x32xf32>
    %9 = vector.extract_strided_slice %8 {offsets = [0, 0], sizes = [1, 32], strides = [1, 1]} : vector<4x32xf32> to vector<1x32xf32>
    %10 = vector.extract_strided_slice %8 {offsets = [1, 0], sizes = [1, 32], strides = [1, 1]} : vector<4x32xf32> to vector<1x32xf32>
    %cst = arith.constant dense<0.000000e+00> : vector<16xf32>
    %11 = vector.multi_reduction <add>, %1, %cst [1] : vector<16x32xf32> to vector<16xf32>
    %12 = vector.shape_cast %11 : vector<16xf32> to vector<16x1xf32>
    %cst_5 = arith.constant 3.200000e+01 : f32
    %13 = vector.broadcast %cst_5 : f32 to vector<16x1xf32>
    %14 = arith.divf %12, %13 : vector<16x1xf32>
    %15 = vector.broadcast %14 : vector<16x1xf32> to vector<16x32xf32>
    %16 = arith.subf %1, %15 : vector<16x32xf32>
    %17 = arith.mulf %16, %16 : vector<16x32xf32>
    %cst_6 = arith.constant dense<0.000000e+00> : vector<16xf32>
    %18 = vector.multi_reduction <add>, %17, %cst_6 [1] : vector<16x32xf32> to vector<16xf32>
    %19 = vector.shape_cast %18 : vector<16xf32> to vector<16x1xf32>
    %cst_7 = arith.constant 3.200000e+01 : f32
    %20 = vector.broadcast %cst_7 : f32 to vector<16x1xf32>
    %21 = arith.divf %19, %20 : vector<16x1xf32>
    %cst_8 = arith.constant 9.99999974E-6 : f32
    %22 = vector.broadcast %cst_8 : f32 to vector<16x1xf32>
    %23 = arith.addf %21, %22 : vector<16x1xf32>
    %24 = math.rsqrt %23 : vector<16x1xf32>
    %25 = vector.broadcast %24 : vector<16x1xf32> to vector<16x32xf32>
    %26 = arith.mulf %16, %25 : vector<16x32xf32>
    %27 = vector.broadcast %9 : vector<1x32xf32> to vector<16x32xf32>
    %28 = arith.mulf %26, %27 : vector<16x32xf32>
    %29 = vector.broadcast %10 : vector<1x32xf32> to vector<16x32xf32>
    %30 = arith.addf %28, %29 : vector<16x32xf32>
    %31 = arith.truncf %30 : vector<16x32xf32> to vector<16x32xbf16>
    %c0_9 = arith.constant 0 : index
    %c0_10 = arith.constant 0 : index
    %c0_11 = arith.constant 0 : index
    %32 = vector.load %arg3[%c0_9, %c0_10, %c0_11] : memref<2x32x48xbf16, #tpu.memory_space<vmem>>, vector<1x32x48xbf16>
    %33 = vector.shape_cast %32 : vector<1x32x48xbf16> to vector<32x48xbf16>
    %cst_12 = arith.constant dense<0.000000e+00> : vector<16x48xf32>
    %34 = tpu.matmul %31, %33, %cst_12 {dimension_numbers = #tpu.dot_dimension_numbers<[1], [0], [0], [1], [0, 0, 1, 1], [], []>} : vector<16x32xbf16>, vector<32x48xbf16>, vector<16x48xf32> -> vector<16x48xf32>
    %c0_13 = arith.constant 0 : index
    %c0_14 = arith.constant 0 : index
    %c0_15 = arith.constant 0 : index
    %35 = vector.load %arg4[%c0_13, %c0_14, %c0_15] : memref<2x1x48xf32, #tpu.memory_space<vmem>>, vector<1x1x48xf32>
    %36 = vector.shape_cast %35 : vector<1x1x48xf32> to vector<1x48xf32>
    %37 = vector.broadcast %36 : vector<1x48xf32> to vector<16x48xf32>
    %38 = arith.addf %34, %37 : vector<16x48xf32>
    %39 = arith.negf %38 : vector<16x48xf32>
    %40 = math.exp %39 : vector<16x48xf32>
    %cst_16 = arith.constant 1.000000e+00 : f32
    %41 = vector.broadcast %cst_16 : f32 to vector<16x48xf32>
    %42 = arith.addf %41, %40 : vector<16x48xf32>
    %43 = arith.divf %41, %42 : vector<16x48xf32>
    %44 = arith.mulf %38, %43 : vector<16x48xf32>
    %c1_i32 = arith.constant 1 : i32
    %45 = tpu.dynamic_rotate %44 by %c1_i32 dim 0 : vector<16x48xf32>, i32 -> vector<16x48xf32>
    %cst_17 = arith.constant 0.000000e+00 : f32
    %46 = vector.shape_cast %4 : vector<16x1xi1> to vector<16x1xi1>
    %47 = vector.broadcast %46 : vector<16x1xi1> to vector<16x48xi1>
    %48 = vector.broadcast %cst_17 : f32 to vector<16x48xf32>
    %49 = arith.select %47, %48, %45 : vector<16x48xi1>, vector<16x48xf32>
    %c15_i32_18 = arith.constant 15 : i32
    %50 = tpu.dynamic_rotate %44 by %c15_i32_18 dim 0 : vector<16x48xf32>, i32 -> vector<16x48xf32>
    %cst_19 = arith.constant 0.000000e+00 : f32
    %51 = vector.shape_cast %6 : vector<16x1xi1> to vector<16x1xi1>
    %52 = vector.broadcast %51 : vector<16x1xi1> to vector<16x48xi1>
    %53 = vector.broadcast %cst_19 : f32 to vector<16x48xf32>
    %54 = arith.select %52, %53, %50 : vector<16x48xi1>, vector<16x48xf32>
    %c0_20 = arith.constant 0 : index
    %c0_21 = arith.constant 0 : index
    %c0_22 = arith.constant 0 : index
    %55 = vector.load %arg5[%c0_20, %c0_21, %c0_22] : memref<2x3x48xf32, #tpu.memory_space<vmem>>, vector<1x3x48xf32>
    %56 = vector.shape_cast %55 : vector<1x3x48xf32> to vector<3x48xf32>
    %57 = vector.extract_strided_slice %56 {offsets = [0, 0], sizes = [1, 48], strides = [1, 1]} : vector<3x48xf32> to vector<1x48xf32>
    %58 = vector.broadcast %57 : vector<1x48xf32> to vector<16x48xf32>
    %59 = arith.mulf %58, %49 : vector<16x48xf32>
    %60 = vector.extract_strided_slice %56 {offsets = [1, 0], sizes = [1, 48], strides = [1, 1]} : vector<3x48xf32> to vector<1x48xf32>
    %61 = vector.broadcast %60 : vector<1x48xf32> to vector<16x48xf32>
    %62 = arith.mulf %61, %44 : vector<16x48xf32>
    %63 = arith.addf %59, %62 : vector<16x48xf32>
    %64 = vector.extract_strided_slice %56 {offsets = [2, 0], sizes = [1, 48], strides = [1, 1]} : vector<3x48xf32> to vector<1x48xf32>
    %65 = vector.broadcast %64 : vector<1x48xf32> to vector<16x48xf32>
    %66 = arith.mulf %65, %54 : vector<16x48xf32>
    %67 = arith.addf %63, %66 : vector<16x48xf32>
    %c0_23 = arith.constant 0 : index
    %c0_24 = arith.constant 0 : index
    %c0_25 = arith.constant 0 : index
    %68 = vector.load %arg6[%c0_23, %c0_24, %c0_25] : memref<2x1x48xf32, #tpu.memory_space<vmem>>, vector<1x1x48xf32>
    %69 = vector.shape_cast %68 : vector<1x1x48xf32> to vector<1x48xf32>
    %70 = vector.broadcast %69 : vector<1x48xf32> to vector<16x48xf32>
    %71 = arith.addf %67, %70 : vector<16x48xf32>
    %72 = arith.truncf %71 : vector<16x48xf32> to vector<16x48xbf16>
    %c0_26 = arith.constant 0 : index
    %c0_27 = arith.constant 0 : index
    %c0_28 = arith.constant 0 : index
    %73 = vector.load %arg7[%c0_26, %c0_27, %c0_28] : memref<2x48x48xbf16, #tpu.memory_space<vmem>>, vector<1x48x48xbf16>
    %74 = vector.shape_cast %73 : vector<1x48x48xbf16> to vector<48x48xbf16>
    %cst_29 = arith.constant dense<0.000000e+00> : vector<16x48xf32>
    %75 = tpu.matmul %72, %74, %cst_29 {dimension_numbers = #tpu.dot_dimension_numbers<[1], [0], [0], [1], [0, 0, 1, 1], [], []>} : vector<16x48xbf16>, vector<48x48xbf16>, vector<16x48xf32> -> vector<16x48xf32>
    %c0_30 = arith.constant 0 : index
    %c0_31 = arith.constant 0 : index
    %c0_32 = arith.constant 0 : index
    %76 = vector.load %arg8[%c0_30, %c0_31, %c0_32] : memref<2x1x48xf32, #tpu.memory_space<vmem>>, vector<1x1x48xf32>
    %77 = vector.shape_cast %76 : vector<1x1x48xf32> to vector<1x48xf32>
    %78 = vector.broadcast %77 : vector<1x48xf32> to vector<16x48xf32>
    %79 = arith.addf %75, %78 : vector<16x48xf32>
    %c0_33 = arith.constant 0 : index
    %c0_34 = arith.constant 0 : index
    %c0_35 = arith.constant 0 : index
    %80 = vector.load %arg9[%c0_33, %c0_34, %c0_35] : memref<2x16x32xbf16, #tpu.memory_space<vmem>>, vector<1x16x32xbf16>
    %81 = vector.shape_cast %80 : vector<1x16x32xbf16> to vector<16x32xbf16>
    %c0_36 = arith.constant 0 : index
    %c0_37 = arith.constant 0 : index
    %c0_38 = arith.constant 0 : index
    %82 = vector.load %arg10[%c0_36, %c0_37, %c0_38] : memref<2x1x32xf32, #tpu.memory_space<vmem>>, vector<1x1x32xf32>
    %83 = vector.shape_cast %82 : vector<1x1x32xf32> to vector<1x32xf32>
    %84 = vector.extract_strided_slice %79 {offsets = [0, 0], sizes = [16, 8], strides = [1, 1]} : vector<16x48xf32> to vector<16x8xf32>
    %85 = arith.truncf %84 : vector<16x8xf32> to vector<16x8xbf16>
    %86 = vector.extract_strided_slice %79 {offsets = [0, 16], sizes = [16, 8], strides = [1, 1]} : vector<16x48xf32> to vector<16x8xf32>
    %87 = arith.truncf %86 : vector<16x8xf32> to vector<16x8xbf16>
    %88 = vector.extract_strided_slice %79 {offsets = [0, 32], sizes = [16, 8], strides = [1, 1]} : vector<16x48xf32> to vector<16x8xf32>
    %89 = arith.truncf %88 : vector<16x8xf32> to vector<16x8xbf16>
    %cst_39 = arith.constant dense<0.000000e+00> : vector<16x16xf32>
    %90 = tpu.matmul %85, %87, %cst_39 {dimension_numbers = #tpu.dot_dimension_numbers<[1], [1], [0], [0], [0, 0, 1, 0], [], []>} : vector<16x8xbf16>, vector<16x8xbf16>, vector<16x16xf32> -> vector<16x16xf32>
    %cst_40 = arith.constant dense<0xFF800000> : vector<16xf32>
    %91 = vector.multi_reduction <maximumf>, %90, %cst_40 [1] : vector<16x16xf32> to vector<16xf32>
    %92 = vector.shape_cast %91 : vector<16xf32> to vector<16x1xf32>
    %93 = vector.broadcast %92 : vector<16x1xf32> to vector<16x16xf32>
    %94 = arith.subf %90, %93 : vector<16x16xf32>
    %95 = math.exp %94 : vector<16x16xf32>
    %cst_41 = arith.constant dense<0.000000e+00> : vector<16xf32>
    %96 = vector.multi_reduction <add>, %95, %cst_41 [1] : vector<16x16xf32> to vector<16xf32>
    %97 = vector.shape_cast %96 : vector<16xf32> to vector<16x1xf32>
    %98 = tpu.reciprocal %97 {approx = true} : vector<16x1xf32> -> vector<16x1xf32>
    %99 = vector.broadcast %98 : vector<16x1xf32> to vector<16x16xf32>
    %100 = arith.mulf %95, %99 : vector<16x16xf32>
    %101 = arith.truncf %100 : vector<16x16xf32> to vector<16x16xbf16>
    %cst_42 = arith.constant dense<0.000000e+00> : vector<16x8xf32>
    %102 = tpu.matmul %101, %89, %cst_42 {dimension_numbers = #tpu.dot_dimension_numbers<[1], [0], [0], [1], [0, 0, 1, 1], [], []>} : vector<16x16xbf16>, vector<16x8xbf16>, vector<16x8xf32> -> vector<16x8xf32>
    %103 = arith.truncf %102 : vector<16x8xf32> to vector<16x8xbf16>
    %104 = vector.extract_strided_slice %81 {offsets = [0, 0], sizes = [8, 32], strides = [1, 1]} : vector<16x32xbf16> to vector<8x32xbf16>
    %cst_43 = arith.constant dense<0.000000e+00> : vector<16x32xf32>
    %105 = tpu.matmul %103, %104, %cst_43 {dimension_numbers = #tpu.dot_dimension_numbers<[1], [0], [0], [1], [0, 0, 1, 1], [], []>} : vector<16x8xbf16>, vector<8x32xbf16>, vector<16x32xf32> -> vector<16x32xf32>
    %106 = vector.broadcast %83 : vector<1x32xf32> to vector<16x32xf32>
    %107 = arith.addf %106, %105 : vector<16x32xf32>
    %108 = vector.extract_strided_slice %79 {offsets = [0, 8], sizes = [16, 8], strides = [1, 1]} : vector<16x48xf32> to vector<16x8xf32>
    %109 = arith.truncf %108 : vector<16x8xf32> to vector<16x8xbf16>
    %110 = vector.extract_strided_slice %79 {offsets = [0, 24], sizes = [16, 8], strides = [1, 1]} : vector<16x48xf32> to vector<16x8xf32>
    %111 = arith.truncf %110 : vector<16x8xf32> to vector<16x8xbf16>
    %112 = vector.extract_strided_slice %79 {offsets = [0, 40], sizes = [16, 8], strides = [1, 1]} : vector<16x48xf32> to vector<16x8xf32>
    %113 = arith.truncf %112 : vector<16x8xf32> to vector<16x8xbf16>
    %cst_44 = arith.constant dense<0.000000e+00> : vector<16x16xf32>
    %114 = tpu.matmul %109, %111, %cst_44 {dimension_numbers = #tpu.dot_dimension_numbers<[1], [1], [0], [0], [0, 0, 1, 0], [], []>} : vector<16x8xbf16>, vector<16x8xbf16>, vector<16x16xf32> -> vector<16x16xf32>
    %cst_45 = arith.constant dense<0xFF800000> : vector<16xf32>
    %115 = vector.multi_reduction <maximumf>, %114, %cst_45 [1] : vector<16x16xf32> to vector<16xf32>
    %116 = vector.shape_cast %115 : vector<16xf32> to vector<16x1xf32>
    %117 = vector.broadcast %116 : vector<16x1xf32> to vector<16x16xf32>
    %118 = arith.subf %114, %117 : vector<16x16xf32>
    %119 = math.exp %118 : vector<16x16xf32>
    %cst_46 = arith.constant dense<0.000000e+00> : vector<16xf32>
    %120 = vector.multi_reduction <add>, %119, %cst_46 [1] : vector<16x16xf32> to vector<16xf32>
    %121 = vector.shape_cast %120 : vector<16xf32> to vector<16x1xf32>
    %122 = tpu.reciprocal %121 {approx = true} : vector<16x1xf32> -> vector<16x1xf32>
    %123 = vector.broadcast %122 : vector<16x1xf32> to vector<16x16xf32>
    %124 = arith.mulf %119, %123 : vector<16x16xf32>
    %125 = arith.truncf %124 : vector<16x16xf32> to vector<16x16xbf16>
    %cst_47 = arith.constant dense<0.000000e+00> : vector<16x8xf32>
    %126 = tpu.matmul %125, %113, %cst_47 {dimension_numbers = #tpu.dot_dimension_numbers<[1], [0], [0], [1], [0, 0, 1, 1], [], []>} : vector<16x16xbf16>, vector<16x8xbf16>, vector<16x8xf32> -> vector<16x8xf32>
    %127 = arith.truncf %126 : vector<16x8xf32> to vector<16x8xbf16>
    %128 = vector.extract_strided_slice %81 {offsets = [8, 0], sizes = [8, 32], strides = [1, 1]} : vector<16x32xbf16> to vector<8x32xbf16>
    %cst_48 = arith.constant dense<0.000000e+00> : vector<16x32xf32>
    %129 = tpu.matmul %127, %128, %cst_48 {dimension_numbers = #tpu.dot_dimension_numbers<[1], [0], [0], [1], [0, 0, 1, 1], [], []>} : vector<16x8xbf16>, vector<8x32xbf16>, vector<16x32xf32> -> vector<16x32xf32>
    %130 = arith.addf %107, %129 : vector<16x32xf32>
    %131 = arith.addf %1, %130 : vector<16x32xf32>
    %132 = vector.extract_strided_slice %8 {offsets = [2, 0], sizes = [1, 32], strides = [1, 1]} : vector<4x32xf32> to vector<1x32xf32>
    %133 = vector.extract_strided_slice %8 {offsets = [3, 0], sizes = [1, 32], strides = [1, 1]} : vector<4x32xf32> to vector<1x32xf32>
    %cst_49 = arith.constant dense<0.000000e+00> : vector<16xf32>
    %134 = vector.multi_reduction <add>, %131, %cst_49 [1] : vector<16x32xf32> to vector<16xf32>
    %135 = vector.shape_cast %134 : vector<16xf32> to vector<16x1xf32>
    %cst_50 = arith.constant 3.200000e+01 : f32
    %136 = vector.broadcast %cst_50 : f32 to vector<16x1xf32>
    %137 = arith.divf %135, %136 : vector<16x1xf32>
    %138 = vector.broadcast %137 : vector<16x1xf32> to vector<16x32xf32>
    %139 = arith.subf %131, %138 : vector<16x32xf32>
    %140 = arith.mulf %139, %139 : vector<16x32xf32>
    %cst_51 = arith.constant dense<0.000000e+00> : vector<16xf32>
    %141 = vector.multi_reduction <add>, %140, %cst_51 [1] : vector<16x32xf32> to vector<16xf32>
    %142 = vector.shape_cast %141 : vector<16xf32> to vector<16x1xf32>
    %cst_52 = arith.constant 3.200000e+01 : f32
    %143 = vector.broadcast %cst_52 : f32 to vector<16x1xf32>
    %144 = arith.divf %142, %143 : vector<16x1xf32>
    %cst_53 = arith.constant 9.99999974E-6 : f32
    %145 = vector.broadcast %cst_53 : f32 to vector<16x1xf32>
    %146 = arith.addf %144, %145 : vector<16x1xf32>
    %147 = math.rsqrt %146 : vector<16x1xf32>
    %148 = vector.broadcast %147 : vector<16x1xf32> to vector<16x32xf32>
    %149 = arith.mulf %139, %148 : vector<16x32xf32>
    %150 = vector.broadcast %132 : vector<1x32xf32> to vector<16x32xf32>
    %151 = arith.mulf %149, %150 : vector<16x32xf32>
    %152 = vector.broadcast %133 : vector<1x32xf32> to vector<16x32xf32>
    %153 = arith.addf %151, %152 : vector<16x32xf32>
    %154 = arith.truncf %153 : vector<16x32xf32> to vector<16x32xbf16>
    %c0_54 = arith.constant 0 : index
    %c0_55 = arith.constant 0 : index
    %c0_56 = arith.constant 0 : index
    %155 = vector.load %arg11[%c0_54, %c0_55, %c0_56] : memref<2x32x128xbf16, #tpu.memory_space<vmem>>, vector<1x32x128xbf16>
    %156 = vector.shape_cast %155 : vector<1x32x128xbf16> to vector<32x128xbf16>
    %cst_57 = arith.constant dense<0.000000e+00> : vector<16x128xf32>
    %157 = tpu.matmul %154, %156, %cst_57 {dimension_numbers = #tpu.dot_dimension_numbers<[1], [0], [0], [1], [0, 0, 1, 1], [], []>} : vector<16x32xbf16>, vector<32x128xbf16>, vector<16x128xf32> -> vector<16x128xf32>
    %c0_58 = arith.constant 0 : index
    %c0_59 = arith.constant 0 : index
    %c0_60 = arith.constant 0 : index
    %158 = vector.load %arg12[%c0_58, %c0_59, %c0_60] : memref<2x1x128xf32, #tpu.memory_space<vmem>>, vector<1x1x128xf32>
    %159 = vector.shape_cast %158 : vector<1x1x128xf32> to vector<1x128xf32>
    %160 = vector.broadcast %159 : vector<1x128xf32> to vector<16x128xf32>
    %161 = arith.addf %157, %160 : vector<16x128xf32>
    %162 = arith.negf %161 : vector<16x128xf32>
    %163 = math.exp %162 : vector<16x128xf32>
    %cst_61 = arith.constant 1.000000e+00 : f32
    %164 = vector.broadcast %cst_61 : f32 to vector<16x128xf32>
    %165 = arith.addf %164, %163 : vector<16x128xf32>
    %166 = arith.divf %164, %165 : vector<16x128xf32>
    %167 = arith.mulf %161, %166 : vector<16x128xf32>
    %168 = arith.truncf %167 : vector<16x128xf32> to vector<16x128xbf16>
    %c0_62 = arith.constant 0 : index
    %c0_63 = arith.constant 0 : index
    %c0_64 = arith.constant 0 : index
    %169 = vector.load %arg13[%c0_62, %c0_63, %c0_64] : memref<2x128x256xbf16, #tpu.memory_space<vmem>>, vector<1x128x256xbf16>
    %170 = vector.shape_cast %169 : vector<1x128x256xbf16> to vector<128x256xbf16>
    %cst_65 = arith.constant dense<0.000000e+00> : vector<16x256xf32>
    %171 = tpu.matmul %168, %170, %cst_65 {dimension_numbers = #tpu.dot_dimension_numbers<[1], [0], [0], [1], [0, 0, 1, 1], [], []>} : vector<16x128xbf16>, vector<128x256xbf16>, vector<16x256xf32> -> vector<16x256xf32>
    %c0_66 = arith.constant 0 : index
    %c0_67 = arith.constant 0 : index
    %c0_68 = arith.constant 0 : index
    %172 = vector.load %arg14[%c0_66, %c0_67, %c0_68] : memref<2x1x256xf32, #tpu.memory_space<vmem>>, vector<1x1x256xf32>
    %173 = vector.shape_cast %172 : vector<1x1x256xf32> to vector<1x256xf32>
    %174 = vector.broadcast %173 : vector<1x256xf32> to vector<16x256xf32>
    %175 = arith.addf %171, %174 : vector<16x256xf32>
    %176 = vector.extract_strided_slice %175 {offsets = [0, 0], sizes = [16, 128], strides = [1, 1]} : vector<16x256xf32> to vector<16x128xf32>
    %177 = arith.negf %176 : vector<16x128xf32>
    %178 = math.exp %177 : vector<16x128xf32>
    %cst_69 = arith.constant 1.000000e+00 : f32
    %179 = vector.broadcast %cst_69 : f32 to vector<16x128xf32>
    %180 = arith.addf %179, %178 : vector<16x128xf32>
    %181 = arith.divf %179, %180 : vector<16x128xf32>
    %182 = vector.extract_strided_slice %175 {offsets = [0, 128], sizes = [16, 128], strides = [1, 1]} : vector<16x256xf32> to vector<16x128xf32>
    %183 = arith.mulf %181, %182 : vector<16x128xf32>
    %184 = arith.truncf %183 : vector<16x128xf32> to vector<16x128xbf16>
    %c0_70 = arith.constant 0 : index
    %c0_71 = arith.constant 0 : index
    %c0_72 = arith.constant 0 : index
    %185 = vector.load %arg15[%c0_70, %c0_71, %c0_72] : memref<2x128x32xbf16, #tpu.memory_space<vmem>>, vector<1x128x32xbf16>
    %186 = vector.shape_cast %185 : vector<1x128x32xbf16> to vector<128x32xbf16>
    %cst_73 = arith.constant dense<0.000000e+00> : vector<16x32xf32>
    %187 = tpu.matmul %184, %186, %cst_73 {dimension_numbers = #tpu.dot_dimension_numbers<[1], [0], [0], [1], [0, 0, 1, 1], [], []>} : vector<16x128xbf16>, vector<128x32xbf16>, vector<16x32xf32> -> vector<16x32xf32>
    %c0_74 = arith.constant 0 : index
    %c0_75 = arith.constant 0 : index
    %c0_76 = arith.constant 0 : index
    %188 = vector.load %arg16[%c0_74, %c0_75, %c0_76] : memref<2x1x32xf32, #tpu.memory_space<vmem>>, vector<1x1x32xf32>
    %189 = vector.shape_cast %188 : vector<1x1x32xf32> to vector<1x32xf32>
    %190 = vector.broadcast %189 : vector<1x32xf32> to vector<16x32xf32>
    %191 = arith.addf %187, %190 : vector<16x32xf32>
    %192 = arith.addf %131, %191 : vector<16x32xf32>
    %c1 = arith.constant 1 : index
    %c0_77 = arith.constant 0 : index
    %c0_78 = arith.constant 0 : index
    %193 = vector.load %arg2[%c1, %c0_77, %c0_78] : memref<2x4x32xf32, #tpu.memory_space<vmem>>, vector<1x4x32xf32>
    %194 = vector.shape_cast %193 : vector<1x4x32xf32> to vector<4x32xf32>
    %195 = vector.extract_strided_slice %194 {offsets = [0, 0], sizes = [1, 32], strides = [1, 1]} : vector<4x32xf32> to vector<1x32xf32>
    %196 = vector.extract_strided_slice %194 {offsets = [1, 0], sizes = [1, 32], strides = [1, 1]} : vector<4x32xf32> to vector<1x32xf32>
    %cst_79 = arith.constant dense<0.000000e+00> : vector<16xf32>
    %197 = vector.multi_reduction <add>, %192, %cst_79 [1] : vector<16x32xf32> to vector<16xf32>
    %198 = vector.shape_cast %197 : vector<16xf32> to vector<16x1xf32>
    %cst_80 = arith.constant 3.200000e+01 : f32
    %199 = vector.broadcast %cst_80 : f32 to vector<16x1xf32>
    %200 = arith.divf %198, %199 : vector<16x1xf32>
    %201 = vector.broadcast %200 : vector<16x1xf32> to vector<16x32xf32>
    %202 = arith.subf %192, %201 : vector<16x32xf32>
    %203 = arith.mulf %202, %202 : vector<16x32xf32>
    %cst_81 = arith.constant dense<0.000000e+00> : vector<16xf32>
    %204 = vector.multi_reduction <add>, %203, %cst_81 [1] : vector<16x32xf32> to vector<16xf32>
    %205 = vector.shape_cast %204 : vector<16xf32> to vector<16x1xf32>
    %cst_82 = arith.constant 3.200000e+01 : f32
    %206 = vector.broadcast %cst_82 : f32 to vector<16x1xf32>
    %207 = arith.divf %205, %206 : vector<16x1xf32>
    %cst_83 = arith.constant 9.99999974E-6 : f32
    %208 = vector.broadcast %cst_83 : f32 to vector<16x1xf32>
    %209 = arith.addf %207, %208 : vector<16x1xf32>
    %210 = math.rsqrt %209 : vector<16x1xf32>
    %211 = vector.broadcast %210 : vector<16x1xf32> to vector<16x32xf32>
    %212 = arith.mulf %202, %211 : vector<16x32xf32>
    %213 = vector.broadcast %195 : vector<1x32xf32> to vector<16x32xf32>
    %214 = arith.mulf %212, %213 : vector<16x32xf32>
    %215 = vector.broadcast %196 : vector<1x32xf32> to vector<16x32xf32>
    %216 = arith.addf %214, %215 : vector<16x32xf32>
    %217 = arith.truncf %216 : vector<16x32xf32> to vector<16x32xbf16>
    %c1_84 = arith.constant 1 : index
    %c0_85 = arith.constant 0 : index
    %c0_86 = arith.constant 0 : index
    %218 = vector.load %arg3[%c1_84, %c0_85, %c0_86] : memref<2x32x48xbf16, #tpu.memory_space<vmem>>, vector<1x32x48xbf16>
    %219 = vector.shape_cast %218 : vector<1x32x48xbf16> to vector<32x48xbf16>
    %cst_87 = arith.constant dense<0.000000e+00> : vector<16x48xf32>
    %220 = tpu.matmul %217, %219, %cst_87 {dimension_numbers = #tpu.dot_dimension_numbers<[1], [0], [0], [1], [0, 0, 1, 1], [], []>} : vector<16x32xbf16>, vector<32x48xbf16>, vector<16x48xf32> -> vector<16x48xf32>
    %c1_88 = arith.constant 1 : index
    %c0_89 = arith.constant 0 : index
    %c0_90 = arith.constant 0 : index
    %221 = vector.load %arg4[%c1_88, %c0_89, %c0_90] : memref<2x1x48xf32, #tpu.memory_space<vmem>>, vector<1x1x48xf32>
    %222 = vector.shape_cast %221 : vector<1x1x48xf32> to vector<1x48xf32>
    %223 = vector.broadcast %222 : vector<1x48xf32> to vector<16x48xf32>
    %224 = arith.addf %220, %223 : vector<16x48xf32>
    %225 = arith.negf %224 : vector<16x48xf32>
    %226 = math.exp %225 : vector<16x48xf32>
    %cst_91 = arith.constant 1.000000e+00 : f32
    %227 = vector.broadcast %cst_91 : f32 to vector<16x48xf32>
    %228 = arith.addf %227, %226 : vector<16x48xf32>
    %229 = arith.divf %227, %228 : vector<16x48xf32>
    %230 = arith.mulf %224, %229 : vector<16x48xf32>
    %c1_i32_92 = arith.constant 1 : i32
    %231 = tpu.dynamic_rotate %230 by %c1_i32_92 dim 0 : vector<16x48xf32>, i32 -> vector<16x48xf32>
    %cst_93 = arith.constant 0.000000e+00 : f32
    %232 = vector.shape_cast %4 : vector<16x1xi1> to vector<16x1xi1>
    %233 = vector.broadcast %232 : vector<16x1xi1> to vector<16x48xi1>
    %234 = vector.broadcast %cst_93 : f32 to vector<16x48xf32>
    %235 = arith.select %233, %234, %231 : vector<16x48xi1>, vector<16x48xf32>
    %c15_i32_94 = arith.constant 15 : i32
    %236 = tpu.dynamic_rotate %230 by %c15_i32_94 dim 0 : vector<16x48xf32>, i32 -> vector<16x48xf32>
    %cst_95 = arith.constant 0.000000e+00 : f32
    %237 = vector.shape_cast %6 : vector<16x1xi1> to vector<16x1xi1>
    %238 = vector.broadcast %237 : vector<16x1xi1> to vector<16x48xi1>
    %239 = vector.broadcast %cst_95 : f32 to vector<16x48xf32>
    %240 = arith.select %238, %239, %236 : vector<16x48xi1>, vector<16x48xf32>
    %c1_96 = arith.constant 1 : index
    %c0_97 = arith.constant 0 : index
    %c0_98 = arith.constant 0 : index
    %241 = vector.load %arg5[%c1_96, %c0_97, %c0_98] : memref<2x3x48xf32, #tpu.memory_space<vmem>>, vector<1x3x48xf32>
    %242 = vector.shape_cast %241 : vector<1x3x48xf32> to vector<3x48xf32>
    %243 = vector.extract_strided_slice %242 {offsets = [0, 0], sizes = [1, 48], strides = [1, 1]} : vector<3x48xf32> to vector<1x48xf32>
    %244 = vector.broadcast %243 : vector<1x48xf32> to vector<16x48xf32>
    %245 = arith.mulf %244, %235 : vector<16x48xf32>
    %246 = vector.extract_strided_slice %242 {offsets = [1, 0], sizes = [1, 48], strides = [1, 1]} : vector<3x48xf32> to vector<1x48xf32>
    %247 = vector.broadcast %246 : vector<1x48xf32> to vector<16x48xf32>
    %248 = arith.mulf %247, %230 : vector<16x48xf32>
    %249 = arith.addf %245, %248 : vector<16x48xf32>
    %250 = vector.extract_strided_slice %242 {offsets = [2, 0], sizes = [1, 48], strides = [1, 1]} : vector<3x48xf32> to vector<1x48xf32>
    %251 = vector.broadcast %250 : vector<1x48xf32> to vector<16x48xf32>
    %252 = arith.mulf %251, %240 : vector<16x48xf32>
    %253 = arith.addf %249, %252 : vector<16x48xf32>
    %c1_99 = arith.constant 1 : index
    %c0_100 = arith.constant 0 : index
    %c0_101 = arith.constant 0 : index
    %254 = vector.load %arg6[%c1_99, %c0_100, %c0_101] : memref<2x1x48xf32, #tpu.memory_space<vmem>>, vector<1x1x48xf32>
    %255 = vector.shape_cast %254 : vector<1x1x48xf32> to vector<1x48xf32>
    %256 = vector.broadcast %255 : vector<1x48xf32> to vector<16x48xf32>
    %257 = arith.addf %253, %256 : vector<16x48xf32>
    %258 = arith.truncf %257 : vector<16x48xf32> to vector<16x48xbf16>
    %c1_102 = arith.constant 1 : index
    %c0_103 = arith.constant 0 : index
    %c0_104 = arith.constant 0 : index
    %259 = vector.load %arg7[%c1_102, %c0_103, %c0_104] : memref<2x48x48xbf16, #tpu.memory_space<vmem>>, vector<1x48x48xbf16>
    %260 = vector.shape_cast %259 : vector<1x48x48xbf16> to vector<48x48xbf16>
    %cst_105 = arith.constant dense<0.000000e+00> : vector<16x48xf32>
    %261 = tpu.matmul %258, %260, %cst_105 {dimension_numbers = #tpu.dot_dimension_numbers<[1], [0], [0], [1], [0, 0, 1, 1], [], []>} : vector<16x48xbf16>, vector<48x48xbf16>, vector<16x48xf32> -> vector<16x48xf32>
    %c1_106 = arith.constant 1 : index
    %c0_107 = arith.constant 0 : index
    %c0_108 = arith.constant 0 : index
    %262 = vector.load %arg8[%c1_106, %c0_107, %c0_108] : memref<2x1x48xf32, #tpu.memory_space<vmem>>, vector<1x1x48xf32>
    %263 = vector.shape_cast %262 : vector<1x1x48xf32> to vector<1x48xf32>
    %264 = vector.broadcast %263 : vector<1x48xf32> to vector<16x48xf32>
    %265 = arith.addf %261, %264 : vector<16x48xf32>
    %c1_109 = arith.constant 1 : index
    %c0_110 = arith.constant 0 : index
    %c0_111 = arith.constant 0 : index
    %266 = vector.load %arg9[%c1_109, %c0_110, %c0_111] : memref<2x16x32xbf16, #tpu.memory_space<vmem>>, vector<1x16x32xbf16>
    %267 = vector.shape_cast %266 : vector<1x16x32xbf16> to vector<16x32xbf16>
    %c1_112 = arith.constant 1 : index
    %c0_113 = arith.constant 0 : index
    %c0_114 = arith.constant 0 : index
    %268 = vector.load %arg10[%c1_112, %c0_113, %c0_114] : memref<2x1x32xf32, #tpu.memory_space<vmem>>, vector<1x1x32xf32>
    %269 = vector.shape_cast %268 : vector<1x1x32xf32> to vector<1x32xf32>
    %270 = vector.extract_strided_slice %265 {offsets = [0, 0], sizes = [16, 8], strides = [1, 1]} : vector<16x48xf32> to vector<16x8xf32>
    %271 = arith.truncf %270 : vector<16x8xf32> to vector<16x8xbf16>
    %272 = vector.extract_strided_slice %265 {offsets = [0, 16], sizes = [16, 8], strides = [1, 1]} : vector<16x48xf32> to vector<16x8xf32>
    %273 = arith.truncf %272 : vector<16x8xf32> to vector<16x8xbf16>
    %274 = vector.extract_strided_slice %265 {offsets = [0, 32], sizes = [16, 8], strides = [1, 1]} : vector<16x48xf32> to vector<16x8xf32>
    %275 = arith.truncf %274 : vector<16x8xf32> to vector<16x8xbf16>
    %cst_115 = arith.constant dense<0.000000e+00> : vector<16x16xf32>
    %276 = tpu.matmul %271, %273, %cst_115 {dimension_numbers = #tpu.dot_dimension_numbers<[1], [1], [0], [0], [0, 0, 1, 0], [], []>} : vector<16x8xbf16>, vector<16x8xbf16>, vector<16x16xf32> -> vector<16x16xf32>
    %cst_116 = arith.constant dense<0xFF800000> : vector<16xf32>
    %277 = vector.multi_reduction <maximumf>, %276, %cst_116 [1] : vector<16x16xf32> to vector<16xf32>
    %278 = vector.shape_cast %277 : vector<16xf32> to vector<16x1xf32>
    %279 = vector.broadcast %278 : vector<16x1xf32> to vector<16x16xf32>
    %280 = arith.subf %276, %279 : vector<16x16xf32>
    %281 = math.exp %280 : vector<16x16xf32>
    %cst_117 = arith.constant dense<0.000000e+00> : vector<16xf32>
    %282 = vector.multi_reduction <add>, %281, %cst_117 [1] : vector<16x16xf32> to vector<16xf32>
    %283 = vector.shape_cast %282 : vector<16xf32> to vector<16x1xf32>
    %284 = tpu.reciprocal %283 {approx = true} : vector<16x1xf32> -> vector<16x1xf32>
    %285 = vector.broadcast %284 : vector<16x1xf32> to vector<16x16xf32>
    %286 = arith.mulf %281, %285 : vector<16x16xf32>
    %287 = arith.truncf %286 : vector<16x16xf32> to vector<16x16xbf16>
    %cst_118 = arith.constant dense<0.000000e+00> : vector<16x8xf32>
    %288 = tpu.matmul %287, %275, %cst_118 {dimension_numbers = #tpu.dot_dimension_numbers<[1], [0], [0], [1], [0, 0, 1, 1], [], []>} : vector<16x16xbf16>, vector<16x8xbf16>, vector<16x8xf32> -> vector<16x8xf32>
    %289 = arith.truncf %288 : vector<16x8xf32> to vector<16x8xbf16>
    %290 = vector.extract_strided_slice %267 {offsets = [0, 0], sizes = [8, 32], strides = [1, 1]} : vector<16x32xbf16> to vector<8x32xbf16>
    %cst_119 = arith.constant dense<0.000000e+00> : vector<16x32xf32>
    %291 = tpu.matmul %289, %290, %cst_119 {dimension_numbers = #tpu.dot_dimension_numbers<[1], [0], [0], [1], [0, 0, 1, 1], [], []>} : vector<16x8xbf16>, vector<8x32xbf16>, vector<16x32xf32> -> vector<16x32xf32>
    %292 = vector.broadcast %269 : vector<1x32xf32> to vector<16x32xf32>
    %293 = arith.addf %292, %291 : vector<16x32xf32>
    %294 = vector.extract_strided_slice %265 {offsets = [0, 8], sizes = [16, 8], strides = [1, 1]} : vector<16x48xf32> to vector<16x8xf32>
    %295 = arith.truncf %294 : vector<16x8xf32> to vector<16x8xbf16>
    %296 = vector.extract_strided_slice %265 {offsets = [0, 24], sizes = [16, 8], strides = [1, 1]} : vector<16x48xf32> to vector<16x8xf32>
    %297 = arith.truncf %296 : vector<16x8xf32> to vector<16x8xbf16>
    %298 = vector.extract_strided_slice %265 {offsets = [0, 40], sizes = [16, 8], strides = [1, 1]} : vector<16x48xf32> to vector<16x8xf32>
    %299 = arith.truncf %298 : vector<16x8xf32> to vector<16x8xbf16>
    %cst_120 = arith.constant dense<0.000000e+00> : vector<16x16xf32>
    %300 = tpu.matmul %295, %297, %cst_120 {dimension_numbers = #tpu.dot_dimension_numbers<[1], [1], [0], [0], [0, 0, 1, 0], [], []>} : vector<16x8xbf16>, vector<16x8xbf16>, vector<16x16xf32> -> vector<16x16xf32>
    %cst_121 = arith.constant dense<0xFF800000> : vector<16xf32>
    %301 = vector.multi_reduction <maximumf>, %300, %cst_121 [1] : vector<16x16xf32> to vector<16xf32>
    %302 = vector.shape_cast %301 : vector<16xf32> to vector<16x1xf32>
    %303 = vector.broadcast %302 : vector<16x1xf32> to vector<16x16xf32>
    %304 = arith.subf %300, %303 : vector<16x16xf32>
    %305 = math.exp %304 : vector<16x16xf32>
    %cst_122 = arith.constant dense<0.000000e+00> : vector<16xf32>
    %306 = vector.multi_reduction <add>, %305, %cst_122 [1] : vector<16x16xf32> to vector<16xf32>
    %307 = vector.shape_cast %306 : vector<16xf32> to vector<16x1xf32>
    %308 = tpu.reciprocal %307 {approx = true} : vector<16x1xf32> -> vector<16x1xf32>
    %309 = vector.broadcast %308 : vector<16x1xf32> to vector<16x16xf32>
    %310 = arith.mulf %305, %309 : vector<16x16xf32>
    %311 = arith.truncf %310 : vector<16x16xf32> to vector<16x16xbf16>
    %cst_123 = arith.constant dense<0.000000e+00> : vector<16x8xf32>
    %312 = tpu.matmul %311, %299, %cst_123 {dimension_numbers = #tpu.dot_dimension_numbers<[1], [0], [0], [1], [0, 0, 1, 1], [], []>} : vector<16x16xbf16>, vector<16x8xbf16>, vector<16x8xf32> -> vector<16x8xf32>
    %313 = arith.truncf %312 : vector<16x8xf32> to vector<16x8xbf16>
    %314 = vector.extract_strided_slice %267 {offsets = [8, 0], sizes = [8, 32], strides = [1, 1]} : vector<16x32xbf16> to vector<8x32xbf16>
    %cst_124 = arith.constant dense<0.000000e+00> : vector<16x32xf32>
    %315 = tpu.matmul %313, %314, %cst_124 {dimension_numbers = #tpu.dot_dimension_numbers<[1], [0], [0], [1], [0, 0, 1, 1], [], []>} : vector<16x8xbf16>, vector<8x32xbf16>, vector<16x32xf32> -> vector<16x32xf32>
    %316 = arith.addf %293, %315 : vector<16x32xf32>
    %317 = arith.addf %192, %316 : vector<16x32xf32>
    %318 = vector.extract_strided_slice %194 {offsets = [2, 0], sizes = [1, 32], strides = [1, 1]} : vector<4x32xf32> to vector<1x32xf32>
    %319 = vector.extract_strided_slice %194 {offsets = [3, 0], sizes = [1, 32], strides = [1, 1]} : vector<4x32xf32> to vector<1x32xf32>
    %cst_125 = arith.constant dense<0.000000e+00> : vector<16xf32>
    %320 = vector.multi_reduction <add>, %317, %cst_125 [1] : vector<16x32xf32> to vector<16xf32>
    %321 = vector.shape_cast %320 : vector<16xf32> to vector<16x1xf32>
    %cst_126 = arith.constant 3.200000e+01 : f32
    %322 = vector.broadcast %cst_126 : f32 to vector<16x1xf32>
    %323 = arith.divf %321, %322 : vector<16x1xf32>
    %324 = vector.broadcast %323 : vector<16x1xf32> to vector<16x32xf32>
    %325 = arith.subf %317, %324 : vector<16x32xf32>
    %326 = arith.mulf %325, %325 : vector<16x32xf32>
    %cst_127 = arith.constant dense<0.000000e+00> : vector<16xf32>
    %327 = vector.multi_reduction <add>, %326, %cst_127 [1] : vector<16x32xf32> to vector<16xf32>
    %328 = vector.shape_cast %327 : vector<16xf32> to vector<16x1xf32>
    %cst_128 = arith.constant 3.200000e+01 : f32
    %329 = vector.broadcast %cst_128 : f32 to vector<16x1xf32>
    %330 = arith.divf %328, %329 : vector<16x1xf32>
    %cst_129 = arith.constant 9.99999974E-6 : f32
    %331 = vector.broadcast %cst_129 : f32 to vector<16x1xf32>
    %332 = arith.addf %330, %331 : vector<16x1xf32>
    %333 = math.rsqrt %332 : vector<16x1xf32>
    %334 = vector.broadcast %333 : vector<16x1xf32> to vector<16x32xf32>
    %335 = arith.mulf %325, %334 : vector<16x32xf32>
    %336 = vector.broadcast %318 : vector<1x32xf32> to vector<16x32xf32>
    %337 = arith.mulf %335, %336 : vector<16x32xf32>
    %338 = vector.broadcast %319 : vector<1x32xf32> to vector<16x32xf32>
    %339 = arith.addf %337, %338 : vector<16x32xf32>
    %340 = arith.truncf %339 : vector<16x32xf32> to vector<16x32xbf16>
    %c1_130 = arith.constant 1 : index
    %c0_131 = arith.constant 0 : index
    %c0_132 = arith.constant 0 : index
    %341 = vector.load %arg11[%c1_130, %c0_131, %c0_132] : memref<2x32x128xbf16, #tpu.memory_space<vmem>>, vector<1x32x128xbf16>
    %342 = vector.shape_cast %341 : vector<1x32x128xbf16> to vector<32x128xbf16>
    %cst_133 = arith.constant dense<0.000000e+00> : vector<16x128xf32>
    %343 = tpu.matmul %340, %342, %cst_133 {dimension_numbers = #tpu.dot_dimension_numbers<[1], [0], [0], [1], [0, 0, 1, 1], [], []>} : vector<16x32xbf16>, vector<32x128xbf16>, vector<16x128xf32> -> vector<16x128xf32>
    %c1_134 = arith.constant 1 : index
    %c0_135 = arith.constant 0 : index
    %c0_136 = arith.constant 0 : index
    %344 = vector.load %arg12[%c1_134, %c0_135, %c0_136] : memref<2x1x128xf32, #tpu.memory_space<vmem>>, vector<1x1x128xf32>
    %345 = vector.shape_cast %344 : vector<1x1x128xf32> to vector<1x128xf32>
    %346 = vector.broadcast %345 : vector<1x128xf32> to vector<16x128xf32>
    %347 = arith.addf %343, %346 : vector<16x128xf32>
    %348 = arith.negf %347 : vector<16x128xf32>
    %349 = math.exp %348 : vector<16x128xf32>
    %cst_137 = arith.constant 1.000000e+00 : f32
    %350 = vector.broadcast %cst_137 : f32 to vector<16x128xf32>
    %351 = arith.addf %350, %349 : vector<16x128xf32>
    %352 = arith.divf %350, %351 : vector<16x128xf32>
    %353 = arith.mulf %347, %352 : vector<16x128xf32>
    %354 = arith.truncf %353 : vector<16x128xf32> to vector<16x128xbf16>
    %c1_138 = arith.constant 1 : index
    %c0_139 = arith.constant 0 : index
    %c0_140 = arith.constant 0 : index
    %355 = vector.load %arg13[%c1_138, %c0_139, %c0_140] : memref<2x128x256xbf16, #tpu.memory_space<vmem>>, vector<1x128x256xbf16>
    %356 = vector.shape_cast %355 : vector<1x128x256xbf16> to vector<128x256xbf16>
    %cst_141 = arith.constant dense<0.000000e+00> : vector<16x256xf32>
    %357 = tpu.matmul %354, %356, %cst_141 {dimension_numbers = #tpu.dot_dimension_numbers<[1], [0], [0], [1], [0, 0, 1, 1], [], []>} : vector<16x128xbf16>, vector<128x256xbf16>, vector<16x256xf32> -> vector<16x256xf32>
    %c1_142 = arith.constant 1 : index
    %c0_143 = arith.constant 0 : index
    %c0_144 = arith.constant 0 : index
    %358 = vector.load %arg14[%c1_142, %c0_143, %c0_144] : memref<2x1x256xf32, #tpu.memory_space<vmem>>, vector<1x1x256xf32>
    %359 = vector.shape_cast %358 : vector<1x1x256xf32> to vector<1x256xf32>
    %360 = vector.broadcast %359 : vector<1x256xf32> to vector<16x256xf32>
    %361 = arith.addf %357, %360 : vector<16x256xf32>
    %362 = vector.extract_strided_slice %361 {offsets = [0, 0], sizes = [16, 128], strides = [1, 1]} : vector<16x256xf32> to vector<16x128xf32>
    %363 = arith.negf %362 : vector<16x128xf32>
    %364 = math.exp %363 : vector<16x128xf32>
    %cst_145 = arith.constant 1.000000e+00 : f32
    %365 = vector.broadcast %cst_145 : f32 to vector<16x128xf32>
    %366 = arith.addf %365, %364 : vector<16x128xf32>
    %367 = arith.divf %365, %366 : vector<16x128xf32>
    %368 = vector.extract_strided_slice %361 {offsets = [0, 128], sizes = [16, 128], strides = [1, 1]} : vector<16x256xf32> to vector<16x128xf32>
    %369 = arith.mulf %367, %368 : vector<16x128xf32>
    %370 = arith.truncf %369 : vector<16x128xf32> to vector<16x128xbf16>
    %c1_146 = arith.constant 1 : index
    %c0_147 = arith.constant 0 : index
    %c0_148 = arith.constant 0 : index
    %371 = vector.load %arg15[%c1_146, %c0_147, %c0_148] : memref<2x128x32xbf16, #tpu.memory_space<vmem>>, vector<1x128x32xbf16>
    %372 = vector.shape_cast %371 : vector<1x128x32xbf16> to vector<128x32xbf16>
    %cst_149 = arith.constant dense<0.000000e+00> : vector<16x32xf32>
    %373 = tpu.matmul %370, %372, %cst_149 {dimension_numbers = #tpu.dot_dimension_numbers<[1], [0], [0], [1], [0, 0, 1, 1], [], []>} : vector<16x128xbf16>, vector<128x32xbf16>, vector<16x32xf32> -> vector<16x32xf32>
    %c1_150 = arith.constant 1 : index
    %c0_151 = arith.constant 0 : index
    %c0_152 = arith.constant 0 : index
    %374 = vector.load %arg16[%c1_150, %c0_151, %c0_152] : memref<2x1x32xf32, #tpu.memory_space<vmem>>, vector<1x1x32xf32>
    %375 = vector.shape_cast %374 : vector<1x1x32xf32> to vector<1x32xf32>
    %376 = vector.broadcast %375 : vector<1x32xf32> to vector<16x32xf32>
    %377 = arith.addf %373, %376 : vector<16x32xf32>
    %378 = arith.addf %317, %377 : vector<16x32xf32>
    %c0_153 = arith.constant 0 : index
    %c0_154 = arith.constant 0 : index
    %379 = vector.load %arg17[%c0_153, %c0_154] : memref<2x32xf32, #tpu.memory_space<vmem>>, vector<1x32xf32>
    %c1_155 = arith.constant 1 : index
    %c0_156 = arith.constant 0 : index
    %380 = vector.load %arg17[%c1_155, %c0_156] : memref<2x32xf32, #tpu.memory_space<vmem>>, vector<1x32xf32>
    %cst_157 = arith.constant dense<0.000000e+00> : vector<16xf32>
    %381 = vector.multi_reduction <add>, %378, %cst_157 [1] : vector<16x32xf32> to vector<16xf32>
    %382 = vector.shape_cast %381 : vector<16xf32> to vector<16x1xf32>
    %cst_158 = arith.constant 3.200000e+01 : f32
    %383 = vector.broadcast %cst_158 : f32 to vector<16x1xf32>
    %384 = arith.divf %382, %383 : vector<16x1xf32>
    %385 = vector.broadcast %384 : vector<16x1xf32> to vector<16x32xf32>
    %386 = arith.subf %378, %385 : vector<16x32xf32>
    %387 = arith.mulf %386, %386 : vector<16x32xf32>
    %cst_159 = arith.constant dense<0.000000e+00> : vector<16xf32>
    %388 = vector.multi_reduction <add>, %387, %cst_159 [1] : vector<16x32xf32> to vector<16xf32>
    %389 = vector.shape_cast %388 : vector<16xf32> to vector<16x1xf32>
    %cst_160 = arith.constant 3.200000e+01 : f32
    %390 = vector.broadcast %cst_160 : f32 to vector<16x1xf32>
    %391 = arith.divf %389, %390 : vector<16x1xf32>
    %cst_161 = arith.constant 9.99999974E-6 : f32
    %392 = vector.broadcast %cst_161 : f32 to vector<16x1xf32>
    %393 = arith.addf %391, %392 : vector<16x1xf32>
    %394 = math.rsqrt %393 : vector<16x1xf32>
    %395 = vector.broadcast %394 : vector<16x1xf32> to vector<16x32xf32>
    %396 = arith.mulf %386, %395 : vector<16x32xf32>
    %397 = vector.broadcast %379 : vector<1x32xf32> to vector<16x32xf32>
    %398 = arith.mulf %396, %397 : vector<16x32xf32>
    %399 = vector.broadcast %380 : vector<1x32xf32> to vector<16x32xf32>
    %400 = arith.addf %398, %399 : vector<16x32xf32>
    %c0_162 = arith.constant 0 : index
    %c0_163 = arith.constant 0 : index
    %c0_164 = arith.constant 0 : index
    %401 = vector.load %arg18[%c0_162, %c0_163, %c0_164] : memref<1x16x32xf32, #tpu.memory_space<vmem>>, vector<1x16x32xf32>
    %402 = vector.shape_cast %401 : vector<1x16x32xf32> to vector<16x32xf32>
    %403 = vector.shape_cast %400 : vector<16x32xf32> to vector<1x16x32xf32>
    tpu.vector_store %arg18[%c0_162, %c0_163, %c0_164], %403 {strides = array<i32>} : memref<1x16x32xf32, #tpu.memory_space<vmem>>, vector<1x16x32xf32>,
    return
  }
  func.func @transform_0(%arg0: i32) -> (i32, i32, i32) {
    %c0_i32 = arith.constant 0 : i32
    %c0_i32_0 = arith.constant 0 : i32
    %c0_i32_1 = arith.constant 0 : i32
    return %arg0, %c0_i32, %c0_i32_0 : i32, i32, i32
  }
  func.func @transform_1(%arg0: i32) -> (i32, i32, i32) {
    %c0_i32 = arith.constant 0 : i32
    %c0_i32_0 = arith.constant 0 : i32
    %c0_i32_1 = arith.constant 0 : i32
    %c0_i32_2 = arith.constant 0 : i32
    return %c0_i32, %c0_i32_0, %c0_i32_1 : i32, i32, i32
  }
  func.func @transform_2(%arg0: i32) -> (i32, i32, i32) {
    %c0_i32 = arith.constant 0 : i32
    %c0_i32_0 = arith.constant 0 : i32
    %c0_i32_1 = arith.constant 0 : i32
    %c0_i32_2 = arith.constant 0 : i32
    return %c0_i32, %c0_i32_0, %c0_i32_1 : i32, i32, i32
  }
  func.func @transform_3(%arg0: i32) -> (i32, i32, i32) {
    %c0_i32 = arith.constant 0 : i32
    %c0_i32_0 = arith.constant 0 : i32
    %c0_i32_1 = arith.constant 0 : i32
    %c0_i32_2 = arith.constant 0 : i32
    return %c0_i32, %c0_i32_0, %c0_i32_1 : i32, i32, i32
  }
  func.func @transform_4(%arg0: i32) -> (i32, i32, i32) {
    %c0_i32 = arith.constant 0 : i32
    %c0_i32_0 = arith.constant 0 : i32
    %c0_i32_1 = arith.constant 0 : i32
    %c0_i32_2 = arith.constant 0 : i32
    return %c0_i32, %c0_i32_0, %c0_i32_1 : i32, i32, i32
  }
  func.func @transform_5(%arg0: i32) -> (i32, i32, i32) {
    %c0_i32 = arith.constant 0 : i32
    %c0_i32_0 = arith.constant 0 : i32
    %c0_i32_1 = arith.constant 0 : i32
    %c0_i32_2 = arith.constant 0 : i32
    return %c0_i32, %c0_i32_0, %c0_i32_1 : i32, i32, i32
  }
  func.func @transform_6(%arg0: i32) -> (i32, i32, i32) {
    %c0_i32 = arith.constant 0 : i32
    %c0_i32_0 = arith.constant 0 : i32
    %c0_i32_1 = arith.constant 0 : i32
    %c0_i32_2 = arith.constant 0 : i32
    return %c0_i32, %c0_i32_0, %c0_i32_1 : i32, i32, i32
  }
  func.func @transform_7(%arg0: i32) -> (i32, i32, i32) {
    %c0_i32 = arith.constant 0 : i32
    %c0_i32_0 = arith.constant 0 : i32
    %c0_i32_1 = arith.constant 0 : i32
    %c0_i32_2 = arith.constant 0 : i32
    return %c0_i32, %c0_i32_0, %c0_i32_1 : i32, i32, i32
  }
  func.func @transform_8(%arg0: i32) -> (i32, i32, i32) {
    %c0_i32 = arith.constant 0 : i32
    %c0_i32_0 = arith.constant 0 : i32
    %c0_i32_1 = arith.constant 0 : i32
    %c0_i32_2 = arith.constant 0 : i32
    return %c0_i32, %c0_i32_0, %c0_i32_1 : i32, i32, i32
  }
  func.func @transform_9(%arg0: i32) -> (i32, i32, i32) {
    %c0_i32 = arith.constant 0 : i32
    %c0_i32_0 = arith.constant 0 : i32
    %c0_i32_1 = arith.constant 0 : i32
    %c0_i32_2 = arith.constant 0 : i32
    return %c0_i32, %c0_i32_0, %c0_i32_1 : i32, i32, i32
  }
  func.func @transform_10(%arg0: i32) -> (i32, i32, i32) {
    %c0_i32 = arith.constant 0 : i32
    %c0_i32_0 = arith.constant 0 : i32
    %c0_i32_1 = arith.constant 0 : i32
    %c0_i32_2 = arith.constant 0 : i32
    return %c0_i32, %c0_i32_0, %c0_i32_1 : i32, i32, i32
  }
  func.func @transform_11(%arg0: i32) -> (i32, i32, i32) {
    %c0_i32 = arith.constant 0 : i32
    %c0_i32_0 = arith.constant 0 : i32
    %c0_i32_1 = arith.constant 0 : i32
    %c0_i32_2 = arith.constant 0 : i32
    return %c0_i32, %c0_i32_0, %c0_i32_1 : i32, i32, i32
  }
  func.func @transform_12(%arg0: i32) -> (i32, i32, i32) {
    %c0_i32 = arith.constant 0 : i32
    %c0_i32_0 = arith.constant 0 : i32
    %c0_i32_1 = arith.constant 0 : i32
    %c0_i32_2 = arith.constant 0 : i32
    return %c0_i32, %c0_i32_0, %c0_i32_1 : i32, i32, i32
  }
  func.func @transform_13(%arg0: i32) -> (i32, i32, i32) {
    %c0_i32 = arith.constant 0 : i32
    %c0_i32_0 = arith.constant 0 : i32
    %c0_i32_1 = arith.constant 0 : i32
    %c0_i32_2 = arith.constant 0 : i32
    return %c0_i32, %c0_i32_0, %c0_i32_1 : i32, i32, i32
  }
  func.func @transform_14(%arg0: i32) -> (i32, i32, i32) {
    %c0_i32 = arith.constant 0 : i32
    %c0_i32_0 = arith.constant 0 : i32
    %c0_i32_1 = arith.constant 0 : i32
    %c0_i32_2 = arith.constant 0 : i32
    return %c0_i32, %c0_i32_0, %c0_i32_1 : i32, i32, i32
  }
  func.func @transform_15(%arg0: i32) -> (i32, i32, i32) {
    %c0_i32 = arith.constant 0 : i32
    %c0_i32_0 = arith.constant 0 : i32
    %c0_i32_1 = arith.constant 0 : i32
    %c0_i32_2 = arith.constant 0 : i32
    return %c0_i32, %c0_i32_0, %c0_i32_1 : i32, i32, i32
  }
  func.func @transform_16(%arg0: i32) -> (i32, i32) {
    %c0_i32 = arith.constant 0 : i32
    %c0_i32_0 = arith.constant 0 : i32
    %c0_i32_1 = arith.constant 0 : i32
    return %c0_i32, %c0_i32_0 : i32, i32
  }
  func.func @transform_17(%arg0: i32) -> (i32, i32, i32) {
    %c0_i32 = arith.constant 0 : i32
    %c0_i32_0 = arith.constant 0 : i32
    %c0_i32_1 = arith.constant 0 : i32
    return %arg0, %c0_i32, %c0_i32_0 : i32, i32, i32
  }
}

</mosaic_0001>

<llo_original>
// kernel: tpu_custom_call.1
$region0: #{tpu_custom_call.1}
  #allocation0 [shape = 'u32[]', space=smem, size = 0x4, offset = 0x4, fixed_abs, tag = 'smem constant byte address 0x4 - core index']
  #allocation1 [shape = 'u32[144,128]{1,0:T(1,128)}', space=vmem, size = 0x12000, scoped, tag = 'internal scratch']
  %s0 = inlined_call_operand.vmem [shape: f32[2,16,32], index: 0, kind: input, shape index: {}]
  %s1 = inlined_call_operand.hbm [shape: f32[2,4,32], index: 1, kind: input, shape index: {}]
  %s2 = inlined_call_operand.vmem [shape: bf16[2,32,48], index: 2, kind: input, shape index: {}]
  %s3 = inlined_call_operand.vmem [shape: f32[2,1,48], index: 3, kind: input, shape index: {}]
  %s4 = inlined_call_operand.vmem [shape: f32[2,3,48], index: 4, kind: input, shape index: {}]
  %s5 = inlined_call_operand.hbm [shape: f32[2,1,48], index: 5, kind: input, shape index: {}]
  %s6 = inlined_call_operand.vmem [shape: bf16[2,48,48], index: 6, kind: input, shape index: {}]
  %s7 = inlined_call_operand.hbm [shape: f32[2,1,48], index: 7, kind: input, shape index: {}]
  %s8 = inlined_call_operand.vmem [shape: bf16[2,16,32], index: 8, kind: input, shape index: {}]
  %s9 = inlined_call_operand.hbm [shape: f32[2,1,32], index: 9, kind: input, shape index: {}]
  %s10 = inlined_call_operand.vmem [shape: bf16[2,32,128], index: 10, kind: input, shape index: {}]
  %s11 = inlined_call_operand.hbm [shape: f32[2,1,128], index: 11, kind: input, shape index: {}]
  %s12 = inlined_call_operand.hbm [shape: bf16[2,128,256], index: 12, kind: input, shape index: {}]
  %s13 = inlined_call_operand.vmem [shape: f32[2,1,256], index: 13, kind: input, shape index: {}]
  %s14 = inlined_call_operand.vmem [shape: bf16[2,128,32], index: 14, kind: input, shape index: {}]
  %s15 = inlined_call_operand.hbm [shape: f32[2,1,32], index: 15, kind: input, shape index: {}]
  %s16 = inlined_call_operand.vmem [shape: f32[2,32], index: 16, kind: input, shape index: {}]
  %s17 = inlined_call_operand.hbm [shape: f32[2,16,32], index: 17, kind: output, shape index: {}]
  %s18 = sld [smem:[#allocation0]]
  $region129: #{tpu_custom_call.1} parent=0
    _
  %s20 = ssub.s32 1, %s18
  %s21 = scalar_select 0, %s20, %s18
  $region1: #{tpu_custom_call.1} parent=0
    #allocation2 [shape = 'u8[4096]{0}', space=vmem, size = 0x1000, scoped, tag = 'input window, operand 1, single buffered']
    #allocation3 [shape = 's32[2]{0}', space=sflag, size = 0x8, scoped, tag = 'scoped memory for tpu_custom_call.1']
    #allocation4 [shape = 's32[2]{0}', space=sflag, size = 0x8, scoped, tag = 'scoped memory for tpu_custom_call.1']
    #allocation5 [shape = 'u8[1024]{0}', space=vmem, size = 0x400, scoped, tag = 'input window, operand 5, single buffered']
    #allocation6 [shape = 's32[1]{0}', space=sflag, size = 0x4, scoped, tag = 'scoped memory for tpu_custom_call.1']
    #allocation7 [shape = 'u8[1024]{0}', space=vmem, size = 0x400, scoped, tag = 'input window, operand 7, single buffered']
    #allocation8 [shape = 'u8[1024]{0}', space=vmem, size = 0x400, scoped, tag = 'input window, operand 9, single buffered']
    #allocation9 [shape = 's32[1]{0}', space=sflag, size = 0x4, scoped, tag = 'scoped memory for tpu_custom_call.1']
    #allocation10 [shape = 'u8[1024]{0}', space=vmem, size = 0x400, scoped, tag = 'input window, operand 11, single buffered']
    #allocation11 [shape = 'u8[131072]{0}', space=vmem, size = 0x20000, scoped, tag = 'input window, operand 12, single buffered']
    #allocation12 [shape = 's32[1]{0}', space=sflag, size = 0x4, scoped, tag = 'scoped memory for tpu_custom_call.1']
    #allocation13 [shape = 'u8[1024]{0}', space=vmem, size = 0x400, scoped, tag = 'input window, operand 15, single buffered']
    #allocation14 [shape = 'u8[16384]{0}', space=vmem, size = 0x4000, scoped, tag = 'output window, operand 0']
    %22 = vsyncpa [#allocation3], 0
    %23 = vsyncpa [#allocation6], 0
    %24 = vsyncpa [#allocation9], 0
    %25 = vsyncpa [#allocation12], 0
    %26 = vsyncpa [#allocation4], 0
    %s27 = scalar_lea.sflag [#allocation4], 1
    %28 = vsyncpa %s27, 0
    loop: start=0, step=1, limit=4
    $region2: #{tpu_custom_call.1} parent=1 // loop_pre_header
      _
    $region3: #{tpu_custom_call.1} parent=1 // loop_header
      %s30 = sphi 0, %s34
      %p31 = scmp.ge.s32.totalorder %s30, 4
      %s40 = sphi 0, %s42
      %s43 = sphi 0, %s40
      %s44 = sphi 0, %s43
      %s60 = sphi 0, %s44
      %s64 = sphi 0, %s64
      %s66 = sphi 0, %s64
      %s67 = sphi 0, %s66
      %s81 = sphi 0, %s67
      %s85 = sphi 0, %s85
      %s87 = sphi 0, %s85
      %s88 = sphi 0, %s87
      %s102 = sphi 0, %s88
      %s106 = sphi 0, %s106
      %s108 = sphi 0, %s106
      %s109 = sphi 0, %s108
      %s123 = sphi 0, %s109
      %s127 = sphi 0, %s127
      %s129 = sphi 0, %s127
      %s130 = sphi 0, %s129
      %s144 = sphi 0, %s130
      %s148 = sphi 0, %s148
      %s150 = sphi 0, %s148
      %s151 = sphi 0, %s150
      %s165 = sphi 0, %s151
      %s169 = sphi 0, %s169
      %s171 = sphi 0, %s169
      %s172 = sphi 0, %s171
      %s186 = sphi 0, %s172
      %s190 = sphi 0, %s190
      %s192 = sphi 0, %s190
      %s193 = sphi 0, %s192
      %s207 = sphi 0, %s193
      %s211 = sphi 0, %s211
      %s213 = sphi 0, %s211
      %s214 = sphi 0, %s213
      %s228 = sphi 0, %s214
      %s232 = sphi 0, %s232
      %s234 = sphi 0, %s232
      %s235 = sphi 0, %s234
      %s249 = sphi 0, %s235
      %s253 = sphi 0, %s253
      %s255 = sphi 0, %s253
      %s256 = sphi 0, %s255
      %s270 = sphi 0, %s256
      %s274 = sphi 0, %s274
      %s276 = sphi 0, %s274
      %s277 = sphi 0, %s276
      %s291 = sphi 0, %s277
      %s295 = sphi 0, %s295
      %s297 = sphi 0, %s295
      %s298 = sphi 0, %s297
      %s312 = sphi 0, %s298
      %s316 = sphi 0, %s316
      %s318 = sphi 0, %s316
      %s319 = sphi 0, %s318
      %s333 = sphi 0, %s319
      %s337 = sphi 0, %s337
      %s339 = sphi 0, %s337
      %s340 = sphi 0, %s339
      %s354 = sphi 0, %s340
      %s358 = sphi 0, %s358
      %s360 = sphi 0, %s358
      %s361 = sphi 0, %s360
      %s375 = sphi 0, %s361
      %s379 = sphi 0, %s379
      %s381 = sphi 0, %s379
      %s382 = sphi 0, %s381
      %s396 = sphi 0, %s382
      %s402 = sphi 0, %s404
      %s405 = sphi 0, %s402
      %s406 = sphi 0, %s405
      %s422 = sphi 0, %s406
    $region4: #{tpu_custom_call.1} parent=1 // loop_header_branch
      %33 = sbr.rel (%p31) target = $region8
    $region5: #{tpu_custom_call.1} parent=1 // loop_body
      %s35 = ssub.s32 %s30, 1
      %s36 = ssub.s32 %s30, 2
      %s37 = sadd.s32 %s30, 1
      %s38 = ssub.s32 %s30, %s37
      %p39 = scmp.eq.s32.totalorder %s38, 0
      %s41 = sadd.s32 %s40, 1
      %s42 = scalar_select %p39, %s40, %s41
      %p45 = pneg %p39
      %p46 = scmp.eq.s32.totalorder %s30, 1
      %p47 = por %p45, %p46
      %p48 = scmp.ne.s32.totalorder %s40, %s43
      %p49 = scmp.eq.s32.totalorder %s30, 0
      %p50 = por %p48, %p49
      %p51 = scmp.ne.s32.totalorder %s40, %s43
      %p52 = scmp.eq.s32.totalorder %s35, 1
      %p53 = por %p51, %p52
      %p54 = scmp.ne.s32.totalorder %s43, %s44
      %p55 = scmp.eq.s32.totalorder %s35, 0
      %p56 = por %p54, %p55
      %p57 = scmp.ne.s32.totalorder %s43, %s44
      %p58 = scmp.eq.s32.totalorder %s36, 1
      %p59 = por %p57, %p58
      %p61 = scmp.ne.s32.totalorder %s44, %s60
      %p62 = scmp.eq.s32.totalorder %s36, 0
      %p63 = por %p61, %p62
      %s65 = sadd.s32 %s64, 1
      %p68 = scmp.eq.s32.totalorder %s30, 1
      %p69 = scmp.ne.s32.totalorder %s64, %s66
      %p70 = scmp.eq.s32.totalorder %s30, 0
      %p71 = por %p69, %p70
      %p72 = scmp.ne.s32.totalorder %s64, %s66
      %p73 = scmp.eq.s32.totalorder %s35, 1
      %p74 = por %p72, %p73
      %p75 = scmp.ne.s32.totalorder %s66, %s67
      %p76 = scmp.eq.s32.totalorder %s35, 0
      %p77 = por %p75, %p76
      %p78 = scmp.ne.s32.totalorder %s66, %s67
      %p79 = scmp.eq.s32.totalorder %s36, 1
      %p80 = por %p78, %p79
      %p82 = scmp.ne.s32.totalorder %s67, %s81
      %p83 = scmp.eq.s32.totalorder %s36, 0
      %p84 = por %p82, %p83
      %s86 = sadd.s32 %s85, 1
      %p89 = scmp.eq.s32.totalorder %s30, 1
      %p90 = scmp.ne.s32.totalorder %s85, %s87
      %p91 = scmp.eq.s32.totalorder %s30, 0
      %p92 = por %p90, %p91
      %p93 = scmp.ne.s32.totalorder %s85, %s87
      %p94 = scmp.eq.s32.totalorder %s35, 1
      %p95 = por %p93, %p94
      %p96 = scmp.ne.s32.totalorder %s87, %s88
      %p97 = scmp.eq.s32.totalorder %s35, 0
      %p98 = por %p96, %p97
      %p99 = scmp.ne.s32.totalorder %s87, %s88
      %p100 = scmp.eq.s32.totalorder %s36, 1
      %p101 = por %p99, %p100
      %p103 = scmp.ne.s32.totalorder %s88, %s102
      %p104 = scmp.eq.s32.totalorder %s36, 0
      %p105 = por %p103, %p104
      %s107 = sadd.s32 %s106, 1
      %p110 = scmp.eq.s32.totalorder %s30, 1
      %p111 = scmp.ne.s32.totalorder %s106, %s108
      %p112 = scmp.eq.s32.totalorder %s30, 0
      %p113 = por %p111, %p112
      %p114 = scmp.ne.s32.totalorder %s106, %s108
      %p115 = scmp.eq.s32.totalorder %s35, 1
      %p116 = por %p114, %p115
      %p117 = scmp.ne.s32.totalorder %s108, %s109
      %p118 = scmp.eq.s32.totalorder %s35, 0
      %p119 = por %p117, %p118
      %p120 = scmp.ne.s32.totalorder %s108, %s109
      %p121 = scmp.eq.s32.totalorder %s36, 1
      %p122 = por %p120, %p121
      %p124 = scmp.ne.s32.totalorder %s109, %s123
      %p125 = scmp.eq.s32.totalorder %s36, 0
      %p126 = por %p124, %p125
      %s128 = sadd.s32 %s127, 1
      %p131 = scmp.eq.s32.totalorder %s30, 1
      %p132 = scmp.ne.s32.totalorder %s127, %s129
      %p133 = scmp.eq.s32.totalorder %s30, 0
      %p134 = por %p132, %p133
      %p135 = scmp.ne.s32.totalorder %s127, %s129
      %p136 = scmp.eq.s32.totalorder %s35, 1
      %p137 = por %p135, %p136
      %p138 = scmp.ne.s32.totalorder %s129, %s130
      %p139 = scmp.eq.s32.totalorder %s35, 0
      %p140 = por %p138, %p139
      %p141 = scmp.ne.s32.totalorder %s129, %s130
      %p142 = scmp.eq.s32.totalorder %s36, 1
      %p143 = por %p141, %p142
      %p145 = scmp.ne.s32.totalorder %s130, %s144
      %p146 = scmp.eq.s32.totalorder %s36, 0
      %p147 = por %p145, %p146
      %s149 = sadd.s32 %s148, 1
      %p152 = scmp.eq.s32.totalorder %s30, 1
      %p153 = scmp.ne.s32.totalorder %s148, %s150
      %p154 = scmp.eq.s32.totalorder %s30, 0
      %p155 = por %p153, %p154
      %p156 = scmp.ne.s32.totalorder %s148, %s150
      %p157 = scmp.eq.s32.totalorder %s35, 1
      %p158 = por %p156, %p157
      %p159 = scmp.ne.s32.totalorder %s150, %s151
      %p160 = scmp.eq.s32.totalorder %s35, 0
      %p161 = por %p159, %p160
      %p162 = scmp.ne.s32.totalorder %s150, %s151
      %p163 = scmp.eq.s32.totalorder %s36, 1
      %p164 = por %p162, %p163
      %p166 = scmp.ne.s32.totalorder %s151, %s165
      %p167 = scmp.eq.s32.totalorder %s36, 0
      %p168 = por %p166, %p167
      %s170 = sadd.s32 %s169, 1
      %p173 = scmp.eq.s32.totalorder %s30, 1
      %p174 = scmp.ne.s32.totalorder %s169, %s171
      %p175 = scmp.eq.s32.totalorder %s30, 0
      %p176 = por %p174, %p175
      %p177 = scmp.ne.s32.totalorder %s169, %s171
      %p178 = scmp.eq.s32.totalorder %s35, 1
      %p179 = por %p177, %p178
      %p180 = scmp.ne.s32.totalorder %s171, %s172
      %p181 = scmp.eq.s32.totalorder %s35, 0
      %p182 = por %p180, %p181
      %p183 = scmp.ne.s32.totalorder %s171, %s172
      %p184 = scmp.eq.s32.totalorder %s36, 1
      %p185 = por %p183, %p184
      %p187 = scmp.ne.s32.totalorder %s172, %s186
      %p188 = scmp.eq.s32.totalorder %s36, 0
      %p189 = por %p187, %p188
      %s191 = sadd.s32 %s190, 1
      %p194 = scmp.eq.s32.totalorder %s30, 1
      %p195 = scmp.ne.s32.totalorder %s190, %s192
      %p196 = scmp.eq.s32.totalorder %s30, 0
      %p197 = por %p195, %p196
      %p198 = scmp.ne.s32.totalorder %s190, %s192
      %p199 = scmp.eq.s32.totalorder %s35, 1
      %p200 = por %p198, %p199
      %p201 = scmp.ne.s32.totalorder %s192, %s193
      %p202 = scmp.eq.s32.totalorder %s35, 0
      %p203 = por %p201, %p202
      %p204 = scmp.ne.s32.totalorder %s192, %s193
      %p205 = scmp.eq.s32.totalorder %s36, 1
      %p206 = por %p204, %p205
      %p208 = scmp.ne.s32.totalorder %s193, %s207
      %p209 = scmp.eq.s32.totalorder %s36, 0
      %p210 = por %p208, %p209
      %s212 = sadd.s32 %s211, 1
      %p215 = scmp.eq.s32.totalorder %s30, 1
      %p216 = scmp.ne.s32.totalorder %s211, %s213
      %p217 = scmp.eq.s32.totalorder %s30, 0
      %p218 = por %p216, %p217
      %p219 = scmp.ne.s32.totalorder %s211, %s213
      %p220 = scmp.eq.s32.totalorder %s35, 1
      %p221 = por %p219, %p220
      %p222 = scmp.ne.s32.totalorder %s213, %s214
      %p223 = scmp.eq.s32.totalorder %s35, 0
      %p224 = por %p222, %p223
      %p225 = scmp.ne.s32.totalorder %s213, %s214
      %p226 = scmp.eq.s32.totalorder %s36, 1
      %p227 = por %p225, %p226
      %p229 = scmp.ne.s32.totalorder %s214, %s228
      %p230 = scmp.eq.s32.totalorder %s36, 0
      %p231 = por %p229, %p230
      %s233 = sadd.s32 %s232, 1
      %p236 = scmp.eq.s32.totalorder %s30, 1
      %p237 = scmp.ne.s32.totalorder %s232, %s234
      %p238 = scmp.eq.s32.totalorder %s30, 0
      %p239 = por %p237, %p238
      %p240 = scmp.ne.s32.totalorder %s232, %s234
      %p241 = scmp.eq.s32.totalorder %s35, 1
      %p242 = por %p240, %p241
      %p243 = scmp.ne.s32.totalorder %s234, %s235
      %p244 = scmp.eq.s32.totalorder %s35, 0
      %p245 = por %p243, %p244
      %p246 = scmp.ne.s32.totalorder %s234, %s235
      %p247 = scmp.eq.s32.totalorder %s36, 1
      %p248 = por %p246, %p247
      %p250 = scmp.ne.s32.totalorder %s235, %s249
      %p251 = scmp.eq.s32.totalorder %s36, 0
      %p252 = por %p250, %p251
      %s254 = sadd.s32 %s253, 1
      %p257 = scmp.eq.s32.totalorder %s30, 1
      %p258 = scmp.ne.s32.totalorder %s253, %s255
      %p259 = scmp.eq.s32.totalorder %s30, 0
      %p260 = por %p258, %p259
      %p261 = scmp.ne.s32.totalorder %s253, %s255
      %p262 = scmp.eq.s32.totalorder %s35, 1
      %p263 = por %p261, %p262
      %p264 = scmp.ne.s32.totalorder %s255, %s256
      %p265 = scmp.eq.s32.totalorder %s35, 0
      %p266 = por %p264, %p265
      %p267 = scmp.ne.s32.totalorder %s255, %s256
      %p268 = scmp.eq.s32.totalorder %s36, 1
      %p269 = por %p267, %p268
      %p271 = scmp.ne.s32.totalorder %s256, %s270
      %p272 = scmp.eq.s32.totalorder %s36, 0
      %p273 = por %p271, %p272
      %s275 = sadd.s32 %s274, 1
      %p278 = scmp.eq.s32.totalorder %s30, 1
      %p279 = scmp.ne.s32.totalorder %s274, %s276
      %p280 = scmp.eq.s32.totalorder %s30, 0
      %p281 = por %p279, %p280
      %p282 = scmp.ne.s32.totalorder %s274, %s276
      %p283 = scmp.eq.s32.totalorder %s35, 1
      %p284 = por %p282, %p283
      %p285 = scmp.ne.s32.totalorder %s276, %s277
      %p286 = scmp.eq.s32.totalorder %s35, 0
      %p287 = por %p285, %p286
      %p288 = scmp.ne.s32.totalorder %s276, %s277
      %p289 = scmp.eq.s32.totalorder %s36, 1
      %p290 = por %p288, %p289
      %p292 = scmp.ne.s32.totalorder %s277, %s291
      %p293 = scmp.eq.s32.totalorder %s36, 0
      %p294 = por %p292, %p293
      %s296 = sadd.s32 %s295, 1
      %p299 = scmp.eq.s32.totalorder %s30, 1
      %p300 = scmp.ne.s32.totalorder %s295, %s297
      %p301 = scmp.eq.s32.totalorder %s30, 0
      %p302 = por %p300, %p301
      %p303 = scmp.ne.s32.totalorder %s295, %s297
      %p304 = scmp.eq.s32.totalorder %s35, 1
      %p305 = por %p303, %p304
      %p306 = scmp.ne.s32.totalorder %s297, %s298
      %p307 = scmp.eq.s32.totalorder %s35, 0
      %p308 = por %p306, %p307
      %p309 = scmp.ne.s32.totalorder %s297, %s298
      %p310 = scmp.eq.s32.totalorder %s36, 1
      %p311 = por %p309, %p310
      %p313 = scmp.ne.s32.totalorder %s298, %s312
      %p314 = scmp.eq.s32.totalorder %s36, 0
      %p315 = por %p313, %p314
      %s317 = sadd.s32 %s316, 1
      %p320 = scmp.eq.s32.totalorder %s30, 1
      %p321 = scmp.ne.s32.totalorder %s316, %s318
      %p322 = scmp.eq.s32.totalorder %s30, 0
      %p323 = por %p321, %p322
      %p324 = scmp.ne.s32.totalorder %s316, %s318
      %p325 = scmp.eq.s32.totalorder %s35, 1
      %p326 = por %p324, %p325
      %p327 = scmp.ne.s32.totalorder %s318, %s319
      %p328 = scmp.eq.s32.totalorder %s35, 0
      %p329 = por %p327, %p328
      %p330 = scmp.ne.s32.totalorder %s318, %s319
      %p331 = scmp.eq.s32.totalorder %s36, 1
      %p332 = por %p330, %p331
      %p334 = scmp.ne.s32.totalorder %s319, %s333
      %p335 = scmp.eq.s32.totalorder %s36, 0
      %p336 = por %p334, %p335
      %s338 = sadd.s32 %s337, 1
      %p341 = scmp.eq.s32.totalorder %s30, 1
      %p342 = scmp.ne.s32.totalorder %s337, %s339
      %p343 = scmp.eq.s32.totalorder %s30, 0
      %p344 = por %p342, %p343
      %p345 = scmp.ne.s32.totalorder %s337, %s339
      %p346 = scmp.eq.s32.totalorder %s35, 1
      %p347 = por %p345, %p346
      %p348 = scmp.ne.s32.totalorder %s339, %s340
      %p349 = scmp.eq.s32.totalorder %s35, 0
      %p350 = por %p348, %p349
      %p351 = scmp.ne.s32.totalorder %s339, %s340
      %p352 = scmp.eq.s32.totalorder %s36, 1
      %p353 = por %p351, %p352
      %p355 = scmp.ne.s32.totalorder %s340, %s354
      %p356 = scmp.eq.s32.totalorder %s36, 0
      %p357 = por %p355, %p356
      %s359 = sadd.s32 %s358, 1
      %p362 = scmp.eq.s32.totalorder %s30, 1
      %p363 = scmp.ne.s32.totalorder %s358, %s360
      %p364 = scmp.eq.s32.totalorder %s30, 0
      %p365 = por %p363, %p364
      %p366 = scmp.ne.s32.totalorder %s358, %s360
      %p367 = scmp.eq.s32.totalorder %s35, 1
      %p368 = por %p366, %p367
      %p369 = scmp.ne.s32.totalorder %s360, %s361
      %p370 = scmp.eq.s32.totalorder %s35, 0
      %p371 = por %p369, %p370
      %p372 = scmp.ne.s32.totalorder %s360, %s361
      %p373 = scmp.eq.s32.totalorder %s36, 1
      %p374 = por %p372, %p373
      %p376 = scmp.ne.s32.totalorder %s361, %s375
      %p377 = scmp.eq.s32.totalorder %s36, 0
      %p378 = por %p376, %p377
      %s380 = sadd.s32 %s379, 1
      %p383 = scmp.eq.s32.totalorder %s30, 1
      %p384 = scmp.ne.s32.totalorder %s379, %s381
      %p385 = scmp.eq.s32.totalorder %s30, 0
      %p386 = por %p384, %p385
      %p387 = scmp.ne.s32.totalorder %s379, %s381
      %p388 = scmp.eq.s32.totalorder %s35, 1
      %p389 = por %p387, %p388
      %p390 = scmp.ne.s32.totalorder %s381, %s382
      %p391 = scmp.eq.s32.totalorder %s35, 0
      %p392 = por %p390, %p391
      %p393 = scmp.ne.s32.totalorder %s381, %s382
      %p394 = scmp.eq.s32.totalorder %s36, 1
      %p395 = por %p393, %p394
      %p397 = scmp.ne.s32.totalorder %s382, %s396
      %p398 = scmp.eq.s32.totalorder %s36, 0
      %p399 = por %p397, %p398
      %s400 = ssub.s32 %s30, %s37
      %p401 = scmp.eq.s32.totalorder %s400, 0
      %s403 = sadd.s32 %s402, 1
      %s404 = scalar_select %p401, %s402, %s403
      %p407 = pneg %p401
      %p408 = scmp.eq.s32.totalorder %s30, 1
      %p409 = por %p407, %p408
      %p410 = scmp.ne.s32.totalorder %s402, %s405
      %p411 = scmp.eq.s32.totalorder %s30, 0
      %p412 = por %p410, %p411
      %p413 = scmp.ne.s32.totalorder %s402, %s405
      %p414 = scmp.eq.s32.totalorder %s35, 1
      %p415 = por %p413, %p414
      %p416 = scmp.ne.s32.totalorder %s405, %s406
      %p417 = scmp.eq.s32.totalorder %s35, 0
      %p418 = por %p416, %p417
      %p419 = scmp.ne.s32.totalorder %s405, %s406
      %p420 = scmp.eq.s32.totalorder %s36, 1
      %p421 = por %p419, %p420
      %p423 = scmp.ne.s32.totalorder %s406, %s422
      %p424 = scmp.eq.s32.totalorder %s36, 0
      %p425 = por %p423, %p424
      %p426 = scmp.le.s32.totalorder 1, %s30
      %p427 = scmp.lt.s32.totalorder %s30, 3
      %p428 = pnand %p426, %p427
      %p429 = pneg %p428
      // Predicated region
      $region9: #{tpu_custom_call.1} parent=5 // pred_check
        _
      $region10: #{tpu_custom_call.1} parent=5 // pred_check_branch
        %431 = sbr.rel (%p428) target = $region12
      $region11: #{tpu_custom_call.1} parent=5 // pred_region
        %s432 = ssub.s32 %s30, 1
        // Predicated region
        $region13: #{tpu_custom_call.1} parent=11 // pred_check
          %p433 = pneg %p77
        $region14: #{tpu_custom_call.1} parent=11 // pred_check_branch
          %435 = sbr.rel (%p433) target = $region16
        $region15: #{tpu_custom_call.1} parent=11 // pred_region
          %s437 = ssub.s32 128, 128
          %438 = vsyncadd [#allocation3], %s437
          %s439 = sshll.u32 [#allocation2], 4
          %s440 = int_to_ptr.vmem [resolvable:$true] %s439
          %445 = dma.hbm_to_vmem [thread:$0]  %s1, 128, %s440, [#allocation3], 64, 64, 4
        $region16: #{tpu_custom_call.1} parent=11 // pred_fallthru
          _
        // Predicated region
        $region17: #{tpu_custom_call.1} parent=11 // pred_check
          %p446 = pneg %p98
        $region18: #{tpu_custom_call.1} parent=11 // pred_check_branch
          %448 = sbr.rel (%p446) target = $region20
        $region19: #{tpu_custom_call.1} parent=11 // pred_region
          _
        $region20: #{tpu_custom_call.1} parent=11 // pred_fallthru
          _
        // Predicated region
        $region21: #{tpu_custom_call.1} parent=11 // pred_check
          %p449 = pneg %p119
        $region22: #{tpu_custom_call.1} parent=11 // pred_check_branch
          %451 = sbr.rel (%p449) target = $region24
        $region23: #{tpu_custom_call.1} parent=11 // pred_region
          _
        $region24: #{tpu_custom_call.1} parent=11 // pred_fallthru
          _
        // Predicated region
        $region25: #{tpu_custom_call.1} parent=11 // pred_check
          %p452 = pneg %p140
        $region26: #{tpu_custom_call.1} parent=11 // pred_check_branch
          %454 = sbr.rel (%p452) target = $region28
        $region27: #{tpu_custom_call.1} parent=11 // pred_region
          _
        $region28: #{tpu_custom_call.1} parent=11 // pred_fallthru
          _
        // Predicated region
        $region29: #{tpu_custom_call.1} parent=11 // pred_check
          %p455 = pneg %p161
        $region30: #{tpu_custom_call.1} parent=11 // pred_check_branch
          %457 = sbr.rel (%p455) target = $region32
        $region31: #{tpu_custom_call.1} parent=11 // pred_region
          %s459 = ssub.s32 32, 32
          %460 = vsyncadd [#allocation6], %s459
          %s461 = sshll.u32 [#allocation5], 4
          %s462 = int_to_ptr.vmem [resolvable:$true] %s461
          %467 = dma.hbm_to_vmem [thread:$0]  %s5, 32, %s462, [#allocation6], 16, 16, 1
        $region32: #{tpu_custom_call.1} parent=11 // pred_fallthru
          _
        // Predicated region
        $region33: #{tpu_custom_call.1} parent=11 // pred_check
          %p468 = pneg %p182
        $region34: #{tpu_custom_call.1} parent=11 // pred_check_branch
          %470 = sbr.rel (%p468) target = $region36
        $region35: #{tpu_custom_call.1} parent=11 // pred_region
          _
        $region36: #{tpu_custom_call.1} parent=11 // pred_fallthru
          _
        // Predicated region
        $region37: #{tpu_custom_call.1} parent=11 // pred_check
          %p471 = pneg %p203
        $region38: #{tpu_custom_call.1} parent=11 // pred_check_branch
          %473 = sbr.rel (%p471) target = $region40
        $region39: #{tpu_custom_call.1} parent=11 // pred_region
          %s475 = ssub.s32 32, 32
          %476 = vsyncadd [#allocation6], %s475
          %s477 = sshll.u32 [#allocation7], 4
          %s478 = int_to_ptr.vmem [resolvable:$true] %s477
          %483 = dma.hbm_to_vmem [thread:$0]  %s7, 32, %s478, [#allocation6], 16, 16, 1
        $region40: #{tpu_custom_call.1} parent=11 // pred_fallthru
          _
        // Predicated region
        $region41: #{tpu_custom_call.1} parent=11 // pred_check
          %p484 = pneg %p224
        $region42: #{tpu_custom_call.1} parent=11 // pred_check_branch
          %486 = sbr.rel (%p484) target = $region44
        $region43: #{tpu_custom_call.1} parent=11 // pred_region
          _
        $region44: #{tpu_custom_call.1} parent=11 // pred_fallthru
          _
        // Predicated region
        $region45: #{tpu_custom_call.1} parent=11 // pred_check
          %p487 = pneg %p245
        $region46: #{tpu_custom_call.1} parent=11 // pred_check_branch
          %489 = sbr.rel (%p487) target = $region48
        $region47: #{tpu_custom_call.1} parent=11 // pred_region
          %s491 = ssub.s32 32, 32
          %492 = vsyncadd [#allocation9], %s491
          %s493 = sshll.u32 [#allocation8], 4
          %s494 = int_to_ptr.vmem [resolvable:$true] %s493
          %499 = dma.hbm_to_vmem [thread:$0]  %s9, 32, %s494, [#allocation9], 16, 16, 1
        $region48: #{tpu_custom_call.1} parent=11 // pred_fallthru
          _
        // Predicated region
        $region49: #{tpu_custom_call.1} parent=11 // pred_check
          %p500 = pneg %p266
        $region50: #{tpu_custom_call.1} parent=11 // pred_check_branch
          %502 = sbr.rel (%p500) target = $region52
        $region51: #{tpu_custom_call.1} parent=11 // pred_region
          _
        $region52: #{tpu_custom_call.1} parent=11 // pred_fallthru
          _
        // Predicated region
        $region53: #{tpu_custom_call.1} parent=11 // pred_check
          %p503 = pneg %p287
        $region54: #{tpu_custom_call.1} parent=11 // pred_check_branch
          %505 = sbr.rel (%p503) target = $region56
        $region55: #{tpu_custom_call.1} parent=11 // pred_region
          %s507 = ssub.s32 32, 32
          %508 = vsyncadd [#allocation9], %s507
          %s509 = sshll.u32 [#allocation10], 4
          %s510 = int_to_ptr.vmem [resolvable:$true] %s509
          %515 = dma.hbm_to_vmem [thread:$0]  %s11, 32, %s510, [#allocation9], 16, 16, 1
        $region56: #{tpu_custom_call.1} parent=11 // pred_fallthru
          _
        // Predicated region
        $region57: #{tpu_custom_call.1} parent=11 // pred_check
          %p516 = pneg %p308
        $region58: #{tpu_custom_call.1} parent=11 // pred_check_branch
          %518 = sbr.rel (%p516) target = $region60
        $region59: #{tpu_custom_call.1} parent=11 // pred_region
          %s520 = ssub.s32 4096, 4096
          %521 = vsyncadd [#allocation12], %s520
          %s522 = sshll.u32 [#allocation11], 4
          %s523 = int_to_ptr.vmem [resolvable:$true] %s522
          %528 = dma.hbm_to_vmem [thread:$0]  %s12, 4096, %s523, [#allocation12], 128, 128, 8
        $region60: #{tpu_custom_call.1} parent=11 // pred_fallthru
          _
        // Predicated region
        $region61: #{tpu_custom_call.1} parent=11 // pred_check
          %p529 = pneg %p329
        $region62: #{tpu_custom_call.1} parent=11 // pred_check_branch
          %531 = sbr.rel (%p529) target = $region64
        $region63: #{tpu_custom_call.1} parent=11 // pred_region
          _
        $region64: #{tpu_custom_call.1} parent=11 // pred_fallthru
          _
        // Predicated region
        $region65: #{tpu_custom_call.1} parent=11 // pred_check
          %p532 = pneg %p350
        $region66: #{tpu_custom_call.1} parent=11 // pred_check_branch
          %534 = sbr.rel (%p532) target = $region68
        $region67: #{tpu_custom_call.1} parent=11 // pred_region
          _
        $region68: #{tpu_custom_call.1} parent=11 // pred_fallthru
          _
        // Predicated region
        $region69: #{tpu_custom_call.1} parent=11 // pred_check
          %p535 = pneg %p371
        $region70: #{tpu_custom_call.1} parent=11 // pred_check_branch
          %537 = sbr.rel (%p535) target = $region72
        $region71: #{tpu_custom_call.1} parent=11 // pred_region
          %s539 = ssub.s32 32, 32
          %540 = vsyncadd [#allocation12], %s539
          %s541 = sshll.u32 [#allocation13], 4
          %s542 = int_to_ptr.vmem [resolvable:$true] %s541
          %547 = dma.hbm_to_vmem [thread:$0]  %s15, 32, %s542, [#allocation12], 16, 16, 1
        $region72: #{tpu_custom_call.1} parent=11 // pred_fallthru
          _
        // Predicated region
        $region73: #{tpu_custom_call.1} parent=11 // pred_check
          %p548 = pneg %p392
        $region74: #{tpu_custom_call.1} parent=11 // pred_check_branch
          %550 = sbr.rel (%p548) target = $region76
        $region75: #{tpu_custom_call.1} parent=11 // pred_region
          _
        $region76: #{tpu_custom_call.1} parent=11 // pred_fallthru
          _
      $region12: #{tpu_custom_call.1} parent=5 // pred_fallthru
        _
      %p551 = scmp.lt.s32.totalorder %s30, 2
      // Predicated region
      $region77: #{tpu_custom_call.1} parent=5 // pred_check
        %p552 = pneg %p551
      $region78: #{tpu_custom_call.1} parent=5 // pred_check_branch
        %554 = sbr.rel (%p552) target = $region80
      $region79: #{tpu_custom_call.1} parent=5 // pred_region
        // Predicated region
        $region81: #{tpu_custom_call.1} parent=79 // pred_check
          %p555 = pneg %p50
        $region82: #{tpu_custom_call.1} parent=79 // pred_check_branch
          %557 = sbr.rel (%p555) target = $region84
        $region83: #{tpu_custom_call.1} parent=79 // pred_region
          %p558 = scmp.lt.s32.totalorder %s30, 1
          %s559 = scalar_select %p558, %s30, 1
          %s560 = smul.addr %s559, 2
          %s561 = smul.addr %s560, 8
          %s562 = scalar_lea.vmem %s0, %s561
        $region84: #{tpu_custom_call.1} parent=79 // pred_fallthru
          _
      $region80: #{tpu_custom_call.1} parent=5 // pred_fallthru
        _
      %p563 = scmp.le.s32.totalorder 1, %s30
      %p564 = scmp.lt.s32.totalorder %s30, 3
      %p565 = pnand %p563, %p564
      %p566 = pneg %p565
      // Predicated region
      $region85: #{tpu_custom_call.1} parent=5 // pred_check
        _
      $region86: #{tpu_custom_call.1} parent=5 // pred_check_branch
        %568 = sbr.rel (%p565) target = $region88
      $region87: #{tpu_custom_call.1} parent=5 // pred_region
        %s569 = ssub.s32 %s30, 1
        // Predicated region
        $region89: #{tpu_custom_call.1} parent=87 // pred_check
          %p570 = pneg %p77
        $region90: #{tpu_custom_call.1} parent=87 // pred_check_branch
          %572 = sbr.rel (%p570) target = $region92
        $region91: #{tpu_custom_call.1} parent=87 // pred_region
          %573 = dma.done [#allocation3], 128
        $region92: #{tpu_custom_call.1} parent=87 // pred_fallthru
          _
        // Predicated region
        $region93: #{tpu_custom_call.1} parent=87 // pred_check
          %p574 = pneg %p161
        $region94: #{tpu_custom_call.1} parent=87 // pred_check_branch
          %576 = sbr.rel (%p574) target = $region96
        $region95: #{tpu_custom_call.1} parent=87 // pred_region
          %577 = dma.done [#allocation6], 32
        $region96: #{tpu_custom_call.1} parent=87 // pred_fallthru
          _
        // Predicated region
        $region97: #{tpu_custom_call.1} parent=87 // pred_check
          %p578 = pneg %p203
        $region98: #{tpu_custom_call.1} parent=87 // pred_check_branch
          %580 = sbr.rel (%p578) target = $region100
        $region99: #{tpu_custom_call.1} parent=87 // pred_region
          %581 = dma.done [#allocation6], 32
        $region100: #{tpu_custom_call.1} parent=87 // pred_fallthru
          _
        // Predicated region
        $region101: #{tpu_custom_call.1} parent=87 // pred_check
          %p582 = pneg %p245
        $region102: #{tpu_custom_call.1} parent=87 // pred_check_branch
          %584 = sbr.rel (%p582) target = $region104
        $region103: #{tpu_custom_call.1} parent=87 // pred_region
          %585 = dma.done [#allocation9], 32
        $region104: #{tpu_custom_call.1} parent=87 // pred_fallthru
          _
        // Predicated region
        $region105: #{tpu_custom_call.1} parent=87 // pred_check
          %p586 = pneg %p287
        $region106: #{tpu_custom_call.1} parent=87 // pred_check_branch
          %588 = sbr.rel (%p586) target = $region108
        $region107: #{tpu_custom_call.1} parent=87 // pred_region
          %589 = dma.done [#allocation9], 32
        $region108: #{tpu_custom_call.1} parent=87 // pred_fallthru
          _
        // Predicated region
        $region109: #{tpu_custom_call.1} parent=87 // pred_check
          %p590 = pneg %p308
        $region110: #{tpu_custom_call.1} parent=87 // pred_check_branch
          %592 = sbr.rel (%p590) target = $region112
        $region111: #{tpu_custom_call.1} parent=87 // pred_region
          %593 = dma.done [#allocation12], 4096
        $region112: #{tpu_custom_call.1} parent=87 // pred_fallthru
          _
        // Predicated region
        $region113: #{tpu_custom_call.1} parent=87 // pred_check
          %p594 = pneg %p371
        $region114: #{tpu_custom_call.1} parent=87 // pred_check_branch
          %596 = sbr.rel (%p594) target = $region116
        $region115: #{tpu_custom_call.1} parent=87 // pred_region
          %597 = dma.done [#allocation12], 32
        $region116: #{tpu_custom_call.1} parent=87 // pred_fallthru
          _
        %p598 = scmp.lt.s32.totalorder %s35, 1
        %s599 = scalar_select %p598, %s35, 1
        %s600 = smul.addr %s599, 2
        %s601 = smul.addr %s600, 8
        %s602 = scalar_lea.vmem %s0, %s601
        %p603 = pneg %p56
        %p604 = pneg %p53
        %p605 = pneg %p77
        %p606 = pneg %p74
        %p607 = pneg %p98
        %p608 = pneg %p95
        %p609 = pneg %p119
        %p610 = pneg %p116
        %p611 = pneg %p140
        %p612 = pneg %p137
        %p613 = pneg %p161
        %p614 = pneg %p158
        %p615 = pneg %p182
        %p616 = pneg %p179
        %p617 = pneg %p203
        %p618 = pneg %p200
        %p619 = pneg %p224
        %p620 = pneg %p221
        %p621 = pneg %p245
        %p622 = pneg %p242
        %p623 = pneg %p266
        %p624 = pneg %p263
        %p625 = pneg %p287
        %p626 = pneg %p284
        %p627 = pneg %p308
        %p628 = pneg %p305
        %p629 = pneg %p329
        %p630 = pneg %p326
        %p631 = pneg %p350
        %p632 = pneg %p347
        %p633 = pneg %p371
        %p634 = pneg %p368
        %p635 = pneg %p392
        %p636 = pneg %p389
        %p637 = pneg %p418
        %p638 = pneg %p415
        %s639 = sand.u32 %s405, 1
        %s640 = scalar_lea.sflag [#allocation4], %s639
        %s641 = sand.u32 %s405, 1
        %s642 = smul.addr %s641, 16
        %s643 = scalar_lea.vmem [#allocation14], %s642
        %p644 = scmp.lt.s32.totalorder %s35, 1
        %s645 = scalar_select %p644, %s35, 1
        %s646 = smul.addr %s645, 2
        %s647 = smul.addr %s646, 8
        %s648 = scalar_lea.vmem %s0, %s647
        %v650 = vld [vmem:[%s648] sm:$0xff]
        %v651 = vld [vmem:[%s648 + $0x8] sm:$0xff]
        %v652 = vlaneseq
        %v653 = vshrl.u32 %v652, 7
        %v654 = vadd.s32 %v653, 8
        %vm655 = vcmp.eq.s32.totalorder %v653, 0
        %vm656 = vcmp.eq.s32.totalorder %v654, 0
        %vm657 = vcmp.eq.s32.totalorder %v653, 15
        %vm658 = vcmp.eq.s32.totalorder %v654, 15
        %v659 = vld [vmem:[#allocation2] sm:$0xf]
        %vm660 = vcmask 261120
        %v661 = vsel %vm660, %v650, 0.0
        %662 = vadd.xlane.f32.xlu0 %v661
        %v663 = vpop.xlane.xlu0 %662
        %v664 = vsel %vm660, %v651, 0.0
        %665 = vadd.xlane.f32.xlu0 %v664
        %v666 = vpop.xlane.xlu0 %665
        %v667 = vrcp.pop 32.0
        %v668 = vmul.f32 %v663, %v667
        %v669 = vmul.f32 %v666, %v667
        %v670 = vsub.f32 %v650, %v668
        %v671 = vsub.f32 %v651, %v669
        %v672 = vmul.f32 %v670, %v670
        %v673 = vmul.f32 %v671, %v671
        %v674 = vsel %vm660, %v672, 0.0
        %675 = vadd.xlane.f32.xlu0 %v674
        %v676 = vpop.xlane.xlu0 %675
        %v677 = vsel %vm660, %v673, 0.0
        %678 = vadd.xlane.f32.xlu0 %v677
        %v679 = vpop.xlane.xlu0 %678
        %v680 = vmul.f32 %v676, %v667
        %v681 = vmul.f32 %v679, %v667
        %v682 = vadd.f32 %v680, 1e-05
        %v683 = vadd.f32 %v681, 1e-05
        %v684 = vrsqrt.pop %v682
        %v685 = vrsqrt.pop %v683
        %v686 = vmul.f32 %v670, %v684
        %v687 = vmul.f32 %v671, %v685
        %v688 = vlaneseq
        %v689 = vshrl.u32 %v688, 7
        %v690 = vsub.s32 0, %v689
        %v691 = vrot.slane %v659, %v690
        %v692 = vmul.f32 %v686, %v691
        %v693 = vmul.f32 %v687, %v691
        %v694 = vlaneseq
        %v695 = vshrl.u32 %v694, 7
        %v696 = vsub.s32 1, %v695
        %v697 = vrot.slane %v659, %v696
        %v698 = vadd.f32 %v692, %v697
        %v699 = vadd.f32 %v693, %v697
        %v700 = vpack.c.bf16 %v699, %v698
        %v701 = vld [vmem:[%s2] sm:$0xf]
        %v702 = vld [vmem:[%s2 + $0x4] sm:$0xf]
        %v703 = vld [vmem:[%s2 + $0x8] sm:$0xf]
        %v704 = vld [vmem:[%s2 + $0xc] sm:$0xf]
        %v705 = vld [vmem:[%s3] sm:$0x1]
        %v707 = vlaneseq
        %v708 = vshrl.u32 %v707, 7
        %v709 = vsub.s32 0, %v708
        %v710 = vrot.slane %v705, %v709
        %v716 = vunpack.c.l.b16 %v701
        %v717 = vunpack.c.l.b16 %v702
        %v718 = vunpack.c.l.b16 %v703
        %v719 = vunpack.c.l.b16 %v704
        %v720 = vpack.c.b16 %v717, %v716
        %v721 = vpack.c.b16 %v719, %v718
        %v725 = vsel %vm660, %v700, 0
        %727 = vmatprep.subr.bf16.mxu0 0
        %728 = vmatpush1.bf16.msra.mxu0 0
        %729 = vmatprep.subr.bf16.mxu0 0
        %730 = vmatpush1.bf16.msra.mxu0 0
        %731 = vmatprep.subr.bf16.mxu0 0
        %732 = vmatpush1.bf16.msra.mxu0 0
        %733 = vmatprep.subr.bf16.mxu0 0
        %734 = vmatpush1.bf16.msra.mxu0 0
        %735 = vmatprep.subr.bf16.mxu0 0
        %736 = vmatpush1.bf16.msra.mxu0 0
        %737 = vmatprep.subr.bf16.mxu0 0
        %738 = vmatpush1.bf16.msra.mxu0 0
        %739 = vmatprep.subr.bf16.mxu0 0
        %740 = vmatpush1.bf16.msra.mxu0 %v721
        %741 = vmatprep.subr.bf16.mxu0 0
        %742 = vmatpush1.bf16.msra.mxu0 %v720
        %743 = vmatprep.subr.bf16.mxu0 0
        %744 = vmatpush2.bf16.msra.mxu0 0
        %745 = vmatprep.subr.bf16.mxu0 0
        %746 = vmatpush2.bf16.msra.mxu0 0
        %747 = vmatprep.subr.bf16.mxu0 0
        %748 = vmatpush2.bf16.msra.mxu0 0
        %749 = vmatprep.subr.bf16.mxu0 0
        %750 = vmatpush2.bf16.msra.mxu0 0
        %751 = vmatprep.subr.bf16.mxu0 0
        %752 = vmatpush2.bf16.msra.mxu0 0
        %753 = vmatprep.subr.bf16.mxu0 0
        %754 = vmatpush2.bf16.msra.mxu0 0
        %755 = vmatprep.subr.bf16.mxu0 0
        %756 = vmatpush2.bf16.msra.mxu0 0
        %757 = vmatprep.subr.bf16.mxu0 0
        %758 = vmatpush2.bf16.msra.mxu0 0
        %759 = vmatprep.mubr.bf16.mxu0 0
        %760 = vmatmul.mubr.bf16.gmra.mxu0 %v725
        %v761 = vpop.f32.mrf.mxu0
        %v762 = vadd.f32 %v710, %v761
        %v763 = vpop.f32.mrf.mxu0
        %v764 = vpop.f32.mrf.mxu0
        %v765 = vadd.f32 %v710, %v764
        %v766 = vpop.f32.mrf.mxu0
        %767 = vdwg.mxu0
        %v768 = vxor.u32 %v762, 2147483648
        %v769 = vxor.u32 %v765, 2147483648
        %v770 = vmul.f32 %v768, 1.442695
        %v771 = vpow.pop %v770
        %v772 = vmul.f32 %v769, 1.442695
        %v773 = vpow.pop %v772
        %v774 = vadd.f32 %v771, 1.0
        %v775 = vadd.f32 %v773, 1.0
        %v776 = vrcp.pop %v774
        %v777 = vmul.f32 1.0, %v776
        %v778 = vrcp.pop %v775
        %v779 = vmul.f32 1.0, %v778
        %v780 = vmul.f32 %v762, %v777
        %v781 = vmul.f32 %v765, %v779
        %v782 = vrot.slane %v780, 7
        %v783 = vrot.slane %v781, 7
        %vm784 = vcmp.lt.s32.totalorder %v653, 1
        %v785 = vsel %vm784, %v782, %v783
        %v786 = vsel %vm784, %v783, %v782
        %v787 = vsel %vm655, 1, 0
        %v788 = vsel %vm656, 1, 0
        %vm789 = vcmp.eq.s32.totalorder %v787, 1
        %vm790 = vcmp.eq.s32.totalorder %v788, 1
        %v791 = vsel %vm789, 0.0, %v786
        %v792 = vsel %vm790, 0.0, %v785
        %v793 = vrot.slane %v780, 1
        %v794 = vrot.slane %v781, 1
        %vm795 = vcmp.lt.s32.totalorder %v653, 7
        %v796 = vsel %vm795, %v793, %v794
        %v797 = vsel %vm795, %v794, %v793
        %v798 = vsel %vm657, 1, 0
        %v799 = vsel %vm658, 1, 0
        %vm800 = vcmp.eq.s32.totalorder %v798, 1
        %vm801 = vcmp.eq.s32.totalorder %v799, 1
        %v802 = vsel %vm800, 0.0, %v796
        %v803 = vsel %vm801, 0.0, %v797
        %v804 = vld [vmem:[%s4] sm:$0x7]
        %v805 = vlaneseq
        %v806 = vshrl.u32 %v805, 7
        %v807 = vsub.s32 0, %v806
        %v808 = vrot.slane %v804, %v807
        %v809 = vmul.f32 %v808, %v791
        %v810 = vmul.f32 %v808, %v792
        %v811 = vlaneseq
        %v812 = vshrl.u32 %v811, 7
        %v813 = vsub.s32 1, %v812
        %v814 = vrot.slane %v804, %v813
        %v815 = vmul.f32 %v814, %v780
        %v816 = vmul.f32 %v814, %v781
        %v817 = vadd.f32 %v809, %v815
        %v818 = vadd.f32 %v810, %v816
        %v819 = vlaneseq
        %v820 = vshrl.u32 %v819, 7
        %v821 = vsub.s32 2, %v820
        %v822 = vrot.slane %v804, %v821
        %v823 = vmul.f32 %v822, %v802
        %v824 = vmul.f32 %v822, %v803
        %v825 = vadd.f32 %v817, %v823
        %v826 = vadd.f32 %v818, %v824
        %v827 = vld [vmem:[#allocation5] sm:$0x1]
        %v829 = vlaneseq
        %v830 = vshrl.u32 %v829, 7
        %v831 = vsub.s32 0, %v830
        %v832 = vrot.slane %v827, %v831
        %v834 = vadd.f32 %v825, %v832
        %v835 = vadd.f32 %v826, %v832
        %v836 = vpack.c.bf16 %v835, %v834
        %v837 = vld [vmem:[%s6] sm:$0xf]
        %v838 = vld [vmem:[%s6 + $0x4] sm:$0xf]
        %v839 = vld [vmem:[%s6 + $0x8] sm:$0xf]
        %v840 = vld [vmem:[%s6 + $0xc] sm:$0xf]
        %v841 = vld [vmem:[%s6 + $0x10] sm:$0xf]
        %v842 = vld [vmem:[%s6 + $0x14] sm:$0xf]
        %v843 = vld [vmem:[#allocation7] sm:$0x1]
        %v845 = vlaneseq
        %v846 = vshrl.u32 %v845, 7
        %v847 = vsub.s32 0, %v846
        %v848 = vrot.slane %v843, %v847
        %v856 = vunpack.c.l.b16 %v837
        %v857 = vunpack.c.l.b16 %v838
        %v858 = vunpack.c.l.b16 %v839
        %v859 = vunpack.c.l.b16 %v840
        %v860 = vunpack.c.l.b16 %v841
        %v861 = vunpack.c.l.b16 %v842
        %v862 = vpack.c.b16 %v857, %v856
        %v863 = vpack.c.b16 %v859, %v858
        %v864 = vpack.c.b16 %v861, %v860
        %vm868 = vcmask 392192
        %v870 = vsel %vm868, %v836, 0
        %872 = vmatprep.subr.bf16.mxu0 0
        %873 = vmatpush1.bf16.msra.mxu0 0
        %874 = vmatprep.subr.bf16.mxu0 0
        %875 = vmatpush1.bf16.msra.mxu0 0
        %876 = vmatprep.subr.bf16.mxu0 0
        %877 = vmatpush1.bf16.msra.mxu0 0
        %878 = vmatprep.subr.bf16.mxu0 0
        %879 = vmatpush1.bf16.msra.mxu0 0
        %880 = vmatprep.subr.bf16.mxu0 0
        %881 = vmatpush1.bf16.msra.mxu0 0
        %882 = vmatprep.subr.bf16.mxu0 0
        %883 = vmatpush1.bf16.msra.mxu0 %v864
        %884 = vmatprep.subr.bf16.mxu0 0
        %885 = vmatpush1.bf16.msra.mxu0 %v863
        %886 = vmatprep.subr.bf16.mxu0 0
        %887 = vmatpush1.bf16.msra.mxu0 %v862
        %888 = vmatprep.subr.bf16.mxu0 0
        %889 = vmatpush2.bf16.msra.mxu0 0
        %890 = vmatprep.subr.bf16.mxu0 0
        %891 = vmatpush2.bf16.msra.mxu0 0
        %892 = vmatprep.subr.bf16.mxu0 0
        %893 = vmatpush2.bf16.msra.mxu0 0
        %894 = vmatprep.subr.bf16.mxu0 0
        %895 = vmatpush2.bf16.msra.mxu0 0
        %896 = vmatprep.subr.bf16.mxu0 0
        %897 = vmatpush2.bf16.msra.mxu0 0
        %898 = vmatprep.subr.bf16.mxu0 0
        %899 = vmatpush2.bf16.msra.mxu0 0
        %900 = vmatprep.subr.bf16.mxu0 0
        %901 = vmatpush2.bf16.msra.mxu0 0
        %902 = vmatprep.subr.bf16.mxu0 0
        %903 = vmatpush2.bf16.msra.mxu0 0
        %904 = vmatprep.mubr.bf16.mxu0 0
        %905 = vmatmul.mubr.bf16.gmra.mxu0 %v870
        %v906 = vpop.f32.mrf.mxu0
        %v907 = vadd.f32 %v848, %v906
        %v908 = vpop.f32.mrf.mxu0
        %v909 = vpop.f32.mrf.mxu0
        %v910 = vadd.f32 %v848, %v909
        %v911 = vpop.f32.mrf.mxu0
        %912 = vdwg.mxu0
        %v913 = vld [vmem:[%s8] sm:$0xf]
        %v914 = vld [vmem:[%s8 + $0x4] sm:$0xf]
        %v915 = vld [vmem:[#allocation8] sm:$0x1]
        %v916 = vpack.c.bf16 %v910, %v907
        %918 = vrot.lane.b32.xlu0 %v916, 112
        %v919 = vpop.permute.xlu0 %918
        %vm920 = vcmask 64512
        %v922 = vsel %vm920, %v916, 0
        %v925 = vsel %vm920, %v919, 0
        %927 = vmatprep.subr.bf16.mxu0 0
        %928 = vmatpush1.bf16.xpose.msra.mxu0 0
        %929 = vmatprep.subr.bf16.mxu0 0
        %930 = vmatpush1.bf16.xpose.msra.mxu0 0
        %931 = vmatprep.subr.bf16.mxu0 0
        %932 = vmatpush1.bf16.xpose.msra.mxu0 0
        %933 = vmatprep.subr.bf16.mxu0 0
        %934 = vmatpush1.bf16.xpose.msra.mxu0 0
        %935 = vmatprep.subr.bf16.mxu0 0
        %936 = vmatpush1.bf16.xpose.msra.mxu0 0
        %937 = vmatprep.subr.bf16.mxu0 0
        %938 = vmatpush1.bf16.xpose.msra.mxu0 0
        %939 = vmatprep.subr.bf16.mxu0 0
        %940 = vmatpush1.bf16.xpose.msra.mxu0 0
        %941 = vmatprep.subr.bf16.mxu0 0
        %942 = vmatpush1.bf16.xpose.msra.mxu0 %v925
        %943 = vmatprep.subr.bf16.mxu0 0
        %944 = vmatpush2.bf16.xpose.msra.mxu0 0
        %945 = vmatprep.subr.bf16.mxu0 0
        %946 = vmatpush2.bf16.xpose.msra.mxu0 0
        %947 = vmatprep.subr.bf16.mxu0 0
        %948 = vmatpush2.bf16.xpose.msra.mxu0 0
        %949 = vmatprep.subr.bf16.mxu0 0
        %950 = vmatpush2.bf16.xpose.msra.mxu0 0
        %951 = vmatprep.subr.bf16.mxu0 0
        %952 = vmatpush2.bf16.xpose.msra.mxu0 0
        %953 = vmatprep.subr.bf16.mxu0 0
        %954 = vmatpush2.bf16.xpose.msra.mxu0 0
        %955 = vmatprep.subr.bf16.mxu0 0
        %956 = vmatpush2.bf16.xpose.msra.mxu0 0
        %957 = vmatprep.subr.bf16.mxu0 0
        %958 = vmatpush2.bf16.xpose.msra.mxu0 0
        %959 = vmatprep.mubr.bf16.mxu0 0
        %960 = vmatmul.mubr.bf16.gmra.mxu0 %v922
        %v961 = vpop.f32.mrf.mxu0
        %v962 = vadd.f32 0.0, %v961
        %v963 = vpop.f32.mrf.mxu0
        %v964 = vpop.f32.mrf.mxu0
        %v965 = vadd.f32 0.0, %v964
        %v966 = vpop.f32.mrf.mxu0
        %967 = vdwg.mxu0
        %vm968 = vcmask 130048
        %v969 = vsel %vm968, %v962, -inf
        %970 = vmax.xlane.f32.xlu0 %v969
        %v971 = vpop.xlane.xlu0 %970
        %v972 = vsel %vm968, %v965, -inf
        %973 = vmax.xlane.f32.xlu0 %v972
        %v974 = vpop.xlane.xlu0 %973
        %v975 = vsub.f32 %v962, %v971
        %v976 = vsub.f32 %v965, %v974
        %v977 = vmul.f32 %v975, 1.442695
        %v978 = vpow.pop %v977
        %v979 = vmul.f32 %v976, 1.442695
        %v980 = vpow.pop %v979
        %v981 = vsel %vm968, %v978, 0.0
        %982 = vadd.xlane.f32.xlu0 %v981
        %v983 = vpop.xlane.xlu0 %982
        %v984 = vsel %vm968, %v980, 0.0
        %985 = vadd.xlane.f32.xlu0 %v984
        %v986 = vpop.xlane.xlu0 %985
        %v987 = vrcp.pop %v983
        %v988 = vrcp.pop %v986
        %v989 = vmul.f32 %v978, %v987
        %v990 = vmul.f32 %v980, %v988
        %v991 = vpack.c.bf16 %v990, %v989
        %992 = vrot.lane.b32.xlu0 %v916, 96
        %v993 = vpop.permute.xlu0 %992
        %v996 = vsel %vm968, %v991, 0
        %998 = vmatprep.subr.bf16.mxu0 0
        %999 = vmatpush1.bf16.msra.mxu0 0
        %1000 = vmatprep.subr.bf16.mxu0 0
        %1001 = vmatpush1.bf16.msra.mxu0 0
        %1002 = vmatprep.subr.bf16.mxu0 0
        %1003 = vmatpush1.bf16.msra.mxu0 0
        %1004 = vmatprep.subr.bf16.mxu0 0
        %1005 = vmatpush1.bf16.msra.mxu0 0
        %1006 = vmatprep.subr.bf16.mxu0 0
        %1007 = vmatpush1.bf16.msra.mxu0 0
        %1008 = vmatprep.subr.bf16.mxu0 0
        %1009 = vmatpush1.bf16.msra.mxu0 0
        %1010 = vmatprep.subr.bf16.mxu0 0
        %1011 = vmatpush1.bf16.msra.mxu0 0
        %1012 = vmatprep.subr.bf16.mxu0 0
        %1013 = vmatpush1.bf16.msra.mxu0 %v993
        %1014 = vmatprep.subr.bf16.mxu0 0
        %1015 = vmatpush2.bf16.msra.mxu0 0
        %1016 = vmatprep.subr.bf16.mxu0 0
        %1017 = vmatpush2.bf16.msra.mxu0 0
        %1018 = vmatprep.subr.bf16.mxu0 0
        %1019 = vmatpush2.bf16.msra.mxu0 0
        %1020 = vmatprep.subr.bf16.mxu0 0
        %1021 = vmatpush2.bf16.msra.mxu0 0
        %1022 = vmatprep.subr.bf16.mxu0 0
        %1023 = vmatpush2.bf16.msra.mxu0 0
        %1024 = vmatprep.subr.bf16.mxu0 0
        %1025 = vmatpush2.bf16.msra.mxu0 0
        %1026 = vmatprep.subr.bf16.mxu0 0
        %1027 = vmatpush2.bf16.msra.mxu0 0
        %1028 = vmatprep.subr.bf16.mxu0 0
        %1029 = vmatpush2.bf16.msra.mxu0 0
        %1030 = vmatprep.mubr.bf16.mxu0 0
        %1031 = vmatmul.mubr.bf16.gmra.mxu0 %v996
        %v1032 = vpop.f32.mrf.mxu0
        %v1033 = vadd.f32 0.0, %v1032
        %v1034 = vpop.f32.mrf.mxu0
        %v1035 = vpop.f32.mrf.mxu0
        %v1036 = vadd.f32 0.0, %v1035
        %v1037 = vpop.f32.mrf.mxu0
        %1038 = vdwg.mxu0
        %v1039 = vpack.c.bf16 %v1036, %v1033
        %v1041 = vsel %vm920, %v1039, 0
        %vm1043 = vcmask 1043456
        %v1045 = vsel %vm1043, %v913, 0
        %1047 = vmatprep.subr.bf16.mxu0 0
        %1048 = vmatpush1.bf16.msra.mxu0 0
        %1049 = vmatprep.subr.bf16.mxu0 0
        %1050 = vmatpush1.bf16.msra.mxu0 0
        %1051 = vmatprep.subr.bf16.mxu0 0
        %1052 = vmatpush1.bf16.msra.mxu0 0
        %1053 = vmatprep.subr.bf16.mxu0 0
        %1054 = vmatpush1.bf16.msra.mxu0 0
        %1055 = vmatprep.subr.bf16.mxu0 0
        %1056 = vmatpush1.bf16.msra.mxu0 0
        %1057 = vmatprep.subr.bf16.mxu0 0
        %1058 = vmatpush1.bf16.msra.mxu0 0
        %1059 = vmatprep.subr.bf16.mxu0 0
        %1060 = vmatpush1.bf16.msra.mxu0 0
        %1061 = vmatprep.subr.bf16.mxu0 0
        %1062 = vmatpush1.bf16.msra.mxu0 %v1045
        %1063 = vmatprep.subr.bf16.mxu0 0
        %1064 = vmatpush2.bf16.msra.mxu0 0
        %1065 = vmatprep.subr.bf16.mxu0 0
        %1066 = vmatpush2.bf16.msra.mxu0 0
        %1067 = vmatprep.subr.bf16.mxu0 0
        %1068 = vmatpush2.bf16.msra.mxu0 0
        %1069 = vmatprep.subr.bf16.mxu0 0
        %1070 = vmatpush2.bf16.msra.mxu0 0
        %1071 = vmatprep.subr.bf16.mxu0 0
        %1072 = vmatpush2.bf16.msra.mxu0 0
        %1073 = vmatprep.subr.bf16.mxu0 0
        %1074 = vmatpush2.bf16.msra.mxu0 0
        %1075 = vmatprep.subr.bf16.mxu0 0
        %1076 = vmatpush2.bf16.msra.mxu0 0
        %1077 = vmatprep.subr.bf16.mxu0 0
        %1078 = vmatpush2.bf16.msra.mxu0 0
        %1079 = vmatprep.mubr.bf16.mxu0 0
        %1080 = vmatmul.mubr.bf16.gmra.mxu0 %v1041
        %v1081 = vpop.f32.mrf.mxu0
        %v1082 = vadd.f32 0.0, %v1081
        %v1083 = vpop.f32.mrf.mxu0
        %v1084 = vpop.f32.mrf.mxu0
        %v1085 = vadd.f32 0.0, %v1084
        %v1086 = vpop.f32.mrf.mxu0
        %1087 = vdwg.mxu0
        %v1089 = vlaneseq
        %v1090 = vshrl.u32 %v1089, 7
        %v1091 = vsub.s32 0, %v1090
        %v1092 = vrot.slane %v915, %v1091
        %v1094 = vadd.f32 %v1092, %v1082
        %v1095 = vadd.f32 %v1092, %v1085
        %1096 = vrot.lane.b32.xlu0 %v916, 120
        %v1097 = vpop.permute.xlu0 %1096
        %1098 = vrot.lane.b32.xlu0 %v916, 104
        %v1099 = vpop.permute.xlu0 %1098
        %v1101 = vsel %vm920, %v1097, 0
        %v1104 = vsel %vm920, %v1099, 0
        %1106 = vmatprep.subr.bf16.mxu0 0
        %1107 = vmatpush1.bf16.xpose.msra.mxu0 0
        %1108 = vmatprep.subr.bf16.mxu0 0
        %1109 = vmatpush1.bf16.xpose.msra.mxu0 0
        %1110 = vmatprep.subr.bf16.mxu0 0
        %1111 = vmatpush1.bf16.xpose.msra.mxu0 0
        %1112 = vmatprep.subr.bf16.mxu0 0
        %1113 = vmatpush1.bf16.xpose.msra.mxu0 0
        %1114 = vmatprep.subr.bf16.mxu0 0
        %1115 = vmatpush1.bf16.xpose.msra.mxu0 0
        %1116 = vmatprep.subr.bf16.mxu0 0
        %1117 = vmatpush1.bf16.xpose.msra.mxu0 0
        %1118 = vmatprep.subr.bf16.mxu0 0
        %1119 = vmatpush1.bf16.xpose.msra.mxu0 0
        %1120 = vmatprep.subr.bf16.mxu0 0
        %1121 = vmatpush1.bf16.xpose.msra.mxu0 %v1104
        %1122 = vmatprep.subr.bf16.mxu0 0
        %1123 = vmatpush2.bf16.xpose.msra.mxu0 0
        %1124 = vmatprep.subr.bf16.mxu0 0
        %1125 = vmatpush2.bf16.xpose.msra.mxu0 0
        %1126 = vmatprep.subr.bf16.mxu0 0
        %1127 = vmatpush2.bf16.xpose.msra.mxu0 0
        %1128 = vmatprep.subr.bf16.mxu0 0
        %1129 = vmatpush2.bf16.xpose.msra.mxu0 0
        %1130 = vmatprep.subr.bf16.mxu0 0
        %1131 = vmatpush2.bf16.xpose.msra.mxu0 0
        %1132 = vmatprep.subr.bf16.mxu0 0
        %1133 = vmatpush2.bf16.xpose.msra.mxu0 0
        %1134 = vmatprep.subr.bf16.mxu0 0
        %1135 = vmatpush2.bf16.xpose.msra.mxu0 0
        %1136 = vmatprep.subr.bf16.mxu0 0
        %1137 = vmatpush2.bf16.xpose.msra.mxu0 0
        %1138 = vmatprep.mubr.bf16.mxu0 0
        %1139 = vmatmul.mubr.bf16.gmra.mxu0 %v1101
        %v1140 = vpop.f32.mrf.mxu0
        %v1141 = vadd.f32 0.0, %v1140
        %v1142 = vpop.f32.mrf.mxu0
        %v1143 = vpop.f32.mrf.mxu0
        %v1144 = vadd.f32 0.0, %v1143
        %v1145 = vpop.f32.mrf.mxu0
        %1146 = vdwg.mxu0
        %v1147 = vsel %vm968, %v1141, -inf
        %1148 = vmax.xlane.f32.xlu0 %v1147
        %v1149 = vpop.xlane.xlu0 %1148
        %v1150 = vsel %vm968, %v1144, -inf
        %1151 = vmax.xlane.f32.xlu0 %v1150
        %v1152 = vpop.xlane.xlu0 %1151
        %v1153 = vsub.f32 %v1141, %v1149
        %v1154 = vsub.f32 %v1144, %v1152
        %v1155 = vmul.f32 %v1153, 1.442695
        %v1156 = vpow.pop %v1155
        %v1157 = vmul.f32 %v1154, 1.442695
        %v1158 = vpow.pop %v1157
        %v1159 = vsel %vm968, %v1156, 0.0
        %1160 = vadd.xlane.f32.xlu0 %v1159
        %v1161 = vpop.xlane.xlu0 %1160
        %v1162 = vsel %vm968, %v1158, 0.0
        %1163 = vadd.xlane.f32.xlu0 %v1162
        %v1164 = vpop.xlane.xlu0 %1163
        %v1165 = vrcp.pop %v1161
        %v1166 = vrcp.pop %v1164
        %v1167 = vmul.f32 %v1156, %v1165
        %v1168 = vmul.f32 %v1158, %v1166
        %v1169 = vpack.c.bf16 %v1168, %v1167
        %1170 = vrot.lane.b32.xlu0 %v916, 88
        %v1171 = vpop.permute.xlu0 %1170
        %v1174 = vsel %vm968, %v1169, 0
        %1176 = vmatprep.subr.bf16.mxu0 0
        %1177 = vmatpush1.bf16.msra.mxu0 0
        %1178 = vmatprep.subr.bf16.mxu0 0
        %1179 = vmatpush1.bf16.msra.mxu0 0
        %1180 = vmatprep.subr.bf16.mxu0 0
        %1181 = vmatpush1.bf16.msra.mxu0 0
        %1182 = vmatprep.subr.bf16.mxu0 0
        %1183 = vmatpush1.bf16.msra.mxu0 0
        %1184 = vmatprep.subr.bf16.mxu0 0
        %1185 = vmatpush1.bf16.msra.mxu0 0
        %1186 = vmatprep.subr.bf16.mxu0 0
        %1187 = vmatpush1.bf16.msra.mxu0 0
        %1188 = vmatprep.subr.bf16.mxu0 0
        %1189 = vmatpush1.bf16.msra.mxu0 0
        %1190 = vmatprep.subr.bf16.mxu0 0
        %1191 = vmatpush1.bf16.msra.mxu0 %v1171
        %1192 = vmatprep.subr.bf16.mxu0 0
        %1193 = vmatpush2.bf16.msra.mxu0 0
        %1194 = vmatprep.subr.bf16.mxu0 0
        %1195 = vmatpush2.bf16.msra.mxu0 0
        %1196 = vmatprep.subr.bf16.mxu0 0
        %1197 = vmatpush2.bf16.msra.mxu0 0
        %1198 = vmatprep.subr.bf16.mxu0 0
        %1199 = vmatpush2.bf16.msra.mxu0 0
        %1200 = vmatprep.subr.bf16.mxu0 0
        %1201 = vmatpush2.bf16.msra.mxu0 0
        %1202 = vmatprep.subr.bf16.mxu0 0
        %1203 = vmatpush2.bf16.msra.mxu0 0
        %1204 = vmatprep.subr.bf16.mxu0 0
        %1205 = vmatpush2.bf16.msra.mxu0 0
        %1206 = vmatprep.subr.bf16.mxu0 0
        %1207 = vmatpush2.bf16.msra.mxu0 0
        %1208 = vmatprep.mubr.bf16.mxu0 0
        %1209 = vmatmul.mubr.bf16.gmra.mxu0 %v1174
        %v1210 = vpop.f32.mrf.mxu0
        %v1211 = vadd.f32 0.0, %v1210
        %v1212 = vpop.f32.mrf.mxu0
        %v1213 = vpop.f32.mrf.mxu0
        %v1214 = vadd.f32 0.0, %v1213
        %v1215 = vpop.f32.mrf.mxu0
        %1216 = vdwg.mxu0
        %v1217 = vpack.c.bf16 %v1214, %v1211
        %v1219 = vsel %vm920, %v1217, 0
        %v1222 = vsel %vm1043, %v914, 0
        %1224 = vmatprep.subr.bf16.mxu0 0
        %1225 = vmatpush1.bf16.msra.mxu0 0
        %1226 = vmatprep.subr.bf16.mxu0 0
        %1227 = vmatpush1.bf16.msra.mxu0 0
        %1228 = vmatprep.subr.bf16.mxu0 0
        %1229 = vmatpush1.bf16.msra.mxu0 0
        %1230 = vmatprep.subr.bf16.mxu0 0
        %1231 = vmatpush1.bf16.msra.mxu0 0
        %1232 = vmatprep.subr.bf16.mxu0 0
        %1233 = vmatpush1.bf16.msra.mxu0 0
        %1234 = vmatprep.subr.bf16.mxu0 0
        %1235 = vmatpush1.bf16.msra.mxu0 0
        %1236 = vmatprep.subr.bf16.mxu0 0
        %1237 = vmatpush1.bf16.msra.mxu0 0
        %1238 = vmatprep.subr.bf16.mxu0 0
        %1239 = vmatpush1.bf16.msra.mxu0 %v1222
        %1240 = vmatprep.subr.bf16.mxu0 0
        %1241 = vmatpush2.bf16.msra.mxu0 0
        %1242 = vmatprep.subr.bf16.mxu0 0
        %1243 = vmatpush2.bf16.msra.mxu0 0
        %1244 = vmatprep.subr.bf16.mxu0 0
        %1245 = vmatpush2.bf16.msra.mxu0 0
        %1246 = vmatprep.subr.bf16.mxu0 0
        %1247 = vmatpush2.bf16.msra.mxu0 0
        %1248 = vmatprep.subr.bf16.mxu0 0
        %1249 = vmatpush2.bf16.msra.mxu0 0
        %1250 = vmatprep.subr.bf16.mxu0 0
        %1251 = vmatpush2.bf16.msra.mxu0 0
        %1252 = vmatprep.subr.bf16.mxu0 0
        %1253 = vmatpush2.bf16.msra.mxu0 0
        %1254 = vmatprep.subr.bf16.mxu0 0
        %1255 = vmatpush2.bf16.msra.mxu0 0
        %1256 = vmatprep.mubr.bf16.mxu0 0
        %1257 = vmatmul.mubr.bf16.gmra.mxu0 %v1219
        %v1258 = vpop.f32.mrf.mxu0
        %v1259 = vadd.f32 0.0, %v1258
        %v1260 = vpop.f32.mrf.mxu0
        %v1261 = vpop.f32.mrf.mxu0
        %v1262 = vadd.f32 0.0, %v1261
        %v1263 = vpop.f32.mrf.mxu0
        %1264 = vdwg.mxu0
        %v1265 = vadd.f32 %v1094, %v1259
        %v1266 = vadd.f32 %v1095, %v1262
        %v1267 = vadd.f32 %v650, %v1265
        %v1268 = vadd.f32 %v651, %v1266
        %v1269 = vsel %vm660, %v1267, 0.0
        %1270 = vadd.xlane.f32.xlu0 %v1269
        %v1271 = vpop.xlane.xlu0 %1270
        %v1272 = vsel %vm660, %v1268, 0.0
        %1273 = vadd.xlane.f32.xlu0 %v1272
        %v1274 = vpop.xlane.xlu0 %1273
        %v1275 = vmul.f32 %v1271, %v667
        %v1276 = vmul.f32 %v1274, %v667
        %v1277 = vsub.f32 %v1267, %v1275
        %v1278 = vsub.f32 %v1268, %v1276
        %v1279 = vmul.f32 %v1277, %v1277
        %v1280 = vmul.f32 %v1278, %v1278
        %v1281 = vsel %vm660, %v1279, 0.0
        %1282 = vadd.xlane.f32.xlu0 %v1281
        %v1283 = vpop.xlane.xlu0 %1282
        %v1284 = vsel %vm660, %v1280, 0.0
        %1285 = vadd.xlane.f32.xlu0 %v1284
        %v1286 = vpop.xlane.xlu0 %1285
        %v1287 = vmul.f32 %v1283, %v667
        %v1288 = vmul.f32 %v1286, %v667
        %v1289 = vadd.f32 %v1287, 1e-05
        %v1290 = vadd.f32 %v1288, 1e-05
        %v1291 = vrsqrt.pop %v1289
        %v1292 = vrsqrt.pop %v1290
        %v1293 = vmul.f32 %v1277, %v1291
        %v1294 = vmul.f32 %v1278, %v1292
        %v1295 = vlaneseq
        %v1296 = vshrl.u32 %v1295, 7
        %v1297 = vsub.s32 2, %v1296
        %v1298 = vrot.slane %v659, %v1297
        %v1299 = vmul.f32 %v1293, %v1298
        %v1300 = vmul.f32 %v1294, %v1298
        %v1301 = vlaneseq
        %v1302 = vshrl.u32 %v1301, 7
        %v1303 = vsub.s32 3, %v1302
        %v1304 = vrot.slane %v659, %v1303
        %v1305 = vadd.f32 %v1299, %v1304
        %v1306 = vadd.f32 %v1300, %v1304
        %v1307 = vpack.c.bf16 %v1306, %v1305
        %v1308 = vld [vmem:[%s10] sm:$0xf]
        %v1309 = vld [vmem:[%s10 + $0x4] sm:$0xf]
        %v1310 = vld [vmem:[%s10 + $0x8] sm:$0xf]
        %v1311 = vld [vmem:[%s10 + $0xc] sm:$0xf]
        %v1312 = vld [vmem:[#allocation10] sm:$0x1]
        %v1314 = vlaneseq
        %v1315 = vshrl.u32 %v1314, 7
        %v1316 = vsub.s32 0, %v1315
        %v1317 = vrot.slane %v1312, %v1316
        %v1323 = vunpack.c.l.b16 %v1308
        %v1324 = vunpack.c.l.b16 %v1309
        %v1325 = vunpack.c.l.b16 %v1310
        %v1326 = vunpack.c.l.b16 %v1311
        %v1327 = vpack.c.b16 %v1324, %v1323
        %v1328 = vpack.c.b16 %v1326, %v1325
        %v1332 = vsel %vm660, %v1307, 0
        %1334 = vmatprep.subr.bf16.mxu0 0
        %1335 = vmatpush1.bf16.msra.mxu0 0
        %1336 = vmatprep.subr.bf16.mxu0 0
        %1337 = vmatpush1.bf16.msra.mxu0 0
        %1338 = vmatprep.subr.bf16.mxu0 0
        %1339 = vmatpush1.bf16.msra.mxu0 0
        %1340 = vmatprep.subr.bf16.mxu0 0
        %1341 = vmatpush1.bf16.msra.mxu0 0
        %1342 = vmatprep.subr.bf16.mxu0 0
        %1343 = vmatpush1.bf16.msra.mxu0 0
        %1344 = vmatprep.subr.bf16.mxu0 0
        %1345 = vmatpush1.bf16.msra.mxu0 0
        %1346 = vmatprep.subr.bf16.mxu0 0
        %1347 = vmatpush1.bf16.msra.mxu0 %v1328
        %1348 = vmatprep.subr.bf16.mxu0 0
        %1349 = vmatpush1.bf16.msra.mxu0 %v1327
        %1350 = vmatprep.subr.bf16.mxu0 0
        %1351 = vmatpush2.bf16.msra.mxu0 0
        %1352 = vmatprep.subr.bf16.mxu0 0
        %1353 = vmatpush2.bf16.msra.mxu0 0
        %1354 = vmatprep.subr.bf16.mxu0 0
        %1355 = vmatpush2.bf16.msra.mxu0 0
        %1356 = vmatprep.subr.bf16.mxu0 0
        %1357 = vmatpush2.bf16.msra.mxu0 0
        %1358 = vmatprep.subr.bf16.mxu0 0
        %1359 = vmatpush2.bf16.msra.mxu0 0
        %1360 = vmatprep.subr.bf16.mxu0 0
        %1361 = vmatpush2.bf16.msra.mxu0 0
        %1362 = vmatprep.subr.bf16.mxu0 0
        %1363 = vmatpush2.bf16.msra.mxu0 0
        %1364 = vmatprep.subr.bf16.mxu0 0
        %1365 = vmatpush2.bf16.msra.mxu0 0
        %1366 = vmatprep.mubr.bf16.mxu0 0
        %1367 = vmatmul.mubr.bf16.gmra.mxu0 %v1332
        %v1368 = vpop.f32.mrf.mxu0
        %v1369 = vadd.f32 %v1317, %v1368
        %v1370 = vpop.f32.mrf.mxu0
        %v1371 = vpop.f32.mrf.mxu0
        %v1372 = vadd.f32 %v1317, %v1371
        %v1373 = vpop.f32.mrf.mxu0
        %1374 = vdwg.mxu0
        %v1375 = vxor.u32 %v1369, 2147483648
        %v1376 = vxor.u32 %v1372, 2147483648
        %v1377 = vmul.f32 %v1375, 1.442695
        %v1378 = vpow.pop %v1377
        %v1379 = vmul.f32 %v1376, 1.442695
        %v1380 = vpow.pop %v1379
        %v1381 = vadd.f32 %v1378, 1.0
        %v1382 = vadd.f32 %v1380, 1.0
        %v1383 = vrcp.pop %v1381
        %v1384 = vmul.f32 1.0, %v1383
        %v1385 = vrcp.pop %v1382
        %v1386 = vmul.f32 1.0, %v1385
        %v1387 = vmul.f32 %v1369, %v1384
        %v1388 = vmul.f32 %v1372, %v1386
        %v1389 = vpack.c.bf16 %v1388, %v1387
        %v1390 = vld [vmem:[#allocation11] sm:$0xff]
        %v1391 = vld [vmem:[#allocation11 + $0x8] sm:$0xff]
        %v1392 = vld [vmem:[#allocation11 + $0x10] sm:$0xff]
        %v1393 = vld [vmem:[#allocation11 + $0x18] sm:$0xff]
        %v1394 = vld [vmem:[#allocation11 + $0x20] sm:$0xff]
        %v1395 = vld [vmem:[#allocation11 + $0x28] sm:$0xff]
        %v1396 = vld [vmem:[#allocation11 + $0x30] sm:$0xff]
        %v1397 = vld [vmem:[#allocation11 + $0x38] sm:$0xff]
        %v1398 = vld [vmem:[#allocation11 + $0x40] sm:$0xff]
        %v1399 = vld [vmem:[#allocation11 + $0x48] sm:$0xff]
        %v1400 = vld [vmem:[#allocation11 + $0x50] sm:$0xff]
        %v1401 = vld [vmem:[#allocation11 + $0x58] sm:$0xff]
        %v1402 = vld [vmem:[#allocation11 + $0x60] sm:$0xff]
        %v1403 = vld [vmem:[#allocation11 + $0x68] sm:$0xff]
        %v1404 = vld [vmem:[#allocation11 + $0x70] sm:$0xff]
        %v1405 = vld [vmem:[#allocation11 + $0x78] sm:$0xff]
        %v1406 = vld [vmem:[%s13] sm:$0x3]
        %v1408 = vlaneseq
        %v1409 = vshrl.u32 %v1408, 7
        %v1410 = vsub.s32 0, %v1409
        %v1411 = vrot.slane %v1406, %v1410
        %v1412 = vlaneseq
        %v1413 = vshrl.u32 %v1412, 7
        %v1414 = vsub.s32 1, %v1413
        %v1415 = vrot.slane %v1406, %v1414
        %v1434 = vunpack.c.l.b16 %v1390
        %v1435 = vunpack.c.h.b16 %v1390
        %v1436 = vunpack.c.l.b16 %v1391
        %v1437 = vunpack.c.h.b16 %v1391
        %v1438 = vunpack.c.l.b16 %v1392
        %v1439 = vunpack.c.h.b16 %v1392
        %v1440 = vunpack.c.l.b16 %v1393
        %v1441 = vunpack.c.h.b16 %v1393
        %v1442 = vunpack.c.l.b16 %v1394
        %v1443 = vunpack.c.h.b16 %v1394
        %v1444 = vunpack.c.l.b16 %v1395
        %v1445 = vunpack.c.h.b16 %v1395
        %v1446 = vunpack.c.l.b16 %v1396
        %v1447 = vunpack.c.h.b16 %v1396
        %v1448 = vunpack.c.l.b16 %v1397
        %v1449 = vunpack.c.h.b16 %v1397
        %v1450 = vunpack.c.l.b16 %v1398
        %v1451 = vunpack.c.h.b16 %v1398
        %v1452 = vunpack.c.l.b16 %v1399
        %v1453 = vunpack.c.h.b16 %v1399
        %v1454 = vunpack.c.l.b16 %v1400
        %v1455 = vunpack.c.h.b16 %v1400
        %v1456 = vunpack.c.l.b16 %v1401
        %v1457 = vunpack.c.h.b16 %v1401
        %v1458 = vunpack.c.l.b16 %v1402
        %v1459 = vunpack.c.h.b16 %v1402
        %v1460 = vunpack.c.l.b16 %v1403
        %v1461 = vunpack.c.h.b16 %v1403
        %v1462 = vunpack.c.l.b16 %v1404
        %v1463 = vunpack.c.h.b16 %v1404
        %v1464 = vunpack.c.l.b16 %v1405
        %v1465 = vunpack.c.h.b16 %v1405
        %v1466 = vpack.c.b16 %v1436, %v1434
        %v1467 = vpack.c.b16 %v1437, %v1435
        %v1468 = vpack.c.b16 %v1440, %v1438
        %v1469 = vpack.c.b16 %v1441, %v1439
        %v1470 = vpack.c.b16 %v1444, %v1442
        %v1471 = vpack.c.b16 %v1445, %v1443
        %v1472 = vpack.c.b16 %v1448, %v1446
        %v1473 = vpack.c.b16 %v1449, %v1447
        %v1474 = vpack.c.b16 %v1452, %v1450
        %v1475 = vpack.c.b16 %v1453, %v1451
        %v1476 = vpack.c.b16 %v1456, %v1454
        %v1477 = vpack.c.b16 %v1457, %v1455
        %v1478 = vpack.c.b16 %v1460, %v1458
        %v1479 = vpack.c.b16 %v1461, %v1459
        %v1480 = vpack.c.b16 %v1464, %v1462
        %v1481 = vpack.c.b16 %v1465, %v1463
        %1498 = vmatprep.subr.bf16.mxu0 %v1481
        %1499 = vmatpush1.bf16.msra.mxu0 %v1480
        %1500 = vmatprep.subr.bf16.mxu0 %v1479
        %1501 = vmatpush1.bf16.msra.mxu0 %v1478
        %1502 = vmatprep.subr.bf16.mxu0 %v1477
        %1503 = vmatpush1.bf16.msra.mxu0 %v1476
        %1504 = vmatprep.subr.bf16.mxu0 %v1475
        %1505 = vmatpush1.bf16.msra.mxu0 %v1474
        %1506 = vmatprep.subr.bf16.mxu0 %v1473
        %1507 = vmatpush1.bf16.msra.mxu0 %v1472
        %1508 = vmatprep.subr.bf16.mxu0 %v1471
        %1509 = vmatpush1.bf16.msra.mxu0 %v1470
        %1510 = vmatprep.subr.bf16.mxu0 %v1469
        %1511 = vmatpush1.bf16.msra.mxu0 %v1468
        %1512 = vmatprep.subr.bf16.mxu0 %v1467
        %1513 = vmatpush1.bf16.msra.mxu0 %v1466
        %1514 = vmatprep.subr.bf16.mxu0 0
        %1515 = vmatpush2.bf16.msra.mxu0 0
        %1516 = vmatprep.subr.bf16.mxu0 0
        %1517 = vmatpush2.bf16.msra.mxu0 0
        %1518 = vmatprep.subr.bf16.mxu0 0
        %1519 = vmatpush2.bf16.msra.mxu0 0
        %1520 = vmatprep.subr.bf16.mxu0 0
        %1521 = vmatpush2.bf16.msra.mxu0 0
        %1522 = vmatprep.subr.bf16.mxu0 0
        %1523 = vmatpush2.bf16.msra.mxu0 0
        %1524 = vmatprep.subr.bf16.mxu0 0
        %1525 = vmatpush2.bf16.msra.mxu0 0
        %1526 = vmatprep.subr.bf16.mxu0 0
        %1527 = vmatpush2.bf16.msra.mxu0 0
        %1528 = vmatprep.subr.bf16.mxu0 0
        %1529 = vmatpush2.bf16.msra.mxu0 0
        %1530 = vmatprep.mubr.bf16.mxu0 0
        %1531 = vmatmul.mubr.bf16.gmra.mxu0 %v1389
        %v1532 = vpop.f32.mrf.mxu0
        %v1533 = vadd.f32 %v1411, %v1532
        %v1534 = vpop.f32.mrf.mxu0
        %v1535 = vadd.f32 %v1415, %v1534
        %v1536 = vpop.f32.mrf.mxu0
        %v1537 = vadd.f32 %v1411, %v1536
        %v1538 = vpop.f32.mrf.mxu0
        %v1539 = vadd.f32 %v1415, %v1538
        %1540 = vdwg.mxu0
        %v1541 = vxor.u32 %v1533, 2147483648
        %v1542 = vxor.u32 %v1537, 2147483648
        %v1543 = vmul.f32 %v1541, 1.442695
        %v1544 = vpow.pop %v1543
        %v1545 = vmul.f32 %v1542, 1.442695
        %v1546 = vpow.pop %v1545
        %v1547 = vadd.f32 %v1544, 1.0
        %v1548 = vadd.f32 %v1546, 1.0
        %v1549 = vrcp.pop %v1547
        %v1550 = vmul.f32 1.0, %v1549
        %v1551 = vrcp.pop %v1548
        %v1552 = vmul.f32 1.0, %v1551
        %v1553 = vmul.f32 %v1550, %v1535
        %v1554 = vmul.f32 %v1552, %v1539
        %v1555 = vpack.c.bf16 %v1554, %v1553
        %v1556 = vld [vmem:[%s14] sm:$0xf]
        %v1557 = vld [vmem:[%s14 + $0x4] sm:$0xf]
        %v1558 = vld [vmem:[%s14 + $0x8] sm:$0xf]
        %v1559 = vld [vmem:[%s14 + $0xc] sm:$0xf]
        %v1560 = vld [vmem:[%s14 + $0x10] sm:$0xf]
        %v1561 = vld [vmem:[%s14 + $0x14] sm:$0xf]
        %v1562 = vld [vmem:[%s14 + $0x18] sm:$0xf]
        %v1563 = vld [vmem:[%s14 + $0x1c] sm:$0xf]
        %v1564 = vld [vmem:[%s14 + $0x20] sm:$0xf]
        %v1565 = vld [vmem:[%s14 + $0x24] sm:$0xf]
        %v1566 = vld [vmem:[%s14 + $0x28] sm:$0xf]
        %v1567 = vld [vmem:[%s14 + $0x2c] sm:$0xf]
        %v1568 = vld [vmem:[%s14 + $0x30] sm:$0xf]
        %v1569 = vld [vmem:[%s14 + $0x34] sm:$0xf]
        %v1570 = vld [vmem:[%s14 + $0x38] sm:$0xf]
        %v1571 = vld [vmem:[%s14 + $0x3c] sm:$0xf]
        %v1572 = vld [vmem:[#allocation13] sm:$0x1]
        %v1574 = vlaneseq
        %v1575 = vshrl.u32 %v1574, 7
        %v1576 = vsub.s32 0, %v1575
        %v1577 = vrot.slane %v1572, %v1576
        %v1595 = vunpack.c.l.b16 %v1556
        %v1596 = vunpack.c.l.b16 %v1557
        %v1597 = vunpack.c.l.b16 %v1558
        %v1598 = vunpack.c.l.b16 %v1559
        %v1599 = vunpack.c.l.b16 %v1560
        %v1600 = vunpack.c.l.b16 %v1561
        %v1601 = vunpack.c.l.b16 %v1562
        %v1602 = vunpack.c.l.b16 %v1563
        %v1603 = vunpack.c.l.b16 %v1564
        %v1604 = vunpack.c.l.b16 %v1565
        %v1605 = vunpack.c.l.b16 %v1566
        %v1606 = vunpack.c.l.b16 %v1567
        %v1607 = vunpack.c.l.b16 %v1568
        %v1608 = vunpack.c.l.b16 %v1569
        %v1609 = vunpack.c.l.b16 %v1570
        %v1610 = vunpack.c.l.b16 %v1571
        %v1611 = vpack.c.b16 %v1596, %v1595
        %v1612 = vpack.c.b16 %v1598, %v1597
        %v1613 = vpack.c.b16 %v1600, %v1599
        %v1614 = vpack.c.b16 %v1602, %v1601
        %v1615 = vpack.c.b16 %v1604, %v1603
        %v1616 = vpack.c.b16 %v1606, %v1605
        %v1617 = vpack.c.b16 %v1608, %v1607
        %v1618 = vpack.c.b16 %v1610, %v1609
        %1627 = vmatprep.subr.bf16.mxu0 0
        %1628 = vmatpush1.bf16.msra.mxu0 %v1618
        %1629 = vmatprep.subr.bf16.mxu0 0
        %1630 = vmatpush1.bf16.msra.mxu0 %v1617
        %1631 = vmatprep.subr.bf16.mxu0 0
        %1632 = vmatpush1.bf16.msra.mxu0 %v1616
        %1633 = vmatprep.subr.bf16.mxu0 0
        %1634 = vmatpush1.bf16.msra.mxu0 %v1615
        %1635 = vmatprep.subr.bf16.mxu0 0
        %1636 = vmatpush1.bf16.msra.mxu0 %v1614
        %1637 = vmatprep.subr.bf16.mxu0 0
        %1638 = vmatpush1.bf16.msra.mxu0 %v1613
        %1639 = vmatprep.subr.bf16.mxu0 0
        %1640 = vmatpush1.bf16.msra.mxu0 %v1612
        %1641 = vmatprep.subr.bf16.mxu0 0
        %1642 = vmatpush1.bf16.msra.mxu0 %v1611
        %1643 = vmatprep.subr.bf16.mxu0 0
        %1644 = vmatpush2.bf16.msra.mxu0 0
        %1645 = vmatprep.subr.bf16.mxu0 0
        %1646 = vmatpush2.bf16.msra.mxu0 0
        %1647 = vmatprep.subr.bf16.mxu0 0
        %1648 = vmatpush2.bf16.msra.mxu0 0
        %1649 = vmatprep.subr.bf16.mxu0 0
        %1650 = vmatpush2.bf16.msra.mxu0 0
        %1651 = vmatprep.subr.bf16.mxu0 0
        %1652 = vmatpush2.bf16.msra.mxu0 0
        %1653 = vmatprep.subr.bf16.mxu0 0
        %1654 = vmatpush2.bf16.msra.mxu0 0
        %1655 = vmatprep.subr.bf16.mxu0 0
        %1656 = vmatpush2.bf16.msra.mxu0 0
        %1657 = vmatprep.subr.bf16.mxu0 0
        %1658 = vmatpush2.bf16.msra.mxu0 0
        %1659 = vmatprep.mubr.bf16.mxu0 0
        %1660 = vmatmul.mubr.bf16.gmra.mxu0 %v1555
        %v1661 = vpop.f32.mrf.mxu0
        %v1662 = vadd.f32 %v1577, %v1661
        %v1663 = vpop.f32.mrf.mxu0
        %v1664 = vpop.f32.mrf.mxu0
        %v1665 = vadd.f32 %v1577, %v1664
        %v1666 = vpop.f32.mrf.mxu0
        %1667 = vdwg.mxu0
        %v1668 = vadd.f32 %v1267, %v1662
        %v1669 = vadd.f32 %v1268, %v1665
        %s1670 = scalar_lea.vmem [#allocation2], 4
        %v1671 = vld [vmem:[%s1670] sm:$0xf]
        %v1672 = vsel %vm660, %v1668, 0.0
        %1673 = vadd.xlane.f32.xlu0 %v1672
        %v1674 = vpop.xlane.xlu0 %1673
        %v1675 = vsel %vm660, %v1669, 0.0
        %1676 = vadd.xlane.f32.xlu0 %v1675
        %v1677 = vpop.xlane.xlu0 %1676
        %v1678 = vmul.f32 %v1674, %v667
        %v1679 = vmul.f32 %v1677, %v667
        %v1680 = vsub.f32 %v1668, %v1678
        %v1681 = vsub.f32 %v1669, %v1679
        %v1682 = vmul.f32 %v1680, %v1680
        %v1683 = vmul.f32 %v1681, %v1681
        %v1684 = vsel %vm660, %v1682, 0.0
        %1685 = vadd.xlane.f32.xlu0 %v1684
        %v1686 = vpop.xlane.xlu0 %1685
        %v1687 = vsel %vm660, %v1683, 0.0
        %1688 = vadd.xlane.f32.xlu0 %v1687
        %v1689 = vpop.xlane.xlu0 %1688
        %v1690 = vmul.f32 %v1686, %v667
        %v1691 = vmul.f32 %v1689, %v667
        %v1692 = vadd.f32 %v1690, 1e-05
        %v1693 = vadd.f32 %v1691, 1e-05
        %v1694 = vrsqrt.pop %v1692
        %v1695 = vrsqrt.pop %v1693
        %v1696 = vmul.f32 %v1680, %v1694
        %v1697 = vmul.f32 %v1681, %v1695
        %v1698 = vlaneseq
        %v1699 = vshrl.u32 %v1698, 7
        %v1700 = vsub.s32 0, %v1699
        %v1701 = vrot.slane %v1671, %v1700
        %v1702 = vmul.f32 %v1696, %v1701
        %v1703 = vmul.f32 %v1697, %v1701
        %v1704 = vlaneseq
        %v1705 = vshrl.u32 %v1704, 7
        %v1706 = vsub.s32 1, %v1705
        %v1707 = vrot.slane %v1671, %v1706
        %v1708 = vadd.f32 %v1702, %v1707
        %v1709 = vadd.f32 %v1703, %v1707
        %v1710 = vpack.c.bf16 %v1709, %v1708
        %s1711 = scalar_lea.vmem %s2, 16
        %v1712 = vld [vmem:[%s1711] sm:$0xf]
        %v1713 = vld [vmem:[%s1711 + $0x4] sm:$0xf]
        %v1714 = vld [vmem:[%s1711 + $0x8] sm:$0xf]
        %v1715 = vld [vmem:[%s1711 + $0xc] sm:$0xf]
        %s1716 = scalar_lea.vmem %s3, 1
        %v1717 = vld [vmem:[%s1716] sm:$0x1]
        %v1719 = vlaneseq
        %v1720 = vshrl.u32 %v1719, 7
        %v1721 = vsub.s32 0, %v1720
        %v1722 = vrot.slane %v1717, %v1721
        %v1728 = vunpack.c.l.b16 %v1712
        %v1729 = vunpack.c.l.b16 %v1713
        %v1730 = vunpack.c.l.b16 %v1714
        %v1731 = vunpack.c.l.b16 %v1715
        %v1732 = vpack.c.b16 %v1729, %v1728
        %v1733 = vpack.c.b16 %v1731, %v1730
        %v1737 = vsel %vm660, %v1710, 0
        %1739 = vmatprep.subr.bf16.mxu0 0
        %1740 = vmatpush1.bf16.msra.mxu0 0
        %1741 = vmatprep.subr.bf16.mxu0 0
        %1742 = vmatpush1.bf16.msra.mxu0 0
        %1743 = vmatprep.subr.bf16.mxu0 0
        %1744 = vmatpush1.bf16.msra.mxu0 0
        %1745 = vmatprep.subr.bf16.mxu0 0
        %1746 = vmatpush1.bf16.msra.mxu0 0
        %1747 = vmatprep.subr.bf16.mxu0 0
        %1748 = vmatpush1.bf16.msra.mxu0 0
        %1749 = vmatprep.subr.bf16.mxu0 0
        %1750 = vmatpush1.bf16.msra.mxu0 0
        %1751 = vmatprep.subr.bf16.mxu0 0
        %1752 = vmatpush1.bf16.msra.mxu0 %v1733
        %1753 = vmatprep.subr.bf16.mxu0 0
        %1754 = vmatpush1.bf16.msra.mxu0 %v1732
        %1755 = vmatprep.subr.bf16.mxu0 0
        %1756 = vmatpush2.bf16.msra.mxu0 0
        %1757 = vmatprep.subr.bf16.mxu0 0
        %1758 = vmatpush2.bf16.msra.mxu0 0
        %1759 = vmatprep.subr.bf16.mxu0 0
        %1760 = vmatpush2.bf16.msra.mxu0 0
        %1761 = vmatprep.subr.bf16.mxu0 0
        %1762 = vmatpush2.bf16.msra.mxu0 0
        %1763 = vmatprep.subr.bf16.mxu0 0
        %1764 = vmatpush2.bf16.msra.mxu0 0
        %1765 = vmatprep.subr.bf16.mxu0 0
        %1766 = vmatpush2.bf16.msra.mxu0 0
        %1767 = vmatprep.subr.bf16.mxu0 0
        %1768 = vmatpush2.bf16.msra.mxu0 0
        %1769 = vmatprep.subr.bf16.mxu0 0
        %1770 = vmatpush2.bf16.msra.mxu0 0
        %1771 = vmatprep.mubr.bf16.mxu0 0
        %1772 = vmatmul.mubr.bf16.gmra.mxu0 %v1737
        %v1773 = vpop.f32.mrf.mxu0
        %v1774 = vadd.f32 %v1722, %v1773
        %v1775 = vpop.f32.mrf.mxu0
        %v1776 = vpop.f32.mrf.mxu0
        %v1777 = vadd.f32 %v1722, %v1776
        %v1778 = vpop.f32.mrf.mxu0
        %1779 = vdwg.mxu0
        %v1780 = vxor.u32 %v1774, 2147483648
        %v1781 = vxor.u32 %v1777, 2147483648
        %v1782 = vmul.f32 %v1780, 1.442695
        %v1783 = vpow.pop %v1782
        %v1784 = vmul.f32 %v1781, 1.442695
        %v1785 = vpow.pop %v1784
        %v1786 = vadd.f32 %v1783, 1.0
        %v1787 = vadd.f32 %v1785, 1.0
        %v1788 = vrcp.pop %v1786
        %v1789 = vmul.f32 1.0, %v1788
        %v1790 = vrcp.pop %v1787
        %v1791 = vmul.f32 1.0, %v1790
        %v1792 = vmul.f32 %v1774, %v1789
        %v1793 = vmul.f32 %v1777, %v1791
        %v1794 = vrot.slane %v1792, 7
        %v1795 = vrot.slane %v1793, 7
        %v1796 = vsel %vm784, %v1794, %v1795
        %v1797 = vsel %vm784, %v1795, %v1794
        %v1798 = vsel %vm789, 0.0, %v1797
        %v1799 = vsel %vm790, 0.0, %v1796
        %v1800 = vrot.slane %v1792, 1
        %v1801 = vrot.slane %v1793, 1
        %v1802 = vsel %vm795, %v1800, %v1801
        %v1803 = vsel %vm795, %v1801, %v1800
        %v1804 = vsel %vm800, 0.0, %v1802
        %v1805 = vsel %vm801, 0.0, %v1803
        %s1806 = scalar_lea.vmem %s4, 4
        %v1807 = vld [vmem:[%s1806] sm:$0x7]
        %v1808 = vlaneseq
        %v1809 = vshrl.u32 %v1808, 7
        %v1810 = vsub.s32 0, %v1809
        %v1811 = vrot.slane %v1807, %v1810
        %v1812 = vmul.f32 %v1811, %v1798
        %v1813 = vmul.f32 %v1811, %v1799
        %v1814 = vlaneseq
        %v1815 = vshrl.u32 %v1814, 7
        %v1816 = vsub.s32 1, %v1815
        %v1817 = vrot.slane %v1807, %v1816
        %v1818 = vmul.f32 %v1817, %v1792
        %v1819 = vmul.f32 %v1817, %v1793
        %v1820 = vadd.f32 %v1812, %v1818
        %v1821 = vadd.f32 %v1813, %v1819
        %v1822 = vlaneseq
        %v1823 = vshrl.u32 %v1822, 7
        %v1824 = vsub.s32 2, %v1823
        %v1825 = vrot.slane %v1807, %v1824
        %v1826 = vmul.f32 %v1825, %v1804
        %v1827 = vmul.f32 %v1825, %v1805
        %v1828 = vadd.f32 %v1820, %v1826
        %v1829 = vadd.f32 %v1821, %v1827
        %s1830 = scalar_lea.vmem [#allocation5], 1
        %v1831 = vld [vmem:[%s1830] sm:$0x1]
        %v1833 = vlaneseq
        %v1834 = vshrl.u32 %v1833, 7
        %v1835 = vsub.s32 0, %v1834
        %v1836 = vrot.slane %v1831, %v1835
        %v1838 = vadd.f32 %v1828, %v1836
        %v1839 = vadd.f32 %v1829, %v1836
        %v1840 = vpack.c.bf16 %v1839, %v1838
        %s1841 = scalar_lea.vmem %s6, 24
        %v1842 = vld [vmem:[%s1841] sm:$0xf]
        %v1843 = vld [vmem:[%s1841 + $0x4] sm:$0xf]
        %v1844 = vld [vmem:[%s1841 + $0x8] sm:$0xf]
        %v1845 = vld [vmem:[%s1841 + $0xc] sm:$0xf]
        %v1846 = vld [vmem:[%s1841 + $0x10] sm:$0xf]
        %v1847 = vld [vmem:[%s1841 + $0x14] sm:$0xf]
        %s1848 = scalar_lea.vmem [#allocation7], 1
        %v1849 = vld [vmem:[%s1848] sm:$0x1]
        %v1851 = vlaneseq
        %v1852 = vshrl.u32 %v1851, 7
        %v1853 = vsub.s32 0, %v1852
        %v1854 = vrot.slane %v1849, %v1853
        %v1862 = vunpack.c.l.b16 %v1842
        %v1863 = vunpack.c.l.b16 %v1843
        %v1864 = vunpack.c.l.b16 %v1844
        %v1865 = vunpack.c.l.b16 %v1845
        %v1866 = vunpack.c.l.b16 %v1846
        %v1867 = vunpack.c.l.b16 %v1847
        %v1868 = vpack.c.b16 %v1863, %v1862
        %v1869 = vpack.c.b16 %v1865, %v1864
        %v1870 = vpack.c.b16 %v1867, %v1866
        %v1875 = vsel %vm868, %v1840, 0
        %1877 = vmatprep.subr.bf16.mxu0 0
        %1878 = vmatpush1.bf16.msra.mxu0 0
        %1879 = vmatprep.subr.bf16.mxu0 0
        %1880 = vmatpush1.bf16.msra.mxu0 0
        %1881 = vmatprep.subr.bf16.mxu0 0
        %1882 = vmatpush1.bf16.msra.mxu0 0
        %1883 = vmatprep.subr.bf16.mxu0 0
        %1884 = vmatpush1.bf16.msra.mxu0 0
        %1885 = vmatprep.subr.bf16.mxu0 0
        %1886 = vmatpush1.bf16.msra.mxu0 0
        %1887 = vmatprep.subr.bf16.mxu0 0
        %1888 = vmatpush1.bf16.msra.mxu0 %v1870
        %1889 = vmatprep.subr.bf16.mxu0 0
        %1890 = vmatpush1.bf16.msra.mxu0 %v1869
        %1891 = vmatprep.subr.bf16.mxu0 0
        %1892 = vmatpush1.bf16.msra.mxu0 %v1868
        %1893 = vmatprep.subr.bf16.mxu0 0
        %1894 = vmatpush2.bf16.msra.mxu0 0
        %1895 = vmatprep.subr.bf16.mxu0 0
        %1896 = vmatpush2.bf16.msra.mxu0 0
        %1897 = vmatprep.subr.bf16.mxu0 0
        %1898 = vmatpush2.bf16.msra.mxu0 0
        %1899 = vmatprep.subr.bf16.mxu0 0
        %1900 = vmatpush2.bf16.msra.mxu0 0
        %1901 = vmatprep.subr.bf16.mxu0 0
        %1902 = vmatpush2.bf16.msra.mxu0 0
        %1903 = vmatprep.subr.bf16.mxu0 0
        %1904 = vmatpush2.bf16.msra.mxu0 0
        %1905 = vmatprep.subr.bf16.mxu0 0
        %1906 = vmatpush2.bf16.msra.mxu0 0
        %1907 = vmatprep.subr.bf16.mxu0 0
        %1908 = vmatpush2.bf16.msra.mxu0 0
        %1909 = vmatprep.mubr.bf16.mxu0 0
        %1910 = vmatmul.mubr.bf16.gmra.mxu0 %v1875
        %v1911 = vpop.f32.mrf.mxu0
        %v1912 = vadd.f32 %v1854, %v1911
        %v1913 = vpop.f32.mrf.mxu0
        %v1914 = vpop.f32.mrf.mxu0
        %v1915 = vadd.f32 %v1854, %v1914
        %v1916 = vpop.f32.mrf.mxu0
        %1917 = vdwg.mxu0
        %s1918 = scalar_lea.vmem %s8, 8
        %v1919 = vld [vmem:[%s1918] sm:$0xf]
        %v1920 = vld [vmem:[%s1918 + $0x4] sm:$0xf]
        %s1921 = scalar_lea.vmem [#allocation8], 1
        %v1922 = vld [vmem:[%s1921] sm:$0x1]
        %v1923 = vpack.c.bf16 %v1915, %v1912
        %1925 = vrot.lane.b32.xlu0 %v1923, 112
        %v1926 = vpop.permute.xlu0 %1925
        %v1928 = vsel %vm920, %v1923, 0
        %v1931 = vsel %vm920, %v1926, 0
        %1933 = vmatprep.subr.bf16.mxu0 0
        %1934 = vmatpush1.bf16.xpose.msra.mxu0 0
        %1935 = vmatprep.subr.bf16.mxu0 0
        %1936 = vmatpush1.bf16.xpose.msra.mxu0 0
        %1937 = vmatprep.subr.bf16.mxu0 0
        %1938 = vmatpush1.bf16.xpose.msra.mxu0 0
        %1939 = vmatprep.subr.bf16.mxu0 0
        %1940 = vmatpush1.bf16.xpose.msra.mxu0 0
        %1941 = vmatprep.subr.bf16.mxu0 0
        %1942 = vmatpush1.bf16.xpose.msra.mxu0 0
        %1943 = vmatprep.subr.bf16.mxu0 0
        %1944 = vmatpush1.bf16.xpose.msra.mxu0 0
        %1945 = vmatprep.subr.bf16.mxu0 0
        %1946 = vmatpush1.bf16.xpose.msra.mxu0 0
        %1947 = vmatprep.subr.bf16.mxu0 0
        %1948 = vmatpush1.bf16.xpose.msra.mxu0 %v1931
        %1949 = vmatprep.subr.bf16.mxu0 0
        %1950 = vmatpush2.bf16.xpose.msra.mxu0 0
        %1951 = vmatprep.subr.bf16.mxu0 0
        %1952 = vmatpush2.bf16.xpose.msra.mxu0 0
        %1953 = vmatprep.subr.bf16.mxu0 0
        %1954 = vmatpush2.bf16.xpose.msra.mxu0 0
        %1955 = vmatprep.subr.bf16.mxu0 0
        %1956 = vmatpush2.bf16.xpose.msra.mxu0 0
        %1957 = vmatprep.subr.bf16.mxu0 0
        %1958 = vmatpush2.bf16.xpose.msra.mxu0 0
        %1959 = vmatprep.subr.bf16.mxu0 0
        %1960 = vmatpush2.bf16.xpose.msra.mxu0 0
        %1961 = vmatprep.subr.bf16.mxu0 0
        %1962 = vmatpush2.bf16.xpose.msra.mxu0 0
        %1963 = vmatprep.subr.bf16.mxu0 0
        %1964 = vmatpush2.bf16.xpose.msra.mxu0 0
        %1965 = vmatprep.mubr.bf16.mxu0 0
        %1966 = vmatmul.mubr.bf16.gmra.mxu0 %v1928
        %v1967 = vpop.f32.mrf.mxu0
        %v1968 = vadd.f32 0.0, %v1967
        %v1969 = vpop.f32.mrf.mxu0
        %v1970 = vpop.f32.mrf.mxu0
        %v1971 = vadd.f32 0.0, %v1970
        %v1972 = vpop.f32.mrf.mxu0
        %1973 = vdwg.mxu0
        %v1974 = vsel %vm968, %v1968, -inf
        %1975 = vmax.xlane.f32.xlu0 %v1974
        %v1976 = vpop.xlane.xlu0 %1975
        %v1977 = vsel %vm968, %v1971, -inf
        %1978 = vmax.xlane.f32.xlu0 %v1977
        %v1979 = vpop.xlane.xlu0 %1978
        %v1980 = vsub.f32 %v1968, %v1976
        %v1981 = vsub.f32 %v1971, %v1979
        %v1982 = vmul.f32 %v1980, 1.442695
        %v1983 = vpow.pop %v1982
        %v1984 = vmul.f32 %v1981, 1.442695
        %v1985 = vpow.pop %v1984
        %v1986 = vsel %vm968, %v1983, 0.0
        %1987 = vadd.xlane.f32.xlu0 %v1986
        %v1988 = vpop.xlane.xlu0 %1987
        %v1989 = vsel %vm968, %v1985, 0.0
        %1990 = vadd.xlane.f32.xlu0 %v1989
        %v1991 = vpop.xlane.xlu0 %1990
        %v1992 = vrcp.pop %v1988
        %v1993 = vrcp.pop %v1991
        %v1994 = vmul.f32 %v1983, %v1992
        %v1995 = vmul.f32 %v1985, %v1993
        %v1996 = vpack.c.bf16 %v1995, %v1994
        %1997 = vrot.lane.b32.xlu0 %v1923, 96
        %v1998 = vpop.permute.xlu0 %1997
        %v2001 = vsel %vm968, %v1996, 0
        %2003 = vmatprep.subr.bf16.mxu0 0
        %2004 = vmatpush1.bf16.msra.mxu0 0
        %2005 = vmatprep.subr.bf16.mxu0 0
        %2006 = vmatpush1.bf16.msra.mxu0 0
        %2007 = vmatprep.subr.bf16.mxu0 0
        %2008 = vmatpush1.bf16.msra.mxu0 0
        %2009 = vmatprep.subr.bf16.mxu0 0
        %2010 = vmatpush1.bf16.msra.mxu0 0
        %2011 = vmatprep.subr.bf16.mxu0 0
        %2012 = vmatpush1.bf16.msra.mxu0 0
        %2013 = vmatprep.subr.bf16.mxu0 0
        %2014 = vmatpush1.bf16.msra.mxu0 0
        %2015 = vmatprep.subr.bf16.mxu0 0
        %2016 = vmatpush1.bf16.msra.mxu0 0
        %2017 = vmatprep.subr.bf16.mxu0 0
        %2018 = vmatpush1.bf16.msra.mxu0 %v1998
        %2019 = vmatprep.subr.bf16.mxu0 0
        %2020 = vmatpush2.bf16.msra.mxu0 0
        %2021 = vmatprep.subr.bf16.mxu0 0
        %2022 = vmatpush2.bf16.msra.mxu0 0
        %2023 = vmatprep.subr.bf16.mxu0 0
        %2024 = vmatpush2.bf16.msra.mxu0 0
        %2025 = vmatprep.subr.bf16.mxu0 0
        %2026 = vmatpush2.bf16.msra.mxu0 0
        %2027 = vmatprep.subr.bf16.mxu0 0
        %2028 = vmatpush2.bf16.msra.mxu0 0
        %2029 = vmatprep.subr.bf16.mxu0 0
        %2030 = vmatpush2.bf16.msra.mxu0 0
        %2031 = vmatprep.subr.bf16.mxu0 0
        %2032 = vmatpush2.bf16.msra.mxu0 0
        %2033 = vmatprep.subr.bf16.mxu0 0
        %2034 = vmatpush2.bf16.msra.mxu0 0
        %2035 = vmatprep.mubr.bf16.mxu0 0
        %2036 = vmatmul.mubr.bf16.gmra.mxu0 %v2001
        %v2037 = vpop.f32.mrf.mxu0
        %v2038 = vadd.f32 0.0, %v2037
        %v2039 = vpop.f32.mrf.mxu0
        %v2040 = vpop.f32.mrf.mxu0
        %v2041 = vadd.f32 0.0, %v2040
        %v2042 = vpop.f32.mrf.mxu0
        %2043 = vdwg.mxu0
        %v2044 = vpack.c.bf16 %v2041, %v2038
        %v2046 = vsel %vm920, %v2044, 0
        %v2049 = vsel %vm1043, %v1919, 0
        %2051 = vmatprep.subr.bf16.mxu0 0
        %2052 = vmatpush1.bf16.msra.mxu0 0
        %2053 = vmatprep.subr.bf16.mxu0 0
        %2054 = vmatpush1.bf16.msra.mxu0 0
        %2055 = vmatprep.subr.bf16.mxu0 0
        %2056 = vmatpush1.bf16.msra.mxu0 0
        %2057 = vmatprep.subr.bf16.mxu0 0
        %2058 = vmatpush1.bf16.msra.mxu0 0
        %2059 = vmatprep.subr.bf16.mxu0 0
        %2060 = vmatpush1.bf16.msra.mxu0 0
        %2061 = vmatprep.subr.bf16.mxu0 0
        %2062 = vmatpush1.bf16.msra.mxu0 0
        %2063 = vmatprep.subr.bf16.mxu0 0
        %2064 = vmatpush1.bf16.msra.mxu0 0
        %2065 = vmatprep.subr.bf16.mxu0 0
        %2066 = vmatpush1.bf16.msra.mxu0 %v2049
        %2067 = vmatprep.subr.bf16.mxu0 0
        %2068 = vmatpush2.bf16.msra.mxu0 0
        %2069 = vmatprep.subr.bf16.mxu0 0
        %2070 = vmatpush2.bf16.msra.mxu0 0
        %2071 = vmatprep.subr.bf16.mxu0 0
        %2072 = vmatpush2.bf16.msra.mxu0 0
        %2073 = vmatprep.subr.bf16.mxu0 0
        %2074 = vmatpush2.bf16.msra.mxu0 0
        %2075 = vmatprep.subr.bf16.mxu0 0
        %2076 = vmatpush2.bf16.msra.mxu0 0
        %2077 = vmatprep.subr.bf16.mxu0 0
        %2078 = vmatpush2.bf16.msra.mxu0 0
        %2079 = vmatprep.subr.bf16.mxu0 0
        %2080 = vmatpush2.bf16.msra.mxu0 0
        %2081 = vmatprep.subr.bf16.mxu0 0
        %2082 = vmatpush2.bf16.msra.mxu0 0
        %2083 = vmatprep.mubr.bf16.mxu0 0
        %2084 = vmatmul.mubr.bf16.gmra.mxu0 %v2046
        %v2085 = vpop.f32.mrf.mxu0
        %v2086 = vadd.f32 0.0, %v2085
        %v2087 = vpop.f32.mrf.mxu0
        %v2088 = vpop.f32.mrf.mxu0
        %v2089 = vadd.f32 0.0, %v2088
        %v2090 = vpop.f32.mrf.mxu0
        %2091 = vdwg.mxu0
        %v2093 = vlaneseq
        %v2094 = vshrl.u32 %v2093, 7
        %v2095 = vsub.s32 0, %v2094
        %v2096 = vrot.slane %v1922, %v2095
        %v2098 = vadd.f32 %v2096, %v2086
        %v2099 = vadd.f32 %v2096, %v2089
        %2100 = vrot.lane.b32.xlu0 %v1923, 120
        %v2101 = vpop.permute.xlu0 %2100
        %2102 = vrot.lane.b32.xlu0 %v1923, 104
        %v2103 = vpop.permute.xlu0 %2102
        %v2105 = vsel %vm920, %v2101, 0
        %v2108 = vsel %vm920, %v2103, 0
        %2110 = vmatprep.subr.bf16.mxu0 0
        %2111 = vmatpush1.bf16.xpose.msra.mxu0 0
        %2112 = vmatprep.subr.bf16.mxu0 0
        %2113 = vmatpush1.bf16.xpose.msra.mxu0 0
        %2114 = vmatprep.subr.bf16.mxu0 0
        %2115 = vmatpush1.bf16.xpose.msra.mxu0 0
        %2116 = vmatprep.subr.bf16.mxu0 0
        %2117 = vmatpush1.bf16.xpose.msra.mxu0 0
        %2118 = vmatprep.subr.bf16.mxu0 0
        %2119 = vmatpush1.bf16.xpose.msra.mxu0 0
        %2120 = vmatprep.subr.bf16.mxu0 0
        %2121 = vmatpush1.bf16.xpose.msra.mxu0 0
        %2122 = vmatprep.subr.bf16.mxu0 0
        %2123 = vmatpush1.bf16.xpose.msra.mxu0 0
        %2124 = vmatprep.subr.bf16.mxu0 0
        %2125 = vmatpush1.bf16.xpose.msra.mxu0 %v2108
        %2126 = vmatprep.subr.bf16.mxu0 0
        %2127 = vmatpush2.bf16.xpose.msra.mxu0 0
        %2128 = vmatprep.subr.bf16.mxu0 0
        %2129 = vmatpush2.bf16.xpose.msra.mxu0 0
        %2130 = vmatprep.subr.bf16.mxu0 0
        %2131 = vmatpush2.bf16.xpose.msra.mxu0 0
        %2132 = vmatprep.subr.bf16.mxu0 0
        %2133 = vmatpush2.bf16.xpose.msra.mxu0 0
        %2134 = vmatprep.subr.bf16.mxu0 0
        %2135 = vmatpush2.bf16.xpose.msra.mxu0 0
        %2136 = vmatprep.subr.bf16.mxu0 0
        %2137 = vmatpush2.bf16.xpose.msra.mxu0 0
        %2138 = vmatprep.subr.bf16.mxu0 0
        %2139 = vmatpush2.bf16.xpose.msra.mxu0 0
        %2140 = vmatprep.subr.bf16.mxu0 0
        %2141 = vmatpush2.bf16.xpose.msra.mxu0 0
        %2142 = vmatprep.mubr.bf16.mxu0 0
        %2143 = vmatmul.mubr.bf16.gmra.mxu0 %v2105
        %v2144 = vpop.f32.mrf.mxu0
        %v2145 = vadd.f32 0.0, %v2144
        %v2146 = vpop.f32.mrf.mxu0
        %v2147 = vpop.f32.mrf.mxu0
        %v2148 = vadd.f32 0.0, %v2147
        %v2149 = vpop.f32.mrf.mxu0
        %2150 = vdwg.mxu0
        %v2151 = vsel %vm968, %v2145, -inf
        %2152 = vmax.xlane.f32.xlu0 %v2151
        %v2153 = vpop.xlane.xlu0 %2152
        %v2154 = vsel %vm968, %v2148, -inf
        %2155 = vmax.xlane.f32.xlu0 %v2154
        %v2156 = vpop.xlane.xlu0 %2155
        %v2157 = vsub.f32 %v2145, %v2153
        %v2158 = vsub.f32 %v2148, %v2156
        %v2159 = vmul.f32 %v2157, 1.442695
        %v2160 = vpow.pop %v2159
        %v2161 = vmul.f32 %v2158, 1.442695
        %v2162 = vpow.pop %v2161
        %v2163 = vsel %vm968, %v2160, 0.0
        %2164 = vadd.xlane.f32.xlu0 %v2163
        %v2165 = vpop.xlane.xlu0 %2164
        %v2166 = vsel %vm968, %v2162, 0.0
        %2167 = vadd.xlane.f32.xlu0 %v2166
        %v2168 = vpop.xlane.xlu0 %2167
        %v2169 = vrcp.pop %v2165
        %v2170 = vrcp.pop %v2168
        %v2171 = vmul.f32 %v2160, %v2169
        %v2172 = vmul.f32 %v2162, %v2170
        %v2173 = vpack.c.bf16 %v2172, %v2171
        %2174 = vrot.lane.b32.xlu0 %v1923, 88
        %v2175 = vpop.permute.xlu0 %2174
        %v2178 = vsel %vm968, %v2173, 0
        %2180 = vmatprep.subr.bf16.mxu0 0
        %2181 = vmatpush1.bf16.msra.mxu0 0
        %2182 = vmatprep.subr.bf16.mxu0 0
        %2183 = vmatpush1.bf16.msra.mxu0 0
        %2184 = vmatprep.subr.bf16.mxu0 0
        %2185 = vmatpush1.bf16.msra.mxu0 0
        %2186 = vmatprep.subr.bf16.mxu0 0
        %2187 = vmatpush1.bf16.msra.mxu0 0
        %2188 = vmatprep.subr.bf16.mxu0 0
        %2189 = vmatpush1.bf16.msra.mxu0 0
        %2190 = vmatprep.subr.bf16.mxu0 0
        %2191 = vmatpush1.bf16.msra.mxu0 0
        %2192 = vmatprep.subr.bf16.mxu0 0
        %2193 = vmatpush1.bf16.msra.mxu0 0
        %2194 = vmatprep.subr.bf16.mxu0 0
        %2195 = vmatpush1.bf16.msra.mxu0 %v2175
        %2196 = vmatprep.subr.bf16.mxu0 0
        %2197 = vmatpush2.bf16.msra.mxu0 0
        %2198 = vmatprep.subr.bf16.mxu0 0
        %2199 = vmatpush2.bf16.msra.mxu0 0
        %2200 = vmatprep.subr.bf16.mxu0 0
        %2201 = vmatpush2.bf16.msra.mxu0 0
        %2202 = vmatprep.subr.bf16.mxu0 0
        %2203 = vmatpush2.bf16.msra.mxu0 0
        %2204 = vmatprep.subr.bf16.mxu0 0
        %2205 = vmatpush2.bf16.msra.mxu0 0
        %2206 = vmatprep.subr.bf16.mxu0 0
        %2207 = vmatpush2.bf16.msra.mxu0 0
        %2208 = vmatprep.subr.bf16.mxu0 0
        %2209 = vmatpush2.bf16.msra.mxu0 0
        %2210 = vmatprep.subr.bf16.mxu0 0
        %2211 = vmatpush2.bf16.msra.mxu0 0
        %2212 = vmatprep.mubr.bf16.mxu0 0
        %2213 = vmatmul.mubr.bf16.gmra.mxu0 %v2178
        %v2214 = vpop.f32.mrf.mxu0
        %v2215 = vadd.f32 0.0, %v2214
        %v2216 = vpop.f32.mrf.mxu0
        %v2217 = vpop.f32.mrf.mxu0
        %v2218 = vadd.f32 0.0, %v2217
        %v2219 = vpop.f32.mrf.mxu0
        %2220 = vdwg.mxu0
        %v2221 = vpack.c.bf16 %v2218, %v2215
        %v2223 = vsel %vm920, %v2221, 0
        %v2226 = vsel %vm1043, %v1920, 0
        %2228 = vmatprep.subr.bf16.mxu0 0
        %2229 = vmatpush1.bf16.msra.mxu0 0
        %2230 = vmatprep.subr.bf16.mxu0 0
        %2231 = vmatpush1.bf16.msra.mxu0 0
        %2232 = vmatprep.subr.bf16.mxu0 0
        %2233 = vmatpush1.bf16.msra.mxu0 0
        %2234 = vmatprep.subr.bf16.mxu0 0
        %2235 = vmatpush1.bf16.msra.mxu0 0
        %2236 = vmatprep.subr.bf16.mxu0 0
        %2237 = vmatpush1.bf16.msra.mxu0 0
        %2238 = vmatprep.subr.bf16.mxu0 0
        %2239 = vmatpush1.bf16.msra.mxu0 0
        %2240 = vmatprep.subr.bf16.mxu0 0
        %2241 = vmatpush1.bf16.msra.mxu0 0
        %2242 = vmatprep.subr.bf16.mxu0 0
        %2243 = vmatpush1.bf16.msra.mxu0 %v2226
        %2244 = vmatprep.subr.bf16.mxu0 0
        %2245 = vmatpush2.bf16.msra.mxu0 0
        %2246 = vmatprep.subr.bf16.mxu0 0
        %2247 = vmatpush2.bf16.msra.mxu0 0
        %2248 = vmatprep.subr.bf16.mxu0 0
        %2249 = vmatpush2.bf16.msra.mxu0 0
        %2250 = vmatprep.subr.bf16.mxu0 0
        %2251 = vmatpush2.bf16.msra.mxu0 0
        %2252 = vmatprep.subr.bf16.mxu0 0
        %2253 = vmatpush2.bf16.msra.mxu0 0
        %2254 = vmatprep.subr.bf16.mxu0 0
        %2255 = vmatpush2.bf16.msra.mxu0 0
        %2256 = vmatprep.subr.bf16.mxu0 0
        %2257 = vmatpush2.bf16.msra.mxu0 0
        %2258 = vmatprep.subr.bf16.mxu0 0
        %2259 = vmatpush2.bf16.msra.mxu0 0
        %2260 = vmatprep.mubr.bf16.mxu0 0
        %2261 = vmatmul.mubr.bf16.gmra.mxu0 %v2223
        %v2262 = vpop.f32.mrf.mxu0
        %v2263 = vadd.f32 0.0, %v2262
        %v2264 = vpop.f32.mrf.mxu0
        %v2265 = vpop.f32.mrf.mxu0
        %v2266 = vadd.f32 0.0, %v2265
        %v2267 = vpop.f32.mrf.mxu0
        %2268 = vdwg.mxu0
        %v2269 = vadd.f32 %v2098, %v2263
        %v2270 = vadd.f32 %v2099, %v2266
        %v2271 = vadd.f32 %v1668, %v2269
        %v2272 = vadd.f32 %v1669, %v2270
        %v2273 = vsel %vm660, %v2271, 0.0
        %2274 = vadd.xlane.f32.xlu0 %v2273
        %v2275 = vpop.xlane.xlu0 %2274
        %v2276 = vsel %vm660, %v2272, 0.0
        %2277 = vadd.xlane.f32.xlu0 %v2276
        %v2278 = vpop.xlane.xlu0 %2277
        %v2279 = vmul.f32 %v2275, %v667
        %v2280 = vmul.f32 %v2278, %v667
        %v2281 = vsub.f32 %v2271, %v2279
        %v2282 = vsub.f32 %v2272, %v2280
        %v2283 = vmul.f32 %v2281, %v2281
        %v2284 = vmul.f32 %v2282, %v2282
        %v2285 = vsel %vm660, %v2283, 0.0
        %2286 = vadd.xlane.f32.xlu0 %v2285
        %v2287 = vpop.xlane.xlu0 %2286
        %v2288 = vsel %vm660, %v2284, 0.0
        %2289 = vadd.xlane.f32.xlu0 %v2288
        %v2290 = vpop.xlane.xlu0 %2289
        %v2291 = vmul.f32 %v2287, %v667
        %v2292 = vmul.f32 %v2290, %v667
        %v2293 = vadd.f32 %v2291, 1e-05
        %v2294 = vadd.f32 %v2292, 1e-05
        %v2295 = vrsqrt.pop %v2293
        %v2296 = vrsqrt.pop %v2294
        %v2297 = vmul.f32 %v2281, %v2295
        %v2298 = vmul.f32 %v2282, %v2296
        %v2299 = vlaneseq
        %v2300 = vshrl.u32 %v2299, 7
        %v2301 = vsub.s32 2, %v2300
        %v2302 = vrot.slane %v1671, %v2301
        %v2303 = vmul.f32 %v2297, %v2302
        %v2304 = vmul.f32 %v2298, %v2302
        %v2305 = vlaneseq
        %v2306 = vshrl.u32 %v2305, 7
        %v2307 = vsub.s32 3, %v2306
        %v2308 = vrot.slane %v1671, %v2307
        %v2309 = vadd.f32 %v2303, %v2308
        %v2310 = vadd.f32 %v2304, %v2308
        %v2311 = vpack.c.bf16 %v2310, %v2309
        %s2312 = scalar_lea.vmem %s10, 16
        %v2313 = vld [vmem:[%s2312] sm:$0xf]
        %v2314 = vld [vmem:[%s2312 + $0x4] sm:$0xf]
        %v2315 = vld [vmem:[%s2312 + $0x8] sm:$0xf]
        %v2316 = vld [vmem:[%s2312 + $0xc] sm:$0xf]
        %s2317 = scalar_lea.vmem [#allocation10], 1
        %v2318 = vld [vmem:[%s2317] sm:$0x1]
        %v2320 = vlaneseq
        %v2321 = vshrl.u32 %v2320, 7
        %v2322 = vsub.s32 0, %v2321
        %v2323 = vrot.slane %v2318, %v2322
        %v2329 = vunpack.c.l.b16 %v2313
        %v2330 = vunpack.c.l.b16 %v2314
        %v2331 = vunpack.c.l.b16 %v2315
        %v2332 = vunpack.c.l.b16 %v2316
        %v2333 = vpack.c.b16 %v2330, %v2329
        %v2334 = vpack.c.b16 %v2332, %v2331
        %v2338 = vsel %vm660, %v2311, 0
        %2340 = vmatprep.subr.bf16.mxu0 0
        %2341 = vmatpush1.bf16.msra.mxu0 0
        %2342 = vmatprep.subr.bf16.mxu0 0
        %2343 = vmatpush1.bf16.msra.mxu0 0
        %2344 = vmatprep.subr.bf16.mxu0 0
        %2345 = vmatpush1.bf16.msra.mxu0 0
        %2346 = vmatprep.subr.bf16.mxu0 0
        %2347 = vmatpush1.bf16.msra.mxu0 0
        %2348 = vmatprep.subr.bf16.mxu0 0
        %2349 = vmatpush1.bf16.msra.mxu0 0
        %2350 = vmatprep.subr.bf16.mxu0 0
        %2351 = vmatpush1.bf16.msra.mxu0 0
        %2352 = vmatprep.subr.bf16.mxu0 0
        %2353 = vmatpush1.bf16.msra.mxu0 %v2334
        %2354 = vmatprep.subr.bf16.mxu0 0
        %2355 = vmatpush1.bf16.msra.mxu0 %v2333
        %2356 = vmatprep.subr.bf16.mxu0 0
        %2357 = vmatpush2.bf16.msra.mxu0 0
        %2358 = vmatprep.subr.bf16.mxu0 0
        %2359 = vmatpush2.bf16.msra.mxu0 0
        %2360 = vmatprep.subr.bf16.mxu0 0
        %2361 = vmatpush2.bf16.msra.mxu0 0
        %2362 = vmatprep.subr.bf16.mxu0 0
        %2363 = vmatpush2.bf16.msra.mxu0 0
        %2364 = vmatprep.subr.bf16.mxu0 0
        %2365 = vmatpush2.bf16.msra.mxu0 0
        %2366 = vmatprep.subr.bf16.mxu0 0
        %2367 = vmatpush2.bf16.msra.mxu0 0
        %2368 = vmatprep.subr.bf16.mxu0 0
        %2369 = vmatpush2.bf16.msra.mxu0 0
        %2370 = vmatprep.subr.bf16.mxu0 0
        %2371 = vmatpush2.bf16.msra.mxu0 0
        %2372 = vmatprep.mubr.bf16.mxu0 0
        %2373 = vmatmul.mubr.bf16.gmra.mxu0 %v2338
        %v2374 = vpop.f32.mrf.mxu0
        %v2375 = vadd.f32 %v2323, %v2374
        %v2376 = vpop.f32.mrf.mxu0
        %v2377 = vpop.f32.mrf.mxu0
        %v2378 = vadd.f32 %v2323, %v2377
        %v2379 = vpop.f32.mrf.mxu0
        %2380 = vdwg.mxu0
        %v2381 = vxor.u32 %v2375, 2147483648
        %v2382 = vxor.u32 %v2378, 2147483648
        %v2383 = vmul.f32 %v2381, 1.442695
        %v2384 = vpow.pop %v2383
        %v2385 = vmul.f32 %v2382, 1.442695
        %v2386 = vpow.pop %v2385
        %v2387 = vadd.f32 %v2384, 1.0
        %v2388 = vadd.f32 %v2386, 1.0
        %v2389 = vrcp.pop %v2387
        %v2390 = vmul.f32 1.0, %v2389
        %v2391 = vrcp.pop %v2388
        %v2392 = vmul.f32 1.0, %v2391
        %v2393 = vmul.f32 %v2375, %v2390
        %v2394 = vmul.f32 %v2378, %v2392
        %v2395 = vpack.c.bf16 %v2394, %v2393
        %s2396 = scalar_lea.vmem [#allocation11], 128
        %v2397 = vld [vmem:[%s2396] sm:$0xff]
        %v2398 = vld [vmem:[%s2396 + $0x8] sm:$0xff]
        %v2399 = vld [vmem:[%s2396 + $0x10] sm:$0xff]
        %v2400 = vld [vmem:[%s2396 + $0x18] sm:$0xff]
        %v2401 = vld [vmem:[%s2396 + $0x20] sm:$0xff]
        %v2402 = vld [vmem:[%s2396 + $0x28] sm:$0xff]
        %v2403 = vld [vmem:[%s2396 + $0x30] sm:$0xff]
        %v2404 = vld [vmem:[%s2396 + $0x38] sm:$0xff]
        %v2405 = vld [vmem:[%s2396 + $0x40] sm:$0xff]
        %v2406 = vld [vmem:[%s2396 + $0x48] sm:$0xff]
        %v2407 = vld [vmem:[%s2396 + $0x50] sm:$0xff]
        %v2408 = vld [vmem:[%s2396 + $0x58] sm:$0xff]
        %v2409 = vld [vmem:[%s2396 + $0x60] sm:$0xff]
        %v2410 = vld [vmem:[%s2396 + $0x68] sm:$0xff]
        %v2411 = vld [vmem:[%s2396 + $0x70] sm:$0xff]
        %v2412 = vld [vmem:[%s2396 + $0x78] sm:$0xff]
        %s2413 = scalar_lea.vmem %s13, 2
        %v2414 = vld [vmem:[%s2413] sm:$0x3]
        %v2416 = vlaneseq
        %v2417 = vshrl.u32 %v2416, 7
        %v2418 = vsub.s32 0, %v2417
        %v2419 = vrot.slane %v2414, %v2418
        %v2420 = vlaneseq
        %v2421 = vshrl.u32 %v2420, 7
        %v2422 = vsub.s32 1, %v2421
        %v2423 = vrot.slane %v2414, %v2422
        %v2442 = vunpack.c.l.b16 %v2397
        %v2443 = vunpack.c.h.b16 %v2397
        %v2444 = vunpack.c.l.b16 %v2398
        %v2445 = vunpack.c.h.b16 %v2398
        %v2446 = vunpack.c.l.b16 %v2399
        %v2447 = vunpack.c.h.b16 %v2399
        %v2448 = vunpack.c.l.b16 %v2400
        %v2449 = vunpack.c.h.b16 %v2400
        %v2450 = vunpack.c.l.b16 %v2401
        %v2451 = vunpack.c.h.b16 %v2401
        %v2452 = vunpack.c.l.b16 %v2402
        %v2453 = vunpack.c.h.b16 %v2402
        %v2454 = vunpack.c.l.b16 %v2403
        %v2455 = vunpack.c.h.b16 %v2403
        %v2456 = vunpack.c.l.b16 %v2404
        %v2457 = vunpack.c.h.b16 %v2404
        %v2458 = vunpack.c.l.b16 %v2405
        %v2459 = vunpack.c.h.b16 %v2405
        %v2460 = vunpack.c.l.b16 %v2406
        %v2461 = vunpack.c.h.b16 %v2406
        %v2462 = vunpack.c.l.b16 %v2407
        %v2463 = vunpack.c.h.b16 %v2407
        %v2464 = vunpack.c.l.b16 %v2408
        %v2465 = vunpack.c.h.b16 %v2408
        %v2466 = vunpack.c.l.b16 %v2409
        %v2467 = vunpack.c.h.b16 %v2409
        %v2468 = vunpack.c.l.b16 %v2410
        %v2469 = vunpack.c.h.b16 %v2410
        %v2470 = vunpack.c.l.b16 %v2411
        %v2471 = vunpack.c.h.b16 %v2411
        %v2472 = vunpack.c.l.b16 %v2412
        %v2473 = vunpack.c.h.b16 %v2412
        %v2474 = vpack.c.b16 %v2444, %v2442
        %v2475 = vpack.c.b16 %v2445, %v2443
        %v2476 = vpack.c.b16 %v2448, %v2446
        %v2477 = vpack.c.b16 %v2449, %v2447
        %v2478 = vpack.c.b16 %v2452, %v2450
        %v2479 = vpack.c.b16 %v2453, %v2451
        %v2480 = vpack.c.b16 %v2456, %v2454
        %v2481 = vpack.c.b16 %v2457, %v2455
        %v2482 = vpack.c.b16 %v2460, %v2458
        %v2483 = vpack.c.b16 %v2461, %v2459
        %v2484 = vpack.c.b16 %v2464, %v2462
        %v2485 = vpack.c.b16 %v2465, %v2463
        %v2486 = vpack.c.b16 %v2468, %v2466
        %v2487 = vpack.c.b16 %v2469, %v2467
        %v2488 = vpack.c.b16 %v2472, %v2470
        %v2489 = vpack.c.b16 %v2473, %v2471
        %2506 = vmatprep.subr.bf16.mxu0 %v2489
        %2507 = vmatpush1.bf16.msra.mxu0 %v2488
        %2508 = vmatprep.subr.bf16.mxu0 %v2487
        %2509 = vmatpush1.bf16.msra.mxu0 %v2486
        %2510 = vmatprep.subr.bf16.mxu0 %v2485
        %2511 = vmatpush1.bf16.msra.mxu0 %v2484
        %2512 = vmatprep.subr.bf16.mxu0 %v2483
        %2513 = vmatpush1.bf16.msra.mxu0 %v2482
        %2514 = vmatprep.subr.bf16.mxu0 %v2481
        %2515 = vmatpush1.bf16.msra.mxu0 %v2480
        %2516 = vmatprep.subr.bf16.mxu0 %v2479
        %2517 = vmatpush1.bf16.msra.mxu0 %v2478
        %2518 = vmatprep.subr.bf16.mxu0 %v2477
        %2519 = vmatpush1.bf16.msra.mxu0 %v2476
        %2520 = vmatprep.subr.bf16.mxu0 %v2475
        %2521 = vmatpush1.bf16.msra.mxu0 %v2474
        %2522 = vmatprep.subr.bf16.mxu0 0
        %2523 = vmatpush2.bf16.msra.mxu0 0
        %2524 = vmatprep.subr.bf16.mxu0 0
        %2525 = vmatpush2.bf16.msra.mxu0 0
        %2526 = vmatprep.subr.bf16.mxu0 0
        %2527 = vmatpush2.bf16.msra.mxu0 0
        %2528 = vmatprep.subr.bf16.mxu0 0
        %2529 = vmatpush2.bf16.msra.mxu0 0
        %2530 = vmatprep.subr.bf16.mxu0 0
        %2531 = vmatpush2.bf16.msra.mxu0 0
        %2532 = vmatprep.subr.bf16.mxu0 0
        %2533 = vmatpush2.bf16.msra.mxu0 0
        %2534 = vmatprep.subr.bf16.mxu0 0
        %2535 = vmatpush2.bf16.msra.mxu0 0
        %2536 = vmatprep.subr.bf16.mxu0 0
        %2537 = vmatpush2.bf16.msra.mxu0 0
        %2538 = vmatprep.mubr.bf16.mxu0 0
        %2539 = vmatmul.mubr.bf16.gmra.mxu0 %v2395
        %v2540 = vpop.f32.mrf.mxu0
        %v2541 = vadd.f32 %v2419, %v2540
        %v2542 = vpop.f32.mrf.mxu0
        %v2543 = vadd.f32 %v2423, %v2542
        %v2544 = vpop.f32.mrf.mxu0
        %v2545 = vadd.f32 %v2419, %v2544
        %v2546 = vpop.f32.mrf.mxu0
        %v2547 = vadd.f32 %v2423, %v2546
        %2548 = vdwg.mxu0
        %v2549 = vxor.u32 %v2541, 2147483648
        %v2550 = vxor.u32 %v2545, 2147483648
        %v2551 = vmul.f32 %v2549, 1.442695
        %v2552 = vpow.pop %v2551
        %v2553 = vmul.f32 %v2550, 1.442695
        %v2554 = vpow.pop %v2553
        %v2555 = vadd.f32 %v2552, 1.0
        %v2556 = vadd.f32 %v2554, 1.0
        %v2557 = vrcp.pop %v2555
        %v2558 = vmul.f32 1.0, %v2557
        %v2559 = vrcp.pop %v2556
        %v2560 = vmul.f32 1.0, %v2559
        %v2561 = vmul.f32 %v2558, %v2543
        %v2562 = vmul.f32 %v2560, %v2547
        %v2563 = vpack.c.bf16 %v2562, %v2561
        %s2564 = scalar_lea.vmem %s14, 64
        %v2565 = vld [vmem:[%s2564] sm:$0xf]
        %v2566 = vld [vmem:[%s2564 + $0x4] sm:$0xf]
        %v2567 = vld [vmem:[%s2564 + $0x8] sm:$0xf]
        %v2568 = vld [vmem:[%s2564 + $0xc] sm:$0xf]
        %v2569 = vld [vmem:[%s2564 + $0x10] sm:$0xf]
        %v2570 = vld [vmem:[%s2564 + $0x14] sm:$0xf]
        %v2571 = vld [vmem:[%s2564 + $0x18] sm:$0xf]
        %v2572 = vld [vmem:[%s2564 + $0x1c] sm:$0xf]
        %v2573 = vld [vmem:[%s2564 + $0x20] sm:$0xf]
        %v2574 = vld [vmem:[%s2564 + $0x24] sm:$0xf]
        %v2575 = vld [vmem:[%s2564 + $0x28] sm:$0xf]
        %v2576 = vld [vmem:[%s2564 + $0x2c] sm:$0xf]
        %v2577 = vld [vmem:[%s2564 + $0x30] sm:$0xf]
        %v2578 = vld [vmem:[%s2564 + $0x34] sm:$0xf]
        %v2579 = vld [vmem:[%s2564 + $0x38] sm:$0xf]
        %v2580 = vld [vmem:[%s2564 + $0x3c] sm:$0xf]
        %s2581 = scalar_lea.vmem [#allocation13], 1
        %v2582 = vld [vmem:[%s2581] sm:$0x1]
        %v2584 = vlaneseq
        %v2585 = vshrl.u32 %v2584, 7
        %v2586 = vsub.s32 0, %v2585
        %v2587 = vrot.slane %v2582, %v2586
        %v2605 = vunpack.c.l.b16 %v2565
        %v2606 = vunpack.c.l.b16 %v2566
        %v2607 = vunpack.c.l.b16 %v2567
        %v2608 = vunpack.c.l.b16 %v2568
        %v2609 = vunpack.c.l.b16 %v2569
        %v2610 = vunpack.c.l.b16 %v2570
        %v2611 = vunpack.c.l.b16 %v2571
        %v2612 = vunpack.c.l.b16 %v2572
        %v2613 = vunpack.c.l.b16 %v2573
        %v2614 = vunpack.c.l.b16 %v2574
        %v2615 = vunpack.c.l.b16 %v2575
        %v2616 = vunpack.c.l.b16 %v2576
        %v2617 = vunpack.c.l.b16 %v2577
        %v2618 = vunpack.c.l.b16 %v2578
        %v2619 = vunpack.c.l.b16 %v2579
        %v2620 = vunpack.c.l.b16 %v2580
        %v2621 = vpack.c.b16 %v2606, %v2605
        %v2622 = vpack.c.b16 %v2608, %v2607
        %v2623 = vpack.c.b16 %v2610, %v2609
        %v2624 = vpack.c.b16 %v2612, %v2611
        %v2625 = vpack.c.b16 %v2614, %v2613
        %v2626 = vpack.c.b16 %v2616, %v2615
        %v2627 = vpack.c.b16 %v2618, %v2617
        %v2628 = vpack.c.b16 %v2620, %v2619
        %2637 = vmatprep.subr.bf16.mxu0 0
        %2638 = vmatpush1.bf16.msra.mxu0 %v2628
        %2639 = vmatprep.subr.bf16.mxu0 0
        %2640 = vmatpush1.bf16.msra.mxu0 %v2627
        %2641 = vmatprep.subr.bf16.mxu0 0
        %2642 = vmatpush1.bf16.msra.mxu0 %v2626
        %2643 = vmatprep.subr.bf16.mxu0 0
        %2644 = vmatpush1.bf16.msra.mxu0 %v2625
        %2645 = vmatprep.subr.bf16.mxu0 0
        %2646 = vmatpush1.bf16.msra.mxu0 %v2624
        %2647 = vmatprep.subr.bf16.mxu0 0
        %2648 = vmatpush1.bf16.msra.mxu0 %v2623
        %2649 = vmatprep.subr.bf16.mxu0 0
        %2650 = vmatpush1.bf16.msra.mxu0 %v2622
        %2651 = vmatprep.subr.bf16.mxu0 0
        %2652 = vmatpush1.bf16.msra.mxu0 %v2621
        %2653 = vmatprep.subr.bf16.mxu0 0
        %2654 = vmatpush2.bf16.msra.mxu0 0
        %2655 = vmatprep.subr.bf16.mxu0 0
        %2656 = vmatpush2.bf16.msra.mxu0 0
        %2657 = vmatprep.subr.bf16.mxu0 0
        %2658 = vmatpush2.bf16.msra.mxu0 0
        %2659 = vmatprep.subr.bf16.mxu0 0
        %2660 = vmatpush2.bf16.msra.mxu0 0
        %2661 = vmatprep.subr.bf16.mxu0 0
        %2662 = vmatpush2.bf16.msra.mxu0 0
        %2663 = vmatprep.subr.bf16.mxu0 0
        %2664 = vmatpush2.bf16.msra.mxu0 0
        %2665 = vmatprep.subr.bf16.mxu0 0
        %2666 = vmatpush2.bf16.msra.mxu0 0
        %2667 = vmatprep.subr.bf16.mxu0 0
        %2668 = vmatpush2.bf16.msra.mxu0 0
        %2669 = vmatprep.mubr.bf16.mxu0 0
        %2670 = vmatmul.mubr.bf16.gmra.mxu0 %v2563
        %v2671 = vpop.f32.mrf.mxu0
        %v2672 = vadd.f32 %v2587, %v2671
        %v2673 = vpop.f32.mrf.mxu0
        %v2674 = vpop.f32.mrf.mxu0
        %v2675 = vadd.f32 %v2587, %v2674
        %v2676 = vpop.f32.mrf.mxu0
        %2677 = vdwg.mxu0
        %v2678 = vadd.f32 %v2271, %v2672
        %v2679 = vadd.f32 %v2272, %v2675
        %v2680 = vld [vmem:[%s16] sm:$0x1]
        %v2681 = vld [vmem:[%s16 + $0x1] sm:$0x1]
        %v2682 = vsel %vm660, %v2678, 0.0
        %2683 = vadd.xlane.f32.xlu0 %v2682
        %v2684 = vpop.xlane.xlu0 %2683
        %v2685 = vsel %vm660, %v2679, 0.0
        %2686 = vadd.xlane.f32.xlu0 %v2685
        %v2687 = vpop.xlane.xlu0 %2686
        %v2688 = vmul.f32 %v2684, %v667
        %v2689 = vmul.f32 %v2687, %v667
        %v2690 = vsub.f32 %v2678, %v2688
        %v2691 = vsub.f32 %v2679, %v2689
        %v2692 = vmul.f32 %v2690, %v2690
        %v2693 = vmul.f32 %v2691, %v2691
        %v2694 = vsel %vm660, %v2692, 0.0
        %2695 = vadd.xlane.f32.xlu0 %v2694
        %v2696 = vpop.xlane.xlu0 %2695
        %v2697 = vsel %vm660, %v2693, 0.0
        %2698 = vadd.xlane.f32.xlu0 %v2697
        %v2699 = vpop.xlane.xlu0 %2698
        %v2700 = vmul.f32 %v2696, %v667
        %v2701 = vmul.f32 %v2699, %v667
        %v2702 = vadd.f32 %v2700, 1e-05
        %v2703 = vadd.f32 %v2701, 1e-05
        %v2704 = vrsqrt.pop %v2702
        %v2705 = vrsqrt.pop %v2703
        %v2706 = vmul.f32 %v2690, %v2704
        %v2707 = vmul.f32 %v2691, %v2705
        %v2708 = vlaneseq
        %v2709 = vshrl.u32 %v2708, 7
        %v2710 = vsub.s32 0, %v2709
        %v2711 = vrot.slane %v2680, %v2710
        %v2712 = vmul.f32 %v2706, %v2711
        %v2713 = vmul.f32 %v2707, %v2711
        %v2714 = vlaneseq
        %v2715 = vshrl.u32 %v2714, 7
        %v2716 = vsub.s32 0, %v2715
        %v2717 = vrot.slane %v2681, %v2716
        %v2718 = vadd.f32 %v2712, %v2717
        %v2719 = vadd.f32 %v2713, %v2717
        %2720 = vst.msk [vmem:[%s643] sm:$0xff] %vm660, %v2718
        %2721 = vst.msk [vmem:[%s643 + $0x8] sm:$0xff] %vm660, %v2719
        %s2722 = sand.u32 %s405, 1
        %s2723 = scalar_lea.sflag [#allocation4], %s2722
        %s2724 = sand.u32 %s405, 1
        %s2725 = smul.addr %s2724, 16
        %s2726 = scalar_lea.vmem [#allocation14], %s2725
        // Predicated region
        $region117: #{tpu_custom_call.1} parent=87 // pred_check
          %p2727 = pneg %p415
        $region118: #{tpu_custom_call.1} parent=87 // pred_check_branch
          %2729 = sbr.rel (%p2727) target = $region120
        $region119: #{tpu_custom_call.1} parent=87 // pred_region
          %s2731 = ssub.s32 256, 256
          %2732 = vsyncadd %s2723, %s2731
          %s2733 = smul.addr %s35, 2
          %s2734 = smul.addr %s2733, 128
          %s2735 = scalar_lea.hbm %s17, %s2734
          %s2736 = sshll.u32 %s2726, 4
          %s2737 = int_to_ptr.vmem [resolvable:$true] %s2736
          %2742 = dma.vmem_to_hbm [thread:$0]  %s2737, 256, %s2735, %s2723, 128, 128, 8
        $region120: #{tpu_custom_call.1} parent=87 // pred_fallthru
          _
      $region88: #{tpu_custom_call.1} parent=5 // pred_fallthru
        _
      %p2743 = scmp.le.s32.totalorder 2, %s30
      // Predicated region
      $region121: #{tpu_custom_call.1} parent=5 // pred_check
        %p2744 = pneg %p2743
      $region122: #{tpu_custom_call.1} parent=5 // pred_check_branch
        %2746 = sbr.rel (%p2744) target = $region124
      $region123: #{tpu_custom_call.1} parent=5 // pred_region
        %s2747 = ssub.s32 %s30, 2
        // Predicated region
        $region125: #{tpu_custom_call.1} parent=123 // pred_check
          %p2748 = pneg %p421
        $region126: #{tpu_custom_call.1} parent=123 // pred_check_branch
          %2750 = sbr.rel (%p2748) target = $region128
        $region127: #{tpu_custom_call.1} parent=123 // pred_region
          %s2751 = sand.u32 %s406, 1
          %s2752 = scalar_lea.sflag [#allocation4], %s2751
          %s2753 = sand.u32 %s406, 1
          %s2754 = smul.addr %s2753, 16
          %s2755 = scalar_lea.vmem [#allocation14], %s2754
          %2756 = dma.done %s2752, 256
        $region128: #{tpu_custom_call.1} parent=123 // pred_fallthru
          _
      $region124: #{tpu_custom_call.1} parent=5 // pred_fallthru
        _
    $region6: #{tpu_custom_call.1} parent=1 // loop_footer
      %s34 = sadd.s32 1, %s30
    $region7: #{tpu_custom_call.1} parent=1 // loop_footer_branch
      %29 = sbr.rel target = $region3
    $region8: #{tpu_custom_call.1} parent=1 // loop_exit
      _
    %2757 = vsyncpa [#allocation3], 1
    %s2758 = scalar_lea.sflag [#allocation3], 1
    %2759 = vsyncpa %s2758, 1
    %2760 = vsyncpa [#allocation6], 1
    %2761 = vsyncpa [#allocation9], 1
    %2762 = vsyncpa [#allocation12], 1
    %2763 = vsyncpa [#allocation4], 1
    %s2764 = scalar_lea.sflag [#allocation4], 1
    %2765 = vsyncpa %s2764, 1

</llo_original>
